<compile_context>
chip_gen: v7x
topology: tpu7x:2x2x1
jax: 0.10.0
libtpu: 0.0.40
codegen_flags: <defaults>
</compile_context>

<pallas_src>
import jax
import jax.numpy as jnp
from jax.experimental import pallas as pl
from jax.experimental.pallas import tpu as pltpu


_TXT_OUT = 10      # real text-decoder logits width
_TXT_PAD = 128     # lane-dense padding for the text head
_IMG_OUT = 784     # real image-decoder width
_IMG_PAD = 896     # 7 * 128 lane-dense padding for the image head
_EPS = 1e-8


def _round_up(x, m):
    return ((x + m - 1) // m) * m


def _swish(x):
    return x * jax.nn.sigmoid(x)


# ------------------------------ packed layout ---------------------------------


def _layout(L):
    """Static column offsets for the packed weight / bias slabs.
    Every segment width is a multiple of 128 so static slices are aligned."""
    LPAD = _round_up(2 * L, 128)

    def build(entries):
        d, off = {}, 0
        for name, w in entries:
            d[name] = (off, w)
            off += w
        return d, off

    enc, enc_cols = build([("ie_w2", 512), ("ie_wh", LPAD),
                           ("te_w2", 512), ("te_wh", LPAD)])
    dec, dec_cols = build([("id_w2", 512), ("id_w3", 512), ("id_w4", _IMG_PAD),
                           ("td_w2", 512), ("td_w3", 512), ("td_w4", _TXT_PAD)])
    lat, lat_cols = build([("id_w1", 512), ("td_w1", 512)])
    bias, bias_cols = build([
        ("ie_b1", 512), ("ie_b2", 512), ("ie_bh", LPAD),
        ("te_b2", 512), ("te_bh", LPAD),
        ("id_b1", 512), ("id_b2", 512), ("id_b3", 512), ("id_b4", _IMG_PAD),
        ("td_b1", 512), ("td_b2", 512), ("td_b3", 512), ("td_b4", _TXT_PAD)])

    return dict(LPAD=LPAD, enc=enc, enc_cols=enc_cols,
                dec=dec, dec_cols=dec_cols,
                lat=lat, lat_cols=lat_cols,
                bias=bias, bias_cols=bias_cols)


# ------------------------------- fused kernel ---------------------------------


def _make_mvae_kernel(B, L, lay):
    enc, dec, lat, bias = lay["enc"], lay["dec"], lay["lat"], lay["bias"]

    def kernel(x_ref, hemb_ref, eps_ref, b_ref,
               w784_hbm, wenc_hbm, wlat_hbm, wdec_hbm,
               img_out_ref, txt_out_ref, mulv_out_ref,
               w784_buf, wenc_buf, wlat_buf, wdec_buf, sem):

        def dot(a, w):
            # bf16 MXU matmul with f32 accumulation.
            return jnp.dot(a.astype(w.dtype), w,
                           preferred_element_type=jnp.float32)

        def wsl(buf_ref, seg):                   # static, aligned weight slice
            off, w = seg
            return buf_ref[:, off:off + w]

        def bsl(seg):                            # static, aligned bias slice
            off, w = seg
            return b_ref[:, off:off + w]

        # ---- start all (consolidated) weight DMAs up front --------------------
        c_w784 = pltpu.make_async_copy(w784_hbm, w784_buf, sem.at[0])
        c_wenc = pltpu.make_async_copy(wenc_hbm, wenc_buf, sem.at[1])
        c_wlat = pltpu.make_async_copy(wlat_hbm, wlat_buf, sem.at[2])
        c_wdec = pltpu.make_async_copy(wdec_hbm, wdec_buf, sem.at[3])
        c_w784.start(); c_wenc.start(); c_wlat.start(); c_wdec.start()

        # ---- text encoder layer 1 (embedding already gathered, no weights) ----
        h_txt = _swish(hemb_ref[...])

        # ---- image encoder layer 1 (needs only the 784x512 slab) --------------
        c_w784.wait()
        h_img = _swish(dot(x_ref[...], w784_buf[...]) + bsl(bias["ie_b1"]))

        # ---- encoder tails: merged (mu || logvar) heads ------------------------
        c_wenc.wait()
        h_img = _swish(dot(h_img, wsl(wenc_buf, enc["ie_w2"])) + bsl(bias["ie_b2"]))
        img_mulv = dot(h_img, wsl(wenc_buf, enc["ie_wh"])) + bsl(bias["ie_bh"])
        h_txt = _swish(dot(h_txt, wsl(wenc_buf, enc["te_w2"])) + bsl(bias["te_b2"]))
        txt_mulv = dot(h_txt, wsl(wenc_buf, enc["te_wh"])) + bsl(bias["te_bh"])

        img_mu, img_lv = img_mulv[:, :L], img_mulv[:, L:2 * L]
        txt_mu, txt_lv = txt_mulv[:, :L], txt_mulv[:, L:2 * L]

        # ---- product of experts (prior N(0,1) folded in analytically) ---------
        # reference: var = exp(lv) + eps ; T = 1/(var + eps)
        # prior expert: T = 1/((exp(0) + eps) + eps) == 1.0 exactly in f32.
        T_img = 1.0 / ((jnp.exp(img_lv) + _EPS) + _EPS)
        T_txt = 1.0 / ((jnp.exp(txt_lv) + _EPS) + _EPS)
        T_sum = 1.0 + T_img + T_txt
        pd_var = 1.0 / T_sum
        pd_mu = (img_mu * T_img + txt_mu * T_txt) * pd_var   # prior mu == 0
        pd_lv = jnp.log(pd_var + _EPS)

        # ---- reparametrize: std = exp(0.5*log(pd_var+eps)) == sqrt(pd_var+eps)
        z = pd_mu + eps_ref[...] * jnp.sqrt(pd_var + _EPS)

        # packed (mu || logvar) output — single 2L-wide store
        mulv_out_ref[...] = jnp.concatenate([pd_mu, pd_lv], axis=1)

        # ---- decoder first layers (small L-input slab) -------------------------
        c_wlat.wait()
        h_id = _swish(dot(z, wsl(wlat_buf, lat["id_w1"])) + bsl(bias["id_b1"]))
        h_td = _swish(dot(z, wsl(wlat_buf, lat["td_w1"])) + bsl(bias["td_b1"]))

        # ---- decoder bodies + lane-dense heads ---------------------------------
        c_wdec.wait()
        h_id = _swish(dot(h_id, wsl(wdec_buf, dec["id_w2"])) + bsl(bias["id_b2"]))
        h_id = _swish(dot(h_id, wsl(wdec_buf, dec["id_w3"])) + bsl(bias["id_b3"]))
        img_out_ref[...] = dot(h_id, wsl(wdec_buf, dec["id_w4"])) + bsl(bias["id_b4"])

        h_td = _swish(dot(h_td, wsl(wdec_buf, dec["td_w2"])) + bsl(bias["td_b2"]))
        h_td = _swish(dot(h_td, wsl(wdec_buf, dec["td_w3"])) + bsl(bias["td_b3"]))
        txt_out_ref[...] = dot(h_td, wsl(wdec_buf, dec["td_w4"])) + bsl(bias["td_b4"])

    return kernel


# -------------------------------- parameters -----------------------------------


def init_mvae_params(key, n_latents):
    """Weights stored pre-transposed (in_features, out_features), packed into
    4 bf16 weight slabs + 1 f32 bias vector (128-aligned segments).
    n_latents is NOT stored in the pytree; it is derived from weight shapes."""
    L = n_latents
    lay = _layout(L)
    keys = jax.random.split(key, 16)

    def lin(k, i, o, scale=0.05):
        kw, kb = jax.random.split(k)
        w = jax.random.normal(kw, (i, o), jnp.float32) * scale
        b = jax.random.normal(kb, (o,), jnp.float32) * scale
        return w, b

    # ImageEncoder: 784 -> 512 -> 512 -> (L || L)
    ie_w1, ie_b1 = lin(keys[0], 784, 512)
    ie_w2, ie_b2 = lin(keys[1], 512, 512)
    ie_w31, ie_b31 = lin(keys[2], 512, L)
    ie_w32, ie_b32 = lin(keys[3], 512, L)
    # TextEncoder: Embedding(10, 512) -> 512 -> (L || L)
    emb = jax.random.normal(keys[4], (10, 512), jnp.float32) * 0.05
    te_w2, te_b2 = lin(keys[5], 512, 512)
    te_w31, te_b31 = lin(keys[6], 512, L)
    te_w32, te_b32 = lin(keys[7], 512, L)
    # ImageDecoder: L -> 512 -> 512 -> 512 -> 784
    id_w1, id_b1 = lin(keys[8], L, 512)
    id_w2, id_b2 = lin(keys[9], 512, 512)
    id_w3, id_b3 = lin(keys[10], 512, 512)
    id_w4, id_b4 = lin(keys[11], 512, _IMG_OUT)
    # TextDecoder: L -> 512 -> 512 -> 512 -> 10
    td_w1, td_b1 = lin(keys[12], L, 512)
    td_w2, td_b2 = lin(keys[13], 512, 512)
    td_w3, td_b3 = lin(keys[14], 512, 512)
    td_w4, td_b4 = lin(keys[15], 512, _TXT_OUT)

    ie_wh = jnp.concatenate([ie_w31, ie_w32], axis=1)
    ie_bh = jnp.concatenate([ie_b31, ie_b32], axis=0)
    te_wh = jnp.concatenate([te_w31, te_w32], axis=1)
    te_bh = jnp.concatenate([te_b31, te_b32], axis=0)

    def pack_w(layout_map, rows, cols, named):
        slab = jnp.zeros((rows, cols), jnp.float32)
        for name, w in named.items():
            off, _ = layout_map[name]
            slab = slab.at[:, off:off + w.shape[1]].set(w)
        return slab.astype(jnp.bfloat16)

    def pack_b(layout_map, cols, named):
        vec = jnp.zeros((1, cols), jnp.float32)
        for name, b in named.items():
            off, _ = layout_map[name]
            vec = vec.at[0, off:off + b.shape[0]].set(b)
        return vec

    return {
        "emb": emb,
        "w784": ie_w1.astype(jnp.bfloat16),
        "w_enc": pack_w(lay["enc"], 512, lay["enc_cols"],
                        dict(ie_w2=ie_w2, ie_wh=ie_wh, te_w2=te_w2, te_wh=te_wh)),
        "w_lat": pack_w(lay["lat"], L, lay["lat_cols"],
                        dict(id_w1=id_w1, td_w1=td_w1)),
        "w_dec": pack_w(lay["dec"], 512, lay["dec_cols"],
                        dict(id_w2=id_w2, id_w3=id_w3, id_w4=id_w4,
                             td_w2=td_w2, td_w3=td_w3, td_w4=td_w4)),
        "bias": pack_b(lay["bias"], lay["bias_cols"],
                       dict(ie_b1=ie_b1, ie_b2=ie_b2, ie_bh=ie_bh,
                            te_b2=te_b2, te_bh=te_bh,
                            id_b1=id_b1, id_b2=id_b2, id_b3=id_b3, id_b4=id_b4,
                            td_b1=td_b1, td_b2=td_b2, td_b3=td_b3, td_b4=td_b4)),
    }


# ---------------------------------- forward ------------------------------------


def mvae_forward(params, image=None, text=None, *, training=True, rng=None):
    """Mirrors MVAE.forward for the bimodal (image + text) path.
    Returns (img_recon, txt_recon, mu, logvar)."""
    # TODO(synk): unimodal (image-only / text-only) inference paths would need
    # reduced kernel variants; only the bimodal forward is fused here.
    assert image is not None and text is not None
    B = image.shape[0]
    L = params["w_lat"].shape[0]            # static latent size from weights
    lay = _layout(L)

    x = image.reshape(B, 784).astype(jnp.float32)              # x.view(-1, 784)
    labels = jnp.clip(text.astype(jnp.int32), 0, params["emb"].shape[0] - 1)
    h_emb = jnp.take(params["emb"], labels, axis=0)             # (B, 512) gather
    if training:
        eps = jax.random.normal(rng, (B, L), jnp.float32)
    else:
        eps = jnp.zeros((B, L), jnp.float32)                    # eval: z = mu

    kernel = _make_mvae_kernel(B, L, lay)

    vmem = pl.BlockSpec(memory_space=pltpu.MemorySpace.VMEM)
    hbm = pl.BlockSpec(memory_space=pl.ANY)

    weight_bytes = 2 * (params["w784"].size + params["w_enc"].size
                        + params["w_lat"].size + params["w_dec"].size)
    io_bytes = 4 * (x.size + h_emb.size + eps.size + params["bias"].size
                    + B * (_IMG_PAD + _TXT_PAD + 2 * L))
    flops = 2 * B * (784 * 512 + 512 * 512 + 512 * 2 * L          # image encoder
                     + 512 * 512 + 512 * 2 * L                    # text encoder
                     + L * 512 + 2 * 512 * 512 + 512 * _IMG_PAD   # image decoder
                     + L * 512 + 2 * 512 * 512 + 512 * _TXT_PAD)  # text decoder
    cost = pl.CostEstimate(flops=flops,
                           transcendentals=B * (512 * 10 + 8 * L),
                           bytes_accessed=weight_bytes + io_bytes)

    img_pad, txt_pad, mulv = pl.pallas_call(
        kernel,
        out_shape=(jax.ShapeDtypeStruct((B, _IMG_PAD), jnp.float32),
                   jax.ShapeDtypeStruct((B, _TXT_PAD), jnp.float32),
                   jax.ShapeDtypeStruct((B, 2 * L), jnp.float32)),
        in_specs=[vmem, vmem, vmem, vmem, hbm, hbm, hbm, hbm],
        out_specs=(vmem, vmem, vmem),
        scratch_shapes=[
            pltpu.VMEM((784, 512), jnp.bfloat16),
            pltpu.VMEM((512, lay["enc_cols"]), jnp.bfloat16),
            pltpu.VMEM((L, lay["lat_cols"]), jnp.bfloat16),
            pltpu.VMEM((512, lay["dec_cols"]), jnp.bfloat16),
            pltpu.SemaphoreType.DMA((4,)),
        ],
        compiler_params=pltpu.CompilerParams(
            vmem_limit_bytes=16 * 1024 * 1024),
        cost_estimate=cost,
    )(x, h_emb, eps, params["bias"],
      params["w784"], params["w_enc"], params["w_lat"], params["w_dec"])

    img_recon = img_pad[:, :_IMG_OUT]
    txt_recon = txt_pad[:, :_TXT_OUT]
    mu = mulv[:, :L]
    logvar = mulv[:, L:]
    return img_recon, txt_recon, mu, logvar


# ------------------------------------ main --------------------------------------


if __name__ == "__main__":
    key = jax.random.PRNGKey(0)
    k_params, k_img, k_txt, k_eps = jax.random.split(key, 4)

    n_latents = 32
    batch = 8    # NOTE: throughput lever — batch up to ~128/256 is nearly free

    params = init_mvae_params(k_params, n_latents)

    # MNIST-like inputs: NCHW image + integer label "text".
    image = jax.random.uniform(k_img, (batch, 1, 28, 28), jnp.float32)
    text = jax.random.randint(k_txt, (batch,), 0, 10, jnp.int32)

    fwd = jax.jit(
        lambda p, im, tx, rng: mvae_forward(p, image=im, text=tx,
                                            training=True, rng=rng))
    img_recon, txt_recon, mu, logvar = fwd(params, image, text, k_eps)
    jax.block_until_ready((img_recon, txt_recon, mu, logvar))

    assert img_recon.shape == (batch, _IMG_OUT)
    assert txt_recon.shape == (batch, _TXT_OUT)
    assert mu.shape == (batch, n_latents)
    assert logvar.shape == (batch, n_latents)
    assert bool(jnp.all(jnp.isfinite(img_recon)))
    assert bool(jnp.all(jnp.isfinite(txt_recon)))
    assert bool(jnp.all(jnp.isfinite(mu))) and bool(jnp.all(jnp.isfinite(logvar)))

    print("KERNEL_OK")
</pallas_src>

<mosaic_0001>
module attributes {stable_mosaic.version = 11 : i64} {
  func.func @kernel(%arg0: memref<8x784xf32, #tpu.memory_space<vmem>>, %arg1: memref<8x512xf32, #tpu.memory_space<vmem>>, %arg2: memref<8x32xf32, #tpu.memory_space<vmem>>, %arg3: memref<1x5888xf32, #tpu.memory_space<vmem>>, %arg4: memref<784x512xbf16, #tpu.memory_space<any>>, %arg5: memref<512x1280xbf16, #tpu.memory_space<any>>, %arg6: memref<32x1024xbf16, #tpu.memory_space<any>>, %arg7: memref<512x3072xbf16, #tpu.memory_space<any>>, %arg8: memref<8x896xf32, #tpu.memory_space<vmem>>, %arg9: memref<8x128xf32, #tpu.memory_space<vmem>>, %arg10: memref<8x64xf32, #tpu.memory_space<vmem>>, %arg11: memref<784x512xbf16, #tpu.memory_space<vmem>>, %arg12: memref<512x1280xbf16, #tpu.memory_space<vmem>>, %arg13: memref<32x1024xbf16, #tpu.memory_space<vmem>>, %arg14: memref<512x3072xbf16, #tpu.memory_space<vmem>>, %arg15: memref<4x!tpu.dma_semaphore, #tpu.memory_space<semaphore_mem>>) attributes {dimension_semantics = [], scalar_prefetch = 0 : i64, scratch_operands = 5 : i64, tpu.core_type = #tpu.core_type<tc>} {
    %c0_i32 = arith.constant 0 : i32
    %0 = tpu.memref_slice %arg15[%c0_i32] : memref<4x!tpu.dma_semaphore, #tpu.memory_space<semaphore_mem>> -> memref<1x!tpu.dma_semaphore, #tpu.memory_space<semaphore_mem>>
    %1 = tpu.memref_squeeze %0 : memref<1x!tpu.dma_semaphore, #tpu.memory_space<semaphore_mem>> -> memref<!tpu.dma_semaphore, #tpu.memory_space<semaphore_mem>>
    tpu.enqueue_dma source(%arg4 : memref<784x512xbf16, #tpu.memory_space<any>>) target(%arg11 : memref<784x512xbf16, #tpu.memory_space<vmem>>) target_semaphore(%1 : memref<!tpu.dma_semaphore, #tpu.memory_space<semaphore_mem>>)
    %c1_i32 = arith.constant 1 : i32
    %2 = tpu.memref_slice %arg15[%c1_i32] : memref<4x!tpu.dma_semaphore, #tpu.memory_space<semaphore_mem>> -> memref<1x!tpu.dma_semaphore, #tpu.memory_space<semaphore_mem>>
    %3 = tpu.memref_squeeze %2 : memref<1x!tpu.dma_semaphore, #tpu.memory_space<semaphore_mem>> -> memref<!tpu.dma_semaphore, #tpu.memory_space<semaphore_mem>>
    tpu.enqueue_dma source(%arg5 : memref<512x1280xbf16, #tpu.memory_space<any>>) target(%arg12 : memref<512x1280xbf16, #tpu.memory_space<vmem>>) target_semaphore(%3 : memref<!tpu.dma_semaphore, #tpu.memory_space<semaphore_mem>>)
    %c2_i32 = arith.constant 2 : i32
    %4 = tpu.memref_slice %arg15[%c2_i32] : memref<4x!tpu.dma_semaphore, #tpu.memory_space<semaphore_mem>> -> memref<1x!tpu.dma_semaphore, #tpu.memory_space<semaphore_mem>>
    %5 = tpu.memref_squeeze %4 : memref<1x!tpu.dma_semaphore, #tpu.memory_space<semaphore_mem>> -> memref<!tpu.dma_semaphore, #tpu.memory_space<semaphore_mem>>
    tpu.enqueue_dma source(%arg6 : memref<32x1024xbf16, #tpu.memory_space<any>>) target(%arg13 : memref<32x1024xbf16, #tpu.memory_space<vmem>>) target_semaphore(%5 : memref<!tpu.dma_semaphore, #tpu.memory_space<semaphore_mem>>)
    %c3_i32 = arith.constant 3 : i32
    %6 = tpu.memref_slice %arg15[%c3_i32] : memref<4x!tpu.dma_semaphore, #tpu.memory_space<semaphore_mem>> -> memref<1x!tpu.dma_semaphore, #tpu.memory_space<semaphore_mem>>
    %7 = tpu.memref_squeeze %6 : memref<1x!tpu.dma_semaphore, #tpu.memory_space<semaphore_mem>> -> memref<!tpu.dma_semaphore, #tpu.memory_space<semaphore_mem>>
    tpu.enqueue_dma source(%arg7 : memref<512x3072xbf16, #tpu.memory_space<any>>) target(%arg14 : memref<512x3072xbf16, #tpu.memory_space<vmem>>) target_semaphore(%7 : memref<!tpu.dma_semaphore, #tpu.memory_space<semaphore_mem>>)
    %c0 = arith.constant 0 : index
    %c0_0 = arith.constant 0 : index
    %8 = vector.load %arg1[%c0, %c0_0] : memref<8x512xf32, #tpu.memory_space<vmem>>, vector<8x512xf32>
    %9 = arith.negf %8 : vector<8x512xf32>
    %10 = math.exp %9 : vector<8x512xf32>
    %cst = arith.constant 1.000000e+00 : f32
    %11 = vector.broadcast %cst : f32 to vector<8x512xf32>
    %12 = arith.addf %11, %10 : vector<8x512xf32>
    %13 = arith.divf %11, %12 : vector<8x512xf32>
    %14 = arith.mulf %8, %13 : vector<8x512xf32>
    %c0_i32_1 = arith.constant 0 : i32
    %15 = tpu.memref_slice %arg15[%c0_i32_1] : memref<4x!tpu.dma_semaphore, #tpu.memory_space<semaphore_mem>> -> memref<1x!tpu.dma_semaphore, #tpu.memory_space<semaphore_mem>>
    %16 = tpu.memref_squeeze %15 : memref<1x!tpu.dma_semaphore, #tpu.memory_space<semaphore_mem>> -> memref<!tpu.dma_semaphore, #tpu.memory_space<semaphore_mem>>
    tpu.wait_dma2 semaphore(%16 : memref<!tpu.dma_semaphore, #tpu.memory_space<semaphore_mem>>) src(%arg4 : memref<784x512xbf16, #tpu.memory_space<any>>) dst(%arg11 : memref<784x512xbf16, #tpu.memory_space<vmem>>)
    %c0_2 = arith.constant 0 : index
    %c0_3 = arith.constant 0 : index
    %17 = vector.load %arg0[%c0_2, %c0_3] : memref<8x784xf32, #tpu.memory_space<vmem>>, vector<8x784xf32>
    %c0_4 = arith.constant 0 : index
    %c0_5 = arith.constant 0 : index
    %18 = vector.load %arg11[%c0_4, %c0_5] : memref<784x512xbf16, #tpu.memory_space<vmem>>, vector<784x512xbf16>
    %19 = arith.truncf %17 : vector<8x784xf32> to vector<8x784xbf16>
    %cst_6 = arith.constant dense<0.000000e+00> : vector<8x512xf32>
    %20 = tpu.matmul %19, %18, %cst_6 {dimension_numbers = #tpu.dot_dimension_numbers<[1], [0], [0], [1], [0, 0, 1, 1], [], []>} : vector<8x784xbf16>, vector<784x512xbf16>, vector<8x512xf32> -> vector<8x512xf32>
    %c0_7 = arith.constant 0 : index
    %c0_8 = arith.constant 0 : index
    %21 = vector.load %arg3[%c0_7, %c0_8] : memref<1x5888xf32, #tpu.memory_space<vmem>>, vector<1x512xf32>
    %22 = vector.broadcast %21 : vector<1x512xf32> to vector<8x512xf32>
    %23 = arith.addf %20, %22 : vector<8x512xf32>
    %24 = arith.negf %23 : vector<8x512xf32>
    %25 = math.exp %24 : vector<8x512xf32>
    %cst_9 = arith.constant 1.000000e+00 : f32
    %26 = vector.broadcast %cst_9 : f32 to vector<8x512xf32>
    %27 = arith.addf %26, %25 : vector<8x512xf32>
    %28 = arith.divf %26, %27 : vector<8x512xf32>
    %29 = arith.mulf %23, %28 : vector<8x512xf32>
    %c1_i32_10 = arith.constant 1 : i32
    %30 = tpu.memref_slice %arg15[%c1_i32_10] : memref<4x!tpu.dma_semaphore, #tpu.memory_space<semaphore_mem>> -> memref<1x!tpu.dma_semaphore, #tpu.memory_space<semaphore_mem>>
    %31 = tpu.memref_squeeze %30 : memref<1x!tpu.dma_semaphore, #tpu.memory_space<semaphore_mem>> -> memref<!tpu.dma_semaphore, #tpu.memory_space<semaphore_mem>>
    tpu.wait_dma2 semaphore(%31 : memref<!tpu.dma_semaphore, #tpu.memory_space<semaphore_mem>>) src(%arg5 : memref<512x1280xbf16, #tpu.memory_space<any>>) dst(%arg12 : memref<512x1280xbf16, #tpu.memory_space<vmem>>)
    %c0_11 = arith.constant 0 : index
    %c0_12 = arith.constant 0 : index
    %32 = vector.load %arg12[%c0_11, %c0_12] : memref<512x1280xbf16, #tpu.memory_space<vmem>>, vector<512x512xbf16>
    %33 = arith.truncf %29 : vector<8x512xf32> to vector<8x512xbf16>
    %cst_13 = arith.constant dense<0.000000e+00> : vector<8x512xf32>
    %34 = tpu.matmul %33, %32, %cst_13 {dimension_numbers = #tpu.dot_dimension_numbers<[1], [0], [0], [1], [0, 0, 1, 1], [], []>} : vector<8x512xbf16>, vector<512x512xbf16>, vector<8x512xf32> -> vector<8x512xf32>
    %c0_14 = arith.constant 0 : index
    %c512 = arith.constant 512 : index
    %35 = vector.load %arg3[%c0_14, %c512] : memref<1x5888xf32, #tpu.memory_space<vmem>>, vector<1x512xf32>
    %36 = vector.broadcast %35 : vector<1x512xf32> to vector<8x512xf32>
    %37 = arith.addf %34, %36 : vector<8x512xf32>
    %38 = arith.negf %37 : vector<8x512xf32>
    %39 = math.exp %38 : vector<8x512xf32>
    %cst_15 = arith.constant 1.000000e+00 : f32
    %40 = vector.broadcast %cst_15 : f32 to vector<8x512xf32>
    %41 = arith.addf %40, %39 : vector<8x512xf32>
    %42 = arith.divf %40, %41 : vector<8x512xf32>
    %43 = arith.mulf %37, %42 : vector<8x512xf32>
    %c0_16 = arith.constant 0 : index
    %c512_17 = arith.constant 512 : index
    %44 = vector.load %arg12[%c0_16, %c512_17] : memref<512x1280xbf16, #tpu.memory_space<vmem>>, vector<512x128xbf16>
    %45 = arith.truncf %43 : vector<8x512xf32> to vector<8x512xbf16>
    %cst_18 = arith.constant dense<0.000000e+00> : vector<8x128xf32>
    %46 = tpu.matmul %45, %44, %cst_18 {dimension_numbers = #tpu.dot_dimension_numbers<[1], [0], [0], [1], [0, 0, 1, 1], [], []>} : vector<8x512xbf16>, vector<512x128xbf16>, vector<8x128xf32> -> vector<8x128xf32>
    %c0_19 = arith.constant 0 : index
    %c1024 = arith.constant 1024 : index
    %47 = vector.load %arg3[%c0_19, %c1024] : memref<1x5888xf32, #tpu.memory_space<vmem>>, vector<1x128xf32>
    %48 = vector.broadcast %47 : vector<1x128xf32> to vector<8x128xf32>
    %49 = arith.addf %46, %48 : vector<8x128xf32>
    %c0_20 = arith.constant 0 : index
    %c640 = arith.constant 640 : index
    %50 = vector.load %arg12[%c0_20, %c640] : memref<512x1280xbf16, #tpu.memory_space<vmem>>, vector<512x512xbf16>
    %51 = arith.truncf %14 : vector<8x512xf32> to vector<8x512xbf16>
    %cst_21 = arith.constant dense<0.000000e+00> : vector<8x512xf32>
    %52 = tpu.matmul %51, %50, %cst_21 {dimension_numbers = #tpu.dot_dimension_numbers<[1], [0], [0], [1], [0, 0, 1, 1], [], []>} : vector<8x512xbf16>, vector<512x512xbf16>, vector<8x512xf32> -> vector<8x512xf32>
    %c0_22 = arith.constant 0 : index
    %c1152 = arith.constant 1152 : index
    %53 = vector.load %arg3[%c0_22, %c1152] : memref<1x5888xf32, #tpu.memory_space<vmem>>, vector<1x512xf32>
    %54 = vector.broadcast %53 : vector<1x512xf32> to vector<8x512xf32>
    %55 = arith.addf %52, %54 : vector<8x512xf32>
    %56 = arith.negf %55 : vector<8x512xf32>
    %57 = math.exp %56 : vector<8x512xf32>
    %cst_23 = arith.constant 1.000000e+00 : f32
    %58 = vector.broadcast %cst_23 : f32 to vector<8x512xf32>
    %59 = arith.addf %58, %57 : vector<8x512xf32>
    %60 = arith.divf %58, %59 : vector<8x512xf32>
    %61 = arith.mulf %55, %60 : vector<8x512xf32>
    %c0_24 = arith.constant 0 : index
    %c1152_25 = arith.constant 1152 : index
    %62 = vector.load %arg12[%c0_24, %c1152_25] : memref<512x1280xbf16, #tpu.memory_space<vmem>>, vector<512x128xbf16>
    %63 = arith.truncf %61 : vector<8x512xf32> to vector<8x512xbf16>
    %cst_26 = arith.constant dense<0.000000e+00> : vector<8x128xf32>
    %64 = tpu.matmul %63, %62, %cst_26 {dimension_numbers = #tpu.dot_dimension_numbers<[1], [0], [0], [1], [0, 0, 1, 1], [], []>} : vector<8x512xbf16>, vector<512x128xbf16>, vector<8x128xf32> -> vector<8x128xf32>
    %c0_27 = arith.constant 0 : index
    %c1664 = arith.constant 1664 : index
    %65 = vector.load %arg3[%c0_27, %c1664] : memref<1x5888xf32, #tpu.memory_space<vmem>>, vector<1x128xf32>
    %66 = vector.broadcast %65 : vector<1x128xf32> to vector<8x128xf32>
    %67 = arith.addf %64, %66 : vector<8x128xf32>
    %68 = vector.extract_strided_slice %49 {offsets = [0, 0], sizes = [8, 32], strides = [1, 1]} : vector<8x128xf32> to vector<8x32xf32>
    %69 = vector.extract_strided_slice %49 {offsets = [0, 32], sizes = [8, 32], strides = [1, 1]} : vector<8x128xf32> to vector<8x32xf32>
    %70 = vector.extract_strided_slice %67 {offsets = [0, 0], sizes = [8, 32], strides = [1, 1]} : vector<8x128xf32> to vector<8x32xf32>
    %71 = vector.extract_strided_slice %67 {offsets = [0, 32], sizes = [8, 32], strides = [1, 1]} : vector<8x128xf32> to vector<8x32xf32>
    %72 = math.exp %69 : vector<8x32xf32>
    %cst_28 = arith.constant 9.99999993E-9 : f32
    %73 = vector.broadcast %cst_28 : f32 to vector<8x32xf32>
    %74 = arith.addf %72, %73 : vector<8x32xf32>
    %cst_29 = arith.constant 9.99999993E-9 : f32
    %75 = vector.broadcast %cst_29 : f32 to vector<8x32xf32>
    %76 = arith.addf %74, %75 : vector<8x32xf32>
    %cst_30 = arith.constant 1.000000e+00 : f32
    %77 = vector.broadcast %cst_30 : f32 to vector<8x32xf32>
    %78 = arith.divf %77, %76 : vector<8x32xf32>
    %79 = math.exp %71 : vector<8x32xf32>
    %cst_31 = arith.constant 9.99999993E-9 : f32
    %80 = vector.broadcast %cst_31 : f32 to vector<8x32xf32>
    %81 = arith.addf %79, %80 : vector<8x32xf32>
    %cst_32 = arith.constant 9.99999993E-9 : f32
    %82 = vector.broadcast %cst_32 : f32 to vector<8x32xf32>
    %83 = arith.addf %81, %82 : vector<8x32xf32>
    %cst_33 = arith.constant 1.000000e+00 : f32
    %84 = vector.broadcast %cst_33 : f32 to vector<8x32xf32>
    %85 = arith.divf %84, %83 : vector<8x32xf32>
    %cst_34 = arith.constant 1.000000e+00 : f32
    %86 = vector.broadcast %cst_34 : f32 to vector<8x32xf32>
    %87 = arith.addf %86, %78 : vector<8x32xf32>
    %88 = arith.addf %87, %85 : vector<8x32xf32>
    %cst_35 = arith.constant 1.000000e+00 : f32
    %89 = vector.broadcast %cst_35 : f32 to vector<8x32xf32>
    %90 = arith.divf %89, %88 : vector<8x32xf32>
    %91 = arith.mulf %68, %78 : vector<8x32xf32>
    %92 = arith.mulf %70, %85 : vector<8x32xf32>
    %93 = arith.addf %91, %92 : vector<8x32xf32>
    %94 = arith.mulf %93, %90 : vector<8x32xf32>
    %cst_36 = arith.constant 9.99999993E-9 : f32
    %95 = vector.broadcast %cst_36 : f32 to vector<8x32xf32>
    %96 = arith.addf %90, %95 : vector<8x32xf32>
    %97 = math.log %96 : vector<8x32xf32>
    %c0_37 = arith.constant 0 : index
    %c0_38 = arith.constant 0 : index
    %98 = vector.load %arg2[%c0_37, %c0_38] : memref<8x32xf32, #tpu.memory_space<vmem>>, vector<8x32xf32>
    %cst_39 = arith.constant 9.99999993E-9 : f32
    %99 = vector.broadcast %cst_39 : f32 to vector<8x32xf32>
    %100 = arith.addf %90, %99 : vector<8x32xf32>
    %101 = math.sqrt %100 : vector<8x32xf32>
    %102 = arith.mulf %98, %101 : vector<8x32xf32>
    %103 = arith.addf %94, %102 : vector<8x32xf32>
    %104 = tpu.concatenate %94, %97 in 1 : vector<8x32xf32>, vector<8x32xf32> -> vector<8x64xf32>
    %c0_40 = arith.constant 0 : index
    %c0_41 = arith.constant 0 : index
    %105 = vector.load %arg10[%c0_40, %c0_41] : memref<8x64xf32, #tpu.memory_space<vmem>>, vector<8x64xf32>
    tpu.vector_store %arg10[%c0_40, %c0_41], %104 {strides = array<i32>} : memref<8x64xf32, #tpu.memory_space<vmem>>, vector<8x64xf32>,
    %c2_i32_42 = arith.constant 2 : i32
    %106 = tpu.memref_slice %arg15[%c2_i32_42] : memref<4x!tpu.dma_semaphore, #tpu.memory_space<semaphore_mem>> -> memref<1x!tpu.dma_semaphore, #tpu.memory_space<semaphore_mem>>
    %107 = tpu.memref_squeeze %106 : memref<1x!tpu.dma_semaphore, #tpu.memory_space<semaphore_mem>> -> memref<!tpu.dma_semaphore, #tpu.memory_space<semaphore_mem>>
    tpu.wait_dma2 semaphore(%107 : memref<!tpu.dma_semaphore, #tpu.memory_space<semaphore_mem>>) src(%arg6 : memref<32x1024xbf16, #tpu.memory_space<any>>) dst(%arg13 : memref<32x1024xbf16, #tpu.memory_space<vmem>>)
    %c0_43 = arith.constant 0 : index
    %c0_44 = arith.constant 0 : index
    %108 = vector.load %arg13[%c0_43, %c0_44] : memref<32x1024xbf16, #tpu.memory_space<vmem>>, vector<32x512xbf16>
    %109 = arith.truncf %103 : vector<8x32xf32> to vector<8x32xbf16>
    %cst_45 = arith.constant dense<0.000000e+00> : vector<8x512xf32>
    %110 = tpu.matmul %109, %108, %cst_45 {dimension_numbers = #tpu.dot_dimension_numbers<[1], [0], [0], [1], [0, 0, 1, 1], [], []>} : vector<8x32xbf16>, vector<32x512xbf16>, vector<8x512xf32> -> vector<8x512xf32>
    %c0_46 = arith.constant 0 : index
    %c1792 = arith.constant 1792 : index
    %111 = vector.load %arg3[%c0_46, %c1792] : memref<1x5888xf32, #tpu.memory_space<vmem>>, vector<1x512xf32>
    %112 = vector.broadcast %111 : vector<1x512xf32> to vector<8x512xf32>
    %113 = arith.addf %110, %112 : vector<8x512xf32>
    %114 = arith.negf %113 : vector<8x512xf32>
    %115 = math.exp %114 : vector<8x512xf32>
    %cst_47 = arith.constant 1.000000e+00 : f32
    %116 = vector.broadcast %cst_47 : f32 to vector<8x512xf32>
    %117 = arith.addf %116, %115 : vector<8x512xf32>
    %118 = arith.divf %116, %117 : vector<8x512xf32>
    %119 = arith.mulf %113, %118 : vector<8x512xf32>
    %c0_48 = arith.constant 0 : index
    %c512_49 = arith.constant 512 : index
    %120 = vector.load %arg13[%c0_48, %c512_49] : memref<32x1024xbf16, #tpu.memory_space<vmem>>, vector<32x512xbf16>
    %121 = arith.truncf %103 : vector<8x32xf32> to vector<8x32xbf16>
    %cst_50 = arith.constant dense<0.000000e+00> : vector<8x512xf32>
    %122 = tpu.matmul %121, %120, %cst_50 {dimension_numbers = #tpu.dot_dimension_numbers<[1], [0], [0], [1], [0, 0, 1, 1], [], []>} : vector<8x32xbf16>, vector<32x512xbf16>, vector<8x512xf32> -> vector<8x512xf32>
    %c0_51 = arith.constant 0 : index
    %c4224 = arith.constant 4224 : index
    %123 = vector.load %arg3[%c0_51, %c4224] : memref<1x5888xf32, #tpu.memory_space<vmem>>, vector<1x512xf32>
    %124 = vector.broadcast %123 : vector<1x512xf32> to vector<8x512xf32>
    %125 = arith.addf %122, %124 : vector<8x512xf32>
    %126 = arith.negf %125 : vector<8x512xf32>
    %127 = math.exp %126 : vector<8x512xf32>
    %cst_52 = arith.constant 1.000000e+00 : f32
    %128 = vector.broadcast %cst_52 : f32 to vector<8x512xf32>
    %129 = arith.addf %128, %127 : vector<8x512xf32>
    %130 = arith.divf %128, %129 : vector<8x512xf32>
    %131 = arith.mulf %125, %130 : vector<8x512xf32>
    %c3_i32_53 = arith.constant 3 : i32
    %132 = tpu.memref_slice %arg15[%c3_i32_53] : memref<4x!tpu.dma_semaphore, #tpu.memory_space<semaphore_mem>> -> memref<1x!tpu.dma_semaphore, #tpu.memory_space<semaphore_mem>>
    %133 = tpu.memref_squeeze %132 : memref<1x!tpu.dma_semaphore, #tpu.memory_space<semaphore_mem>> -> memref<!tpu.dma_semaphore, #tpu.memory_space<semaphore_mem>>
    tpu.wait_dma2 semaphore(%133 : memref<!tpu.dma_semaphore, #tpu.memory_space<semaphore_mem>>) src(%arg7 : memref<512x3072xbf16, #tpu.memory_space<any>>) dst(%arg14 : memref<512x3072xbf16, #tpu.memory_space<vmem>>)
    %c0_54 = arith.constant 0 : index
    %c0_55 = arith.constant 0 : index
    %134 = vector.load %arg14[%c0_54, %c0_55] : memref<512x3072xbf16, #tpu.memory_space<vmem>>, vector<512x512xbf16>
    %135 = arith.truncf %119 : vector<8x512xf32> to vector<8x512xbf16>
    %cst_56 = arith.constant dense<0.000000e+00> : vector<8x512xf32>
    %136 = tpu.matmul %135, %134, %cst_56 {dimension_numbers = #tpu.dot_dimension_numbers<[1], [0], [0], [1], [0, 0, 1, 1], [], []>} : vector<8x512xbf16>, vector<512x512xbf16>, vector<8x512xf32> -> vector<8x512xf32>
    %c0_57 = arith.constant 0 : index
    %c2304 = arith.constant 2304 : index
    %137 = vector.load %arg3[%c0_57, %c2304] : memref<1x5888xf32, #tpu.memory_space<vmem>>, vector<1x512xf32>
    %138 = vector.broadcast %137 : vector<1x512xf32> to vector<8x512xf32>
    %139 = arith.addf %136, %138 : vector<8x512xf32>
    %140 = arith.negf %139 : vector<8x512xf32>
    %141 = math.exp %140 : vector<8x512xf32>
    %cst_58 = arith.constant 1.000000e+00 : f32
    %142 = vector.broadcast %cst_58 : f32 to vector<8x512xf32>
    %143 = arith.addf %142, %141 : vector<8x512xf32>
    %144 = arith.divf %142, %143 : vector<8x512xf32>
    %145 = arith.mulf %139, %144 : vector<8x512xf32>
    %c0_59 = arith.constant 0 : index
    %c512_60 = arith.constant 512 : index
    %146 = vector.load %arg14[%c0_59, %c512_60] : memref<512x3072xbf16, #tpu.memory_space<vmem>>, vector<512x512xbf16>
    %147 = arith.truncf %145 : vector<8x512xf32> to vector<8x512xbf16>
    %cst_61 = arith.constant dense<0.000000e+00> : vector<8x512xf32>
    %148 = tpu.matmul %147, %146, %cst_61 {dimension_numbers = #tpu.dot_dimension_numbers<[1], [0], [0], [1], [0, 0, 1, 1], [], []>} : vector<8x512xbf16>, vector<512x512xbf16>, vector<8x512xf32> -> vector<8x512xf32>
    %c0_62 = arith.constant 0 : index
    %c2816 = arith.constant 2816 : index
    %149 = vector.load %arg3[%c0_62, %c2816] : memref<1x5888xf32, #tpu.memory_space<vmem>>, vector<1x512xf32>
    %150 = vector.broadcast %149 : vector<1x512xf32> to vector<8x512xf32>
    %151 = arith.addf %148, %150 : vector<8x512xf32>
    %152 = arith.negf %151 : vector<8x512xf32>
    %153 = math.exp %152 : vector<8x512xf32>
    %cst_63 = arith.constant 1.000000e+00 : f32
    %154 = vector.broadcast %cst_63 : f32 to vector<8x512xf32>
    %155 = arith.addf %154, %153 : vector<8x512xf32>
    %156 = arith.divf %154, %155 : vector<8x512xf32>
    %157 = arith.mulf %151, %156 : vector<8x512xf32>
    %c0_64 = arith.constant 0 : index
    %c1024_65 = arith.constant 1024 : index
    %158 = vector.load %arg14[%c0_64, %c1024_65] : memref<512x3072xbf16, #tpu.memory_space<vmem>>, vector<512x896xbf16>
    %159 = arith.truncf %157 : vector<8x512xf32> to vector<8x512xbf16>
    %cst_66 = arith.constant dense<0.000000e+00> : vector<8x896xf32>
    %160 = tpu.matmul %159, %158, %cst_66 {dimension_numbers = #tpu.dot_dimension_numbers<[1], [0], [0], [1], [0, 0, 1, 1], [], []>} : vector<8x512xbf16>, vector<512x896xbf16>, vector<8x896xf32> -> vector<8x896xf32>
    %c0_67 = arith.constant 0 : index
    %c3328 = arith.constant 3328 : index
    %161 = vector.load %arg3[%c0_67, %c3328] : memref<1x5888xf32, #tpu.memory_space<vmem>>, vector<1x896xf32>
    %162 = vector.broadcast %161 : vector<1x896xf32> to vector<8x896xf32>
    %163 = arith.addf %160, %162 : vector<8x896xf32>
    %c0_68 = arith.constant 0 : index
    %c0_69 = arith.constant 0 : index
    %164 = vector.load %arg8[%c0_68, %c0_69] : memref<8x896xf32, #tpu.memory_space<vmem>>, vector<8x896xf32>
    tpu.vector_store %arg8[%c0_68, %c0_69], %163 {strides = array<i32>} : memref<8x896xf32, #tpu.memory_space<vmem>>, vector<8x896xf32>,
    %c0_70 = arith.constant 0 : index
    %c1920 = arith.constant 1920 : index
    %165 = vector.load %arg14[%c0_70, %c1920] : memref<512x3072xbf16, #tpu.memory_space<vmem>>, vector<512x512xbf16>
    %166 = arith.truncf %131 : vector<8x512xf32> to vector<8x512xbf16>
    %cst_71 = arith.constant dense<0.000000e+00> : vector<8x512xf32>
    %167 = tpu.matmul %166, %165, %cst_71 {dimension_numbers = #tpu.dot_dimension_numbers<[1], [0], [0], [1], [0, 0, 1, 1], [], []>} : vector<8x512xbf16>, vector<512x512xbf16>, vector<8x512xf32> -> vector<8x512xf32>
    %c0_72 = arith.constant 0 : index
    %c4736 = arith.constant 4736 : index
    %168 = vector.load %arg3[%c0_72, %c4736] : memref<1x5888xf32, #tpu.memory_space<vmem>>, vector<1x512xf32>
    %169 = vector.broadcast %168 : vector<1x512xf32> to vector<8x512xf32>
    %170 = arith.addf %167, %169 : vector<8x512xf32>
    %171 = arith.negf %170 : vector<8x512xf32>
    %172 = math.exp %171 : vector<8x512xf32>
    %cst_73 = arith.constant 1.000000e+00 : f32
    %173 = vector.broadcast %cst_73 : f32 to vector<8x512xf32>
    %174 = arith.addf %173, %172 : vector<8x512xf32>
    %175 = arith.divf %173, %174 : vector<8x512xf32>
    %176 = arith.mulf %170, %175 : vector<8x512xf32>
    %c0_74 = arith.constant 0 : index
    %c2432 = arith.constant 2432 : index
    %177 = vector.load %arg14[%c0_74, %c2432] : memref<512x3072xbf16, #tpu.memory_space<vmem>>, vector<512x512xbf16>
    %178 = arith.truncf %176 : vector<8x512xf32> to vector<8x512xbf16>
    %cst_75 = arith.constant dense<0.000000e+00> : vector<8x512xf32>
    %179 = tpu.matmul %178, %177, %cst_75 {dimension_numbers = #tpu.dot_dimension_numbers<[1], [0], [0], [1], [0, 0, 1, 1], [], []>} : vector<8x512xbf16>, vector<512x512xbf16>, vector<8x512xf32> -> vector<8x512xf32>
    %c0_76 = arith.constant 0 : index
    %c5248 = arith.constant 5248 : index
    %180 = vector.load %arg3[%c0_76, %c5248] : memref<1x5888xf32, #tpu.memory_space<vmem>>, vector<1x512xf32>
    %181 = vector.broadcast %180 : vector<1x512xf32> to vector<8x512xf32>
    %182 = arith.addf %179, %181 : vector<8x512xf32>
    %183 = arith.negf %182 : vector<8x512xf32>
    %184 = math.exp %183 : vector<8x512xf32>
    %cst_77 = arith.constant 1.000000e+00 : f32
    %185 = vector.broadcast %cst_77 : f32 to vector<8x512xf32>
    %186 = arith.addf %185, %184 : vector<8x512xf32>
    %187 = arith.divf %185, %186 : vector<8x512xf32>
    %188 = arith.mulf %182, %187 : vector<8x512xf32>
    %c0_78 = arith.constant 0 : index
    %c2944 = arith.constant 2944 : index
    %189 = vector.load %arg14[%c0_78, %c2944] : memref<512x3072xbf16, #tpu.memory_space<vmem>>, vector<512x128xbf16>
    %190 = arith.truncf %188 : vector<8x512xf32> to vector<8x512xbf16>
    %cst_79 = arith.constant dense<0.000000e+00> : vector<8x128xf32>
    %191 = tpu.matmul %190, %189, %cst_79 {dimension_numbers = #tpu.dot_dimension_numbers<[1], [0], [0], [1], [0, 0, 1, 1], [], []>} : vector<8x512xbf16>, vector<512x128xbf16>, vector<8x128xf32> -> vector<8x128xf32>
    %c0_80 = arith.constant 0 : index
    %c5760 = arith.constant 5760 : index
    %192 = vector.load %arg3[%c0_80, %c5760] : memref<1x5888xf32, #tpu.memory_space<vmem>>, vector<1x128xf32>
    %193 = vector.broadcast %192 : vector<1x128xf32> to vector<8x128xf32>
    %194 = arith.addf %191, %193 : vector<8x128xf32>
    %c0_81 = arith.constant 0 : index
    %c0_82 = arith.constant 0 : index
    %195 = vector.load %arg9[%c0_81, %c0_82] : memref<8x128xf32, #tpu.memory_space<vmem>>, vector<8x128xf32>
    tpu.vector_store %arg9[%c0_81, %c0_82], %194 {strides = array<i32>} : memref<8x128xf32, #tpu.memory_space<vmem>>, vector<8x128xf32>,
    return
  }
}

</mosaic_0001>

<llo_original>
// kernel: _lambda_.1
$region0: #{_lambda_.1}
  #allocation0 [shape = 'u32[]', space=smem, size = 0x4, offset = 0x4, fixed_abs, tag = 'smem constant byte address 0x4 - core index']
  #allocation1 [shape = 'u32[144,128]{1,0:T(1,128)}', space=vmem, size = 0x12000, scoped, tag = 'internal scratch']
  #allocation2 [shape = 'bf16[784,512]{1,0:T(16,128)(2,1)}', space=vmem, size = 0xc4000, scoped, tag = 'scratch operand']
  #allocation3 [shape = 'bf16[512,1280]{1,0:T(16,128)(2,1)}', space=vmem, size = 0x140000, scoped, tag = 'scratch operand']
  #allocation4 [shape = 'bf16[32,1024]{1,0:T(16,128)(2,1)}', space=vmem, size = 0x10000, scoped, tag = 'scratch operand']
  #allocation5 [shape = 'bf16[512,3072]{1,0:T(16,128)(2,1)}', space=vmem, size = 0x300000, scoped, tag = 'scratch operand']
  #allocation6 [shape = 's32[4]{0}', space=sflag, size = 0x10, scoped, tag = 'scratch operand']
  #allocation13 [shape = 's32[]', space=sflag, size = 0x4, offset = 0, fixed_abs, tag = 'sflag constant byte address 0x0 - dummy sync flag']
  #allocation15 [shape = 's32[]', space=sflag, size = 0x4, offset = 0, fixed_abs, tag = 'sflag constant byte address 0x0 - dummy sync flag']
  #allocation17 [shape = 's32[]', space=sflag, size = 0x4, offset = 0, fixed_abs, tag = 'sflag constant byte address 0x0 - dummy sync flag']
  #allocation19 [shape = 's32[]', space=sflag, size = 0x4, offset = 0, fixed_abs, tag = 'sflag constant byte address 0x0 - dummy sync flag']
  %s0 = inlined_call_operand.vmem [shape: f32[8,784], index: 0, kind: input, shape index: {}]
  %s1 = inlined_call_operand.vmem [shape: f32[8,512], index: 1, kind: input, shape index: {}]
  %s2 = inlined_call_operand.vmem [shape: f32[8,32], index: 2, kind: input, shape index: {}]
  %s3 = inlined_call_operand.hbm [shape: f32[1,5888], index: 3, kind: input, shape index: {}]
  %s4 = inlined_call_operand.hbm [shape: bf16[784,512], index: 4, kind: input, shape index: {}]
  %s5 = inlined_call_operand.hbm [shape: bf16[512,1280], index: 5, kind: input, shape index: {}]
  %s6 = inlined_call_operand.hbm [shape: bf16[32,1024], index: 6, kind: input, shape index: {}]
  %s7 = inlined_call_operand.hbm [shape: bf16[512,3072], index: 7, kind: input, shape index: {}]
  %s8 = inlined_call_operand.hbm [shape: f32[8,896], index: 8, kind: output, shape index: {0}]
  %s9 = inlined_call_operand.hbm [shape: f32[8,128], index: 9, kind: output, shape index: {1}]
  %s10 = inlined_call_operand.vmem [shape: f32[8,64], index: 10, kind: output, shape index: {2}]
  %11 = xla_tuple %s8, %s9, %s10
  %s12 = sld [smem:[#allocation0]]
  $region46: #{_lambda_.1} parent=0
    _
  %s14 = ssub.s32 1, %s12
  %s15 = scalar_select 0, %s14, %s12
  $region1: #{_lambda_.1} parent=0
    #allocation7 [shape = 'u8[23552]{0}', space=vmem, size = 0x5c00, scoped, tag = 'input window, operand 3, single buffered']
    #allocation8 [shape = 's32[1]{0}', space=sflag, size = 0x4, scoped, tag = 'scoped memory for _lambda_.1']
    #allocation9 [shape = 's32[1]{0}', space=sflag, size = 0x4, scoped, tag = 'scoped memory for _lambda_.1']
    #allocation10 [shape = 'u8[28672]{0}', space=vmem, size = 0x7000, scoped, tag = 'output window, operand 0, single buffered']
    #allocation11 [shape = 'u8[4096]{0}', space=vmem, size = 0x1000, scoped, tag = 'output window, operand 1, single buffered']
    #allocation12 [shape = 's32[1]{0}', space=sflag, size = 0x4, scoped, tag = 'scoped memory for _lambda_.1']
    #allocation14 [shape = 'u32[9]{0}', space=smem, size = 0x24, scoped, tag = 'DMA stride descriptor']
    #allocation16 [shape = 'u32[9]{0}', space=smem, size = 0x24, scoped, tag = 'DMA stride descriptor']
    #allocation18 [shape = 'u32[9]{0}', space=smem, size = 0x24, scoped, tag = 'DMA stride descriptor']
    #allocation20 [shape = 'u32[9]{0}', space=smem, size = 0x24, scoped, tag = 'DMA stride descriptor']
    %16 = vsyncpa [#allocation8], 0
    %17 = vsyncpa [#allocation9], 0
    %18 = vsyncpa [#allocation12], 0
    // Predicated region
    $region2: #{_lambda_.1} parent=1 // pred_check
      _
    $region3: #{_lambda_.1} parent=1 // pred_check_branch
      %20 = sbr.rel (0) target = $region5
    $region4: #{_lambda_.1} parent=1 // pred_region
      _
    $region5: #{_lambda_.1} parent=1 // pred_fallthru
      _
    // Predicated region
    $region6: #{_lambda_.1} parent=1 // pred_check
      _
    $region7: #{_lambda_.1} parent=1 // pred_check_branch
      %22 = sbr.rel (0) target = $region9
    $region8: #{_lambda_.1} parent=1 // pred_region
      _
    $region9: #{_lambda_.1} parent=1 // pred_fallthru
      _
    // Predicated region
    $region10: #{_lambda_.1} parent=1 // pred_check
      _
    $region11: #{_lambda_.1} parent=1 // pred_check_branch
      %24 = sbr.rel (0) target = $region13
    $region12: #{_lambda_.1} parent=1 // pred_region
      _
    $region13: #{_lambda_.1} parent=1 // pred_fallthru
      _
    // Predicated region
    $region14: #{_lambda_.1} parent=1 // pred_check
      _
    $region15: #{_lambda_.1} parent=1 // pred_check_branch
      %26 = sbr.rel (0) target = $region17
    $region16: #{_lambda_.1} parent=1 // pred_region
      %s28 = ssub.s32 736, 736
      %29 = vsyncadd [#allocation8], %s28
      %s31 = sshll.u32 [#allocation7], 4
      %s32 = int_to_ptr.vmem [resolvable:$true] %s31
      %34 = dma.hbm_to_vmem [thread:$0]  %s3, 736, %s32, [#allocation8]
    $region17: #{_lambda_.1} parent=1 // pred_fallthru
      _
    // Predicated region
    $region18: #{_lambda_.1} parent=1 // pred_check
      _
    $region19: #{_lambda_.1} parent=1 // pred_check_branch
      %36 = sbr.rel (0) target = $region21
    $region20: #{_lambda_.1} parent=1 // pred_region
      %37 = dma.done [#allocation8], 736
    $region21: #{_lambda_.1} parent=1 // pred_fallthru
      _
    %s40 = sshll.u32 1, 14
    %s41 = sxor.u32 4294967295, %s40
    %s43 = sld [smem:[#allocation0]]
    %s44 = sadd.s32 2, %s43
    %s46 = sshll.u32 7, 26
    %s47 = sxor.u32 4294967295, %s46
    %s48 = sand.u32 0, %s47
    %s49 = sshll.u32 %s44, 26
    %s50 = sor.u32 %s48, %s49
    %s51 = sshll.u32 [#allocation2], 4
    %s52 = int_to_ptr.vmem [resolvable:$true] %s51
    %55 = sst [smem:[#allocation14]] 512
    %s56 = scalar_lea.smem [#allocation14], 1
    %57 = sst [smem:[%s56]] 512
    %s58 = scalar_lea.smem [#allocation14], 2
    %59 = sst [smem:[%s58]] 4
    %s60 = scalar_lea.smem [#allocation14], 3
    %61 = sst [smem:[%s60]] 64
    %s62 = scalar_lea.smem [#allocation14], 4
    %63 = sst [smem:[%s62]] 128
    %s64 = scalar_lea.smem [#allocation14], 5
    %65 = sst [smem:[%s64]] 2
    %s66 = scalar_lea.smem [#allocation14], 6
    %67 = sst [smem:[%s66]] 256
    %s68 = scalar_lea.smem [#allocation14], 7
    %69 = sst [smem:[%s68]] 64
    %s70 = scalar_lea.smem [#allocation14], 8
    %71 = sst [smem:[%s70]] 4
    %73 = dma.general %s4, 25088, %s52, [#allocation6], [#allocation13], [#allocation14], %s50, 0
    %s74 = scalar_lea.sflag [#allocation6], 1
    %s76 = sshll.u32 1, 14
    %s77 = sxor.u32 4294967295, %s76
    %s79 = sadd.s32 2, %s43
    %s81 = sshll.u32 7, 26
    %s82 = sxor.u32 4294967295, %s81
    %s83 = sand.u32 0, %s82
    %s84 = sshll.u32 %s79, 26
    %s85 = sor.u32 %s83, %s84
    %s86 = sshll.u32 [#allocation3], 4
    %s87 = int_to_ptr.vmem [resolvable:$true] %s86
    %90 = sst [smem:[#allocation16]] 1280
    %s91 = scalar_lea.smem [#allocation16], 1
    %92 = sst [smem:[%s91]] 1280
    %s93 = scalar_lea.smem [#allocation16], 2
    %94 = sst [smem:[%s93]] 10
    %s95 = scalar_lea.smem [#allocation16], 3
    %96 = sst [smem:[%s95]] 64
    %s97 = scalar_lea.smem [#allocation16], 4
    %98 = sst [smem:[%s97]] 128
    %s99 = scalar_lea.smem [#allocation16], 5
    %100 = sst [smem:[%s99]] 2
    %s101 = scalar_lea.smem [#allocation16], 6
    %102 = sst [smem:[%s101]] 640
    %s103 = scalar_lea.smem [#allocation16], 7
    %104 = sst [smem:[%s103]] 64
    %s105 = scalar_lea.smem [#allocation16], 8
    %106 = sst [smem:[%s105]] 4
    %108 = dma.general %s5, 40960, %s87, %s74, [#allocation15], [#allocation16], %s85, 0
    %s109 = scalar_lea.sflag [#allocation6], 2
    %s111 = sshll.u32 1, 14
    %s112 = sxor.u32 4294967295, %s111
    %s114 = sadd.s32 2, %s43
    %s116 = sshll.u32 7, 26
    %s117 = sxor.u32 4294967295, %s116
    %s118 = sand.u32 0, %s117
    %s119 = sshll.u32 %s114, 26
    %s120 = sor.u32 %s118, %s119
    %s121 = sshll.u32 [#allocation4], 4
    %s122 = int_to_ptr.vmem [resolvable:$true] %s121
    %125 = sst [smem:[#allocation18]] 1024
    %s126 = scalar_lea.smem [#allocation18], 1
    %127 = sst [smem:[%s126]] 1024
    %s128 = scalar_lea.smem [#allocation18], 2
    %129 = sst [smem:[%s128]] 8
    %s130 = scalar_lea.smem [#allocation18], 3
    %131 = sst [smem:[%s130]] 64
    %s132 = scalar_lea.smem [#allocation18], 4
    %133 = sst [smem:[%s132]] 128
    %s134 = scalar_lea.smem [#allocation18], 5
    %135 = sst [smem:[%s134]] 2
    %s136 = scalar_lea.smem [#allocation18], 6
    %137 = sst [smem:[%s136]] 512
    %s138 = scalar_lea.smem [#allocation18], 7
    %139 = sst [smem:[%s138]] 64
    %s140 = scalar_lea.smem [#allocation18], 8
    %141 = sst [smem:[%s140]] 4
    %143 = dma.general %s6, 2048, %s122, %s109, [#allocation17], [#allocation18], %s120, 0
    %s144 = scalar_lea.sflag [#allocation6], 3
    %s146 = sshll.u32 1, 14
    %s147 = sxor.u32 4294967295, %s146
    %s149 = sadd.s32 2, %s43
    %s151 = sshll.u32 7, 26
    %s152 = sxor.u32 4294967295, %s151
    %s153 = sand.u32 0, %s152
    %s154 = sshll.u32 %s149, 26
    %s155 = sor.u32 %s153, %s154
    %s156 = sshll.u32 [#allocation5], 4
    %s157 = int_to_ptr.vmem [resolvable:$true] %s156
    %160 = sst [smem:[#allocation20]] 3072
    %s161 = scalar_lea.smem [#allocation20], 1
    %162 = sst [smem:[%s161]] 3072
    %s163 = scalar_lea.smem [#allocation20], 2
    %164 = sst [smem:[%s163]] 24
    %s165 = scalar_lea.smem [#allocation20], 3
    %166 = sst [smem:[%s165]] 64
    %s167 = scalar_lea.smem [#allocation20], 4
    %168 = sst [smem:[%s167]] 128
    %s169 = scalar_lea.smem [#allocation20], 5
    %170 = sst [smem:[%s169]] 2
    %s171 = scalar_lea.smem [#allocation20], 6
    %172 = sst [smem:[%s171]] 1536
    %s173 = scalar_lea.smem [#allocation20], 7
    %174 = sst [smem:[%s173]] 64
    %s175 = scalar_lea.smem [#allocation20], 8
    %176 = sst [smem:[%s175]] 4
    %178 = dma.general %s7, 98304, %s157, %s144, [#allocation19], [#allocation20], %s155, 0
    %v179 = vld [vmem:[%s1] sm:$0xff]
    %v180 = vld [vmem:[%s1 + $0x8] sm:$0xff]
    %v181 = vld [vmem:[%s1 + $0x10] sm:$0xff]
    %v182 = vld [vmem:[%s1 + $0x18] sm:$0xff]
    %v183 = vxor.u32 %v179, 2147483648
    %v184 = vxor.u32 %v180, 2147483648
    %v185 = vxor.u32 %v181, 2147483648
    %v186 = vxor.u32 %v182, 2147483648
    %v187 = vmul.f32 %v183, 1.442695
    %v188 = vpow.pop %v187
    %v189 = vmul.f32 %v184, 1.442695
    %v190 = vpow.pop %v189
    %v191 = vmul.f32 %v185, 1.442695
    %v192 = vpow.pop %v191
    %v193 = vmul.f32 %v186, 1.442695
    %v194 = vpow.pop %v193
    %v195 = vadd.f32 %v188, 1.0
    %v196 = vadd.f32 %v190, 1.0
    %v197 = vadd.f32 %v192, 1.0
    %v198 = vadd.f32 %v194, 1.0
    %v199 = vrcp.pop %v195
    %v200 = vmul.f32 1.0, %v199
    %v201 = vrcp.pop %v196
    %v202 = vmul.f32 1.0, %v201
    %v203 = vrcp.pop %v197
    %v204 = vmul.f32 1.0, %v203
    %v205 = vrcp.pop %v198
    %v206 = vmul.f32 1.0, %v205
    %v207 = vmul.f32 %v179, %v200
    %v208 = vmul.f32 %v180, %v202
    %v209 = vmul.f32 %v181, %v204
    %v210 = vmul.f32 %v182, %v206
    %s211 = smul.u32 4, 98
    %s212 = smul.u32 %s211, 4
    %s213 = sshll.u32 %s212, 4
    %214 = dma.done [#allocation6], %s213
    %v215 = vld [vmem:[%s0] sm:$0xff]
    %v216 = vld [vmem:[%s0 + $0x8] sm:$0xff]
    %v217 = vld [vmem:[%s0 + $0x10] sm:$0xff]
    %v218 = vld [vmem:[%s0 + $0x18] sm:$0xff]
    %v219 = vld [vmem:[%s0 + $0x20] sm:$0xff]
    %v220 = vld [vmem:[%s0 + $0x28] sm:$0xff]
    %v221 = vld [vmem:[%s0 + $0x30] sm:$0xff]
    %v222 = vld [vmem:[#allocation2] sm:$0xff]
    %v223 = vld [vmem:[#allocation2 + $0x8] sm:$0xff]
    %v224 = vld [vmem:[#allocation2 + $0x10] sm:$0xff]
    %v225 = vld [vmem:[#allocation2 + $0x18] sm:$0xff]
    %v226 = vld [vmem:[#allocation2 + $0x20] sm:$0xff]
    %v227 = vld [vmem:[#allocation2 + $0x28] sm:$0xff]
    %v228 = vld [vmem:[#allocation2 + $0x30] sm:$0xff]
    %v229 = vld [vmem:[#allocation2 + $0x38] sm:$0xff]
    %v230 = vld [vmem:[#allocation2 + $0x40] sm:$0xff]
    %v231 = vld [vmem:[#allocation2 + $0x48] sm:$0xff]
    %v232 = vld [vmem:[#allocation2 + $0x50] sm:$0xff]
    %v233 = vld [vmem:[#allocation2 + $0x58] sm:$0xff]
    %v234 = vld [vmem:[#allocation2 + $0x60] sm:$0xff]
    %v235 = vld [vmem:[#allocation2 + $0x68] sm:$0xff]
    %v236 = vld [vmem:[#allocation2 + $0x70] sm:$0xff]
    %v237 = vld [vmem:[#allocation2 + $0x78] sm:$0xff]
    %v238 = vld [vmem:[#allocation2 + $0x80] sm:$0xff]
    %v239 = vld [vmem:[#allocation2 + $0x88] sm:$0xff]
    %v240 = vld [vmem:[#allocation2 + $0x90] sm:$0xff]
    %v241 = vld [vmem:[#allocation2 + $0x98] sm:$0xff]
    %v242 = vld [vmem:[#allocation2 + $0xa0] sm:$0xff]
    %v243 = vld [vmem:[#allocation2 + $0xa8] sm:$0xff]
    %v244 = vld [vmem:[#allocation2 + $0xb0] sm:$0xff]
    %v245 = vld [vmem:[#allocation2 + $0xb8] sm:$0xff]
    %v246 = vld [vmem:[#allocation2 + $0xc0] sm:$0xff]
    %v247 = vld [vmem:[#allocation2 + $0xc8] sm:$0xff]
    %v248 = vld [vmem:[#allocation2 + $0xd0] sm:$0xff]
    %v249 = vld [vmem:[#allocation2 + $0xd8] sm:$0xff]
    %v250 = vld [vmem:[#allocation2 + $0xe0] sm:$0xff]
    %v251 = vld [vmem:[#allocation2 + $0xe8] sm:$0xff]
    %v252 = vld [vmem:[#allocation2 + $0xf0] sm:$0xff]
    %v253 = vld [vmem:[#allocation2 + $0xf8] sm:$0xff]
    %v254 = vld [vmem:[#allocation2 + $0x100] sm:$0xff]
    %v255 = vld [vmem:[#allocation2 + $0x108] sm:$0xff]
    %v256 = vld [vmem:[#allocation2 + $0x110] sm:$0xff]
    %v257 = vld [vmem:[#allocation2 + $0x118] sm:$0xff]
    %v258 = vld [vmem:[#allocation2 + $0x120] sm:$0xff]
    %v259 = vld [vmem:[#allocation2 + $0x128] sm:$0xff]
    %v260 = vld [vmem:[#allocation2 + $0x130] sm:$0xff]
    %v261 = vld [vmem:[#allocation2 + $0x138] sm:$0xff]
    %v262 = vld [vmem:[#allocation2 + $0x140] sm:$0xff]
    %v263 = vld [vmem:[#allocation2 + $0x148] sm:$0xff]
    %v264 = vld [vmem:[#allocation2 + $0x150] sm:$0xff]
    %v265 = vld [vmem:[#allocation2 + $0x158] sm:$0xff]
    %v266 = vld [vmem:[#allocation2 + $0x160] sm:$0xff]
    %v267 = vld [vmem:[#allocation2 + $0x168] sm:$0xff]
    %v268 = vld [vmem:[#allocation2 + $0x170] sm:$0xff]
    %v269 = vld [vmem:[#allocation2 + $0x178] sm:$0xff]
    %v270 = vld [vmem:[#allocation2 + $0x180] sm:$0xff]
    %v271 = vld [vmem:[#allocation2 + $0x188] sm:$0xff]
    %v272 = vld [vmem:[#allocation2 + $0x190] sm:$0xff]
    %v273 = vld [vmem:[#allocation2 + $0x198] sm:$0xff]
    %v274 = vld [vmem:[#allocation2 + $0x1a0] sm:$0xff]
    %v275 = vld [vmem:[#allocation2 + $0x1a8] sm:$0xff]
    %v276 = vld [vmem:[#allocation2 + $0x1b0] sm:$0xff]
    %v277 = vld [vmem:[#allocation2 + $0x1b8] sm:$0xff]
    %v278 = vld [vmem:[#allocation2 + $0x1c0] sm:$0xff]
    %v279 = vld [vmem:[#allocation2 + $0x1c8] sm:$0xff]
    %v280 = vld [vmem:[#allocation2 + $0x1d0] sm:$0xff]
    %v281 = vld [vmem:[#allocation2 + $0x1d8] sm:$0xff]
    %v282 = vld [vmem:[#allocation2 + $0x1e0] sm:$0xff]
    %v283 = vld [vmem:[#allocation2 + $0x1e8] sm:$0xff]
    %v284 = vld [vmem:[#allocation2 + $0x1f0] sm:$0xff]
    %v285 = vld [vmem:[#allocation2 + $0x1f8] sm:$0xff]
    %v286 = vld [vmem:[#allocation2 + $0x200] sm:$0xff]
    %v287 = vld [vmem:[#allocation2 + $0x208] sm:$0xff]
    %v288 = vld [vmem:[#allocation2 + $0x210] sm:$0xff]
    %v289 = vld [vmem:[#allocation2 + $0x218] sm:$0xff]
    %v290 = vld [vmem:[#allocation2 + $0x220] sm:$0xff]
    %v291 = vld [vmem:[#allocation2 + $0x228] sm:$0xff]
    %v292 = vld [vmem:[#allocation2 + $0x230] sm:$0xff]
    %v293 = vld [vmem:[#allocation2 + $0x238] sm:$0xff]
    %v294 = vld [vmem:[#allocation2 + $0x240] sm:$0xff]
    %v295 = vld [vmem:[#allocation2 + $0x248] sm:$0xff]
    %v296 = vld [vmem:[#allocation2 + $0x250] sm:$0xff]
    %v297 = vld [vmem:[#allocation2 + $0x258] sm:$0xff]
    %v298 = vld [vmem:[#allocation2 + $0x260] sm:$0xff]
    %v299 = vld [vmem:[#allocation2 + $0x268] sm:$0xff]
    %v300 = vld [vmem:[#allocation2 + $0x270] sm:$0xff]
    %v301 = vld [vmem:[#allocation2 + $0x278] sm:$0xff]
    %v302 = vld [vmem:[#allocation2 + $0x280] sm:$0xff]
    %v303 = vld [vmem:[#allocation2 + $0x288] sm:$0xff]
    %v304 = vld [vmem:[#allocation2 + $0x290] sm:$0xff]
    %v305 = vld [vmem:[#allocation2 + $0x298] sm:$0xff]
    %v306 = vld [vmem:[#allocation2 + $0x2a0] sm:$0xff]
    %v307 = vld [vmem:[#allocation2 + $0x2a8] sm:$0xff]
    %v308 = vld [vmem:[#allocation2 + $0x2b0] sm:$0xff]
    %v309 = vld [vmem:[#allocation2 + $0x2b8] sm:$0xff]
    %v310 = vld [vmem:[#allocation2 + $0x2c0] sm:$0xff]
    %v311 = vld [vmem:[#allocation2 + $0x2c8] sm:$0xff]
    %v312 = vld [vmem:[#allocation2 + $0x2d0] sm:$0xff]
    %v313 = vld [vmem:[#allocation2 + $0x2d8] sm:$0xff]
    %v314 = vld [vmem:[#allocation2 + $0x2e0] sm:$0xff]
    %v315 = vld [vmem:[#allocation2 + $0x2e8] sm:$0xff]
    %v316 = vld [vmem:[#allocation2 + $0x2f0] sm:$0xff]
    %v317 = vld [vmem:[#allocation2 + $0x2f8] sm:$0xff]
    %v318 = vld [vmem:[#allocation2 + $0x300] sm:$0xff]
    %v319 = vld [vmem:[#allocation2 + $0x308] sm:$0xff]
    %v320 = vld [vmem:[#allocation2 + $0x310] sm:$0xff]
    %v321 = vld [vmem:[#allocation2 + $0x318] sm:$0xff]
    %v322 = vld [vmem:[#allocation2 + $0x320] sm:$0xff]
    %v323 = vld [vmem:[#allocation2 + $0x328] sm:$0xff]
    %v324 = vld [vmem:[#allocation2 + $0x330] sm:$0xff]
    %v325 = vld [vmem:[#allocation2 + $0x338] sm:$0xff]
    %v326 = vld [vmem:[#allocation2 + $0x340] sm:$0xff]
    %v327 = vld [vmem:[#allocation2 + $0x348] sm:$0xff]
    %v328 = vld [vmem:[#allocation2 + $0x350] sm:$0xff]
    %v329 = vld [vmem:[#allocation2 + $0x358] sm:$0xff]
    %v330 = vld [vmem:[#allocation2 + $0x360] sm:$0xff]
    %v331 = vld [vmem:[#allocation2 + $0x368] sm:$0xff]
    %v332 = vld [vmem:[#allocation2 + $0x370] sm:$0xff]
    %v333 = vld [vmem:[#allocation2 + $0x378] sm:$0xff]
    %v334 = vld [vmem:[#allocation2 + $0x380] sm:$0xff]
    %v335 = vld [vmem:[#allocation2 + $0x388] sm:$0xff]
    %v336 = vld [vmem:[#allocation2 + $0x390] sm:$0xff]
    %v337 = vld [vmem:[#allocation2 + $0x398] sm:$0xff]
    %v338 = vld [vmem:[#allocation2 + $0x3a0] sm:$0xff]
    %v339 = vld [vmem:[#allocation2 + $0x3a8] sm:$0xff]
    %v340 = vld [vmem:[#allocation2 + $0x3b0] sm:$0xff]
    %v341 = vld [vmem:[#allocation2 + $0x3b8] sm:$0xff]
    %v342 = vld [vmem:[#allocation2 + $0x3c0] sm:$0xff]
    %v343 = vld [vmem:[#allocation2 + $0x3c8] sm:$0xff]
    %v344 = vld [vmem:[#allocation2 + $0x3d0] sm:$0xff]
    %v345 = vld [vmem:[#allocation2 + $0x3d8] sm:$0xff]
    %v346 = vld [vmem:[#allocation2 + $0x3e0] sm:$0xff]
    %v347 = vld [vmem:[#allocation2 + $0x3e8] sm:$0xff]
    %v348 = vld [vmem:[#allocation2 + $0x3f0] sm:$0xff]
    %v349 = vld [vmem:[#allocation2 + $0x3f8] sm:$0xff]
    %v350 = vld [vmem:[#allocation2 + $0x400] sm:$0xff]
    %v351 = vld [vmem:[#allocation2 + $0x408] sm:$0xff]
    %v352 = vld [vmem:[#allocation2 + $0x410] sm:$0xff]
    %v353 = vld [vmem:[#allocation2 + $0x418] sm:$0xff]
    %v354 = vld [vmem:[#allocation2 + $0x420] sm:$0xff]
    %v355 = vld [vmem:[#allocation2 + $0x428] sm:$0xff]
    %v356 = vld [vmem:[#allocation2 + $0x430] sm:$0xff]
    %v357 = vld [vmem:[#allocation2 + $0x438] sm:$0xff]
    %v358 = vld [vmem:[#allocation2 + $0x440] sm:$0xff]
    %v359 = vld [vmem:[#allocation2 + $0x448] sm:$0xff]
    %v360 = vld [vmem:[#allocation2 + $0x450] sm:$0xff]
    %v361 = vld [vmem:[#allocation2 + $0x458] sm:$0xff]
    %v362 = vld [vmem:[#allocation2 + $0x460] sm:$0xff]
    %v363 = vld [vmem:[#allocation2 + $0x468] sm:$0xff]
    %v364 = vld [vmem:[#allocation2 + $0x470] sm:$0xff]
    %v365 = vld [vmem:[#allocation2 + $0x478] sm:$0xff]
    %v366 = vld [vmem:[#allocation2 + $0x480] sm:$0xff]
    %v367 = vld [vmem:[#allocation2 + $0x488] sm:$0xff]
    %v368 = vld [vmem:[#allocation2 + $0x490] sm:$0xff]
    %v369 = vld [vmem:[#allocation2 + $0x498] sm:$0xff]
    %v370 = vld [vmem:[#allocation2 + $0x4a0] sm:$0xff]
    %v371 = vld [vmem:[#allocation2 + $0x4a8] sm:$0xff]
    %v372 = vld [vmem:[#allocation2 + $0x4b0] sm:$0xff]
    %v373 = vld [vmem:[#allocation2 + $0x4b8] sm:$0xff]
    %v374 = vld [vmem:[#allocation2 + $0x4c0] sm:$0xff]
    %v375 = vld [vmem:[#allocation2 + $0x4c8] sm:$0xff]
    %v376 = vld [vmem:[#allocation2 + $0x4d0] sm:$0xff]
    %v377 = vld [vmem:[#allocation2 + $0x4d8] sm:$0xff]
    %v378 = vld [vmem:[#allocation2 + $0x4e0] sm:$0xff]
    %v379 = vld [vmem:[#allocation2 + $0x4e8] sm:$0xff]
    %v380 = vld [vmem:[#allocation2 + $0x4f0] sm:$0xff]
    %v381 = vld [vmem:[#allocation2 + $0x4f8] sm:$0xff]
    %v382 = vld [vmem:[#allocation2 + $0x500] sm:$0xff]
    %v383 = vld [vmem:[#allocation2 + $0x508] sm:$0xff]
    %v384 = vld [vmem:[#allocation2 + $0x510] sm:$0xff]
    %v385 = vld [vmem:[#allocation2 + $0x518] sm:$0xff]
    %v386 = vld [vmem:[#allocation2 + $0x520] sm:$0xff]
    %v387 = vld [vmem:[#allocation2 + $0x528] sm:$0xff]
    %v388 = vld [vmem:[#allocation2 + $0x530] sm:$0xff]
    %v389 = vld [vmem:[#allocation2 + $0x538] sm:$0xff]
    %v390 = vld [vmem:[#allocation2 + $0x540] sm:$0xff]
    %v391 = vld [vmem:[#allocation2 + $0x548] sm:$0xff]
    %v392 = vld [vmem:[#allocation2 + $0x550] sm:$0xff]
    %v393 = vld [vmem:[#allocation2 + $0x558] sm:$0xff]
    %v394 = vld [vmem:[#allocation2 + $0x560] sm:$0xff]
    %v395 = vld [vmem:[#allocation2 + $0x568] sm:$0xff]
    %v396 = vld [vmem:[#allocation2 + $0x570] sm:$0xff]
    %v397 = vld [vmem:[#allocation2 + $0x578] sm:$0xff]
    %v398 = vld [vmem:[#allocation2 + $0x580] sm:$0xff]
    %v399 = vld [vmem:[#allocation2 + $0x588] sm:$0xff]
    %v400 = vld [vmem:[#allocation2 + $0x590] sm:$0xff]
    %v401 = vld [vmem:[#allocation2 + $0x598] sm:$0xff]
    %v402 = vld [vmem:[#allocation2 + $0x5a0] sm:$0xff]
    %v403 = vld [vmem:[#allocation2 + $0x5a8] sm:$0xff]
    %v404 = vld [vmem:[#allocation2 + $0x5b0] sm:$0xff]
    %v405 = vld [vmem:[#allocation2 + $0x5b8] sm:$0xff]
    %v406 = vld [vmem:[#allocation2 + $0x5c0] sm:$0xff]
    %v407 = vld [vmem:[#allocation2 + $0x5c8] sm:$0xff]
    %v408 = vld [vmem:[#allocation2 + $0x5d0] sm:$0xff]
    %v409 = vld [vmem:[#allocation2 + $0x5d8] sm:$0xff]
    %v410 = vld [vmem:[#allocation2 + $0x5e0] sm:$0xff]
    %v411 = vld [vmem:[#allocation2 + $0x5e8] sm:$0xff]
    %v412 = vld [vmem:[#allocation2 + $0x5f0] sm:$0xff]
    %v413 = vld [vmem:[#allocation2 + $0x5f8] sm:$0xff]
    %v414 = vld [vmem:[#allocation2 + $0x600] sm:$0xff]
    %v415 = vld [vmem:[#allocation2 + $0x608] sm:$0xff]
    %v416 = vld [vmem:[#allocation2 + $0x610] sm:$0xff]
    %v417 = vld [vmem:[#allocation2 + $0x618] sm:$0xff]
    %v418 = vpack.c.bf16 %v215, %v215
    %v419 = vpack.c.bf16 %v216, %v216
    %v420 = vpack.c.bf16 %v217, %v217
    %v421 = vpack.c.bf16 %v218, %v218
    %v422 = vpack.c.bf16 %v219, %v219
    %v423 = vpack.c.bf16 %v220, %v220
    %v424 = vpack.c.bf16 %v221, %v221
    %v425 = vld [vmem:[#allocation7] sm:$0xf]
    %v427 = vlaneseq
    %v428 = vshrl.u32 %v427, 7
    %v429 = vsub.s32 0, %v428
    %v430 = vrot.slane %v425, %v429
    %v431 = vlaneseq
    %v432 = vshrl.u32 %v431, 7
    %v433 = vsub.s32 1, %v432
    %v434 = vrot.slane %v425, %v433
    %v435 = vlaneseq
    %v436 = vshrl.u32 %v435, 7
    %v437 = vsub.s32 2, %v436
    %v438 = vrot.slane %v425, %v437
    %v439 = vlaneseq
    %v440 = vshrl.u32 %v439, 7
    %v441 = vsub.s32 3, %v440
    %v442 = vrot.slane %v425, %v441
    %vm447 = vcmask 130048
    %v449 = vsel %vm447, %v424, 0
    %451 = vmatprep.subr.bf16.mxu0 %v223
    %452 = vmatpush1.bf16.msra.mxu0 %v222
    %453 = vmatprep.subr.bf16.mxu0 %v227
    %454 = vmatpush1.bf16.msra.mxu0 %v226
    %455 = vmatprep.subr.bf16.mxu0 %v231
    %456 = vmatpush1.bf16.msra.mxu0 %v230
    %457 = vmatprep.subr.bf16.mxu0 %v235
    %458 = vmatpush1.bf16.msra.mxu0 %v234
    %459 = vmatprep.subr.bf16.mxu0 %v239
    %460 = vmatpush1.bf16.msra.mxu0 %v238
    %461 = vmatprep.subr.bf16.mxu0 %v243
    %462 = vmatpush1.bf16.msra.mxu0 %v242
    %463 = vmatprep.subr.bf16.mxu0 %v247
    %464 = vmatpush1.bf16.msra.mxu0 %v246
    %465 = vmatprep.subr.bf16.mxu0 %v251
    %466 = vmatpush1.bf16.msra.mxu0 %v250
    %467 = vmatprep.subr.bf16.mxu0 %v255
    %468 = vmatpush1.bf16.msra.mxu0 %v254
    %469 = vmatprep.subr.bf16.mxu0 %v259
    %470 = vmatpush1.bf16.msra.mxu0 %v258
    %471 = vmatprep.subr.bf16.mxu0 %v263
    %472 = vmatpush1.bf16.msra.mxu0 %v262
    %473 = vmatprep.subr.bf16.mxu0 %v267
    %474 = vmatpush1.bf16.msra.mxu0 %v266
    %475 = vmatprep.subr.bf16.mxu0 %v271
    %476 = vmatpush1.bf16.msra.mxu0 %v270
    %477 = vmatprep.subr.bf16.mxu0 %v275
    %478 = vmatpush1.bf16.msra.mxu0 %v274
    %479 = vmatprep.subr.bf16.mxu0 %v279
    %480 = vmatpush1.bf16.msra.mxu0 %v278
    %481 = vmatprep.subr.bf16.mxu0 %v283
    %482 = vmatpush1.bf16.msra.mxu0 %v282
    %483 = vmatprep.mubr.bf16.mxu0 %v419
    %484 = vmatmul.mubr.bf16.gmra.mrb[0].mxu0 %v418
    %v485 = vpop.f32.mrb[0].mxu0
    %v486 = vadd.f32 %v430, %v485
    %v487 = vpop.f32.mrb[0].mxu0
    %v488 = vadd.f32 %v434, %v487
    %v489 = vpop.f32.mrb[0].mxu0
    %v490 = vpop.f32.mrb[0].mxu0
    %491 = vdwg.mxu0
    %492 = vmatprep.subr.bf16.mxu0 %v287
    %493 = vmatpush1.bf16.msra.mxu0 %v286
    %494 = vmatprep.subr.bf16.mxu0 %v291
    %495 = vmatpush1.bf16.msra.mxu0 %v290
    %496 = vmatprep.subr.bf16.mxu0 %v295
    %497 = vmatpush1.bf16.msra.mxu0 %v294
    %498 = vmatprep.subr.bf16.mxu0 %v299
    %499 = vmatpush1.bf16.msra.mxu0 %v298
    %500 = vmatprep.subr.bf16.mxu0 %v303
    %501 = vmatpush1.bf16.msra.mxu0 %v302
    %502 = vmatprep.subr.bf16.mxu0 %v307
    %503 = vmatpush1.bf16.msra.mxu0 %v306
    %504 = vmatprep.subr.bf16.mxu0 %v311
    %505 = vmatpush1.bf16.msra.mxu0 %v310
    %506 = vmatprep.subr.bf16.mxu0 %v315
    %507 = vmatpush1.bf16.msra.mxu0 %v314
    %508 = vmatprep.subr.bf16.mxu0 %v319
    %509 = vmatpush1.bf16.msra.mxu0 %v318
    %510 = vmatprep.subr.bf16.mxu0 %v323
    %511 = vmatpush1.bf16.msra.mxu0 %v322
    %512 = vmatprep.subr.bf16.mxu0 %v327
    %513 = vmatpush1.bf16.msra.mxu0 %v326
    %514 = vmatprep.subr.bf16.mxu0 %v331
    %515 = vmatpush1.bf16.msra.mxu0 %v330
    %516 = vmatprep.subr.bf16.mxu0 %v335
    %517 = vmatpush1.bf16.msra.mxu0 %v334
    %518 = vmatprep.subr.bf16.mxu0 %v339
    %519 = vmatpush1.bf16.msra.mxu0 %v338
    %520 = vmatprep.subr.bf16.mxu0 %v343
    %521 = vmatpush1.bf16.msra.mxu0 %v342
    %522 = vmatprep.subr.bf16.mxu0 %v347
    %523 = vmatpush1.bf16.msra.mxu0 %v346
    %524 = vmatprep.mubr.bf16.mxu0 %v421
    %525 = vmatmul.mubr.bf16.gmra.mrb[0].mxu0 %v420
    %v526 = vpop.f32.mrb[0].mxu0
    %v527 = vadd.f32 %v486, %v526
    %v528 = vpop.f32.mrb[0].mxu0
    %v529 = vadd.f32 %v488, %v528
    %v530 = vpop.f32.mrb[0].mxu0
    %v531 = vpop.f32.mrb[0].mxu0
    %532 = vdwg.mxu0
    %533 = vmatprep.subr.bf16.mxu0 %v351
    %534 = vmatpush1.bf16.msra.mxu0 %v350
    %535 = vmatprep.subr.bf16.mxu0 %v355
    %536 = vmatpush1.bf16.msra.mxu0 %v354
    %537 = vmatprep.subr.bf16.mxu0 %v359
    %538 = vmatpush1.bf16.msra.mxu0 %v358
    %539 = vmatprep.subr.bf16.mxu0 %v363
    %540 = vmatpush1.bf16.msra.mxu0 %v362
    %541 = vmatprep.subr.bf16.mxu0 %v367
    %542 = vmatpush1.bf16.msra.mxu0 %v366
    %543 = vmatprep.subr.bf16.mxu0 %v371
    %544 = vmatpush1.bf16.msra.mxu0 %v370
    %545 = vmatprep.subr.bf16.mxu0 %v375
    %546 = vmatpush1.bf16.msra.mxu0 %v374
    %547 = vmatprep.subr.bf16.mxu0 %v379
    %548 = vmatpush1.bf16.msra.mxu0 %v378
    %549 = vmatprep.subr.bf16.mxu0 %v383
    %550 = vmatpush1.bf16.msra.mxu0 %v382
    %551 = vmatprep.subr.bf16.mxu0 %v387
    %552 = vmatpush1.bf16.msra.mxu0 %v386
    %553 = vmatprep.subr.bf16.mxu0 %v391
    %554 = vmatpush1.bf16.msra.mxu0 %v390
    %555 = vmatprep.subr.bf16.mxu0 %v395
    %556 = vmatpush1.bf16.msra.mxu0 %v394
    %557 = vmatprep.subr.bf16.mxu0 %v399
    %558 = vmatpush1.bf16.msra.mxu0 %v398
    %559 = vmatprep.subr.bf16.mxu0 %v403
    %560 = vmatpush1.bf16.msra.mxu0 %v402
    %561 = vmatprep.subr.bf16.mxu0 %v407
    %562 = vmatpush1.bf16.msra.mxu0 %v406
    %563 = vmatprep.subr.bf16.mxu0 %v411
    %564 = vmatpush1.bf16.msra.mxu0 %v410
    %565 = vmatprep.mubr.bf16.mxu0 %v423
    %566 = vmatmul.mubr.bf16.gmra.mrb[0].mxu0 %v422
    %v567 = vpop.f32.mrb[0].mxu0
    %v568 = vadd.f32 %v527, %v567
    %v569 = vpop.f32.mrb[0].mxu0
    %v570 = vadd.f32 %v529, %v569
    %v571 = vpop.f32.mrb[0].mxu0
    %v572 = vpop.f32.mrb[0].mxu0
    %573 = vdwg.mxu0
    %574 = vmatprep.subr.bf16.mxu0 %v415
    %575 = vmatpush1.bf16.msra.mxu0 %v414
    %576 = vmatprep.subr.bf16.mxu0 0
    %577 = vmatpush1.bf16.msra.mxu0 0
    %578 = vmatprep.subr.bf16.mxu0 0
    %579 = vmatpush1.bf16.msra.mxu0 0
    %580 = vmatprep.subr.bf16.mxu0 0
    %581 = vmatpush1.bf16.msra.mxu0 0
    %582 = vmatprep.subr.bf16.mxu0 0
    %583 = vmatpush1.bf16.msra.mxu0 0
    %584 = vmatprep.subr.bf16.mxu0 0
    %585 = vmatpush1.bf16.msra.mxu0 0
    %586 = vmatprep.subr.bf16.mxu0 0
    %587 = vmatpush1.bf16.msra.mxu0 0
    %588 = vmatprep.subr.bf16.mxu0 0
    %589 = vmatpush1.bf16.msra.mxu0 0
    %590 = vmatprep.subr.bf16.mxu0 0
    %591 = vmatpush1.bf16.msra.mxu0 0
    %592 = vmatprep.subr.bf16.mxu0 0
    %593 = vmatpush1.bf16.msra.mxu0 0
    %594 = vmatprep.subr.bf16.mxu0 0
    %595 = vmatpush1.bf16.msra.mxu0 0
    %596 = vmatprep.subr.bf16.mxu0 0
    %597 = vmatpush1.bf16.msra.mxu0 0
    %598 = vmatprep.subr.bf16.mxu0 0
    %599 = vmatpush1.bf16.msra.mxu0 0
    %600 = vmatprep.subr.bf16.mxu0 0
    %601 = vmatpush1.bf16.msra.mxu0 0
    %602 = vmatprep.subr.bf16.mxu0 0
    %603 = vmatpush1.bf16.msra.mxu0 0
    %604 = vmatprep.subr.bf16.mxu0 0
    %605 = vmatpush1.bf16.msra.mxu0 0
    %606 = vmatprep.mubr.bf16.mxu0 0
    %607 = vmatmul.mubr.bf16.gmra.mrb[0].mxu0 %v449
    %v608 = vpop.f32.mrb[0].mxu0
    %v609 = vadd.f32 %v568, %v608
    %v610 = vpop.f32.mrb[0].mxu0
    %v611 = vadd.f32 %v570, %v610
    %v612 = vpop.f32.mrb[0].mxu0
    %v613 = vpop.f32.mrb[0].mxu0
    %614 = vdwg.mxu0
    %615 = vmatprep.subr.bf16.mxu0 %v225
    %616 = vmatpush1.bf16.msra.mxu0 %v224
    %617 = vmatprep.subr.bf16.mxu0 %v229
    %618 = vmatpush1.bf16.msra.mxu0 %v228
    %619 = vmatprep.subr.bf16.mxu0 %v233
    %620 = vmatpush1.bf16.msra.mxu0 %v232
    %621 = vmatprep.subr.bf16.mxu0 %v237
    %622 = vmatpush1.bf16.msra.mxu0 %v236
    %623 = vmatprep.subr.bf16.mxu0 %v241
    %624 = vmatpush1.bf16.msra.mxu0 %v240
    %625 = vmatprep.subr.bf16.mxu0 %v245
    %626 = vmatpush1.bf16.msra.mxu0 %v244
    %627 = vmatprep.subr.bf16.mxu0 %v249
    %628 = vmatpush1.bf16.msra.mxu0 %v248
    %629 = vmatprep.subr.bf16.mxu0 %v253
    %630 = vmatpush1.bf16.msra.mxu0 %v252
    %631 = vmatprep.subr.bf16.mxu0 %v257
    %632 = vmatpush1.bf16.msra.mxu0 %v256
    %633 = vmatprep.subr.bf16.mxu0 %v261
    %634 = vmatpush1.bf16.msra.mxu0 %v260
    %635 = vmatprep.subr.bf16.mxu0 %v265
    %636 = vmatpush1.bf16.msra.mxu0 %v264
    %637 = vmatprep.subr.bf16.mxu0 %v269
    %638 = vmatpush1.bf16.msra.mxu0 %v268
    %639 = vmatprep.subr.bf16.mxu0 %v273
    %640 = vmatpush1.bf16.msra.mxu0 %v272
    %641 = vmatprep.subr.bf16.mxu0 %v277
    %642 = vmatpush1.bf16.msra.mxu0 %v276
    %643 = vmatprep.subr.bf16.mxu0 %v281
    %644 = vmatpush1.bf16.msra.mxu0 %v280
    %645 = vmatprep.subr.bf16.mxu0 %v285
    %646 = vmatpush1.bf16.msra.mxu0 %v284
    %647 = vmatprep.mubr.bf16.mxu0 %v419
    %648 = vmatmul.mubr.bf16.gmra.mrb[0].mxu0 %v418
    %v649 = vpop.f32.mrb[0].mxu0
    %v650 = vadd.f32 %v438, %v649
    %v651 = vpop.f32.mrb[0].mxu0
    %v652 = vadd.f32 %v442, %v651
    %v653 = vpop.f32.mrb[0].mxu0
    %v654 = vpop.f32.mrb[0].mxu0
    %655 = vdwg.mxu0
    %656 = vmatprep.subr.bf16.mxu0 %v289
    %657 = vmatpush1.bf16.msra.mxu0 %v288
    %658 = vmatprep.subr.bf16.mxu0 %v293
    %659 = vmatpush1.bf16.msra.mxu0 %v292
    %660 = vmatprep.subr.bf16.mxu0 %v297
    %661 = vmatpush1.bf16.msra.mxu0 %v296
    %662 = vmatprep.subr.bf16.mxu0 %v301
    %663 = vmatpush1.bf16.msra.mxu0 %v300
    %664 = vmatprep.subr.bf16.mxu0 %v305
    %665 = vmatpush1.bf16.msra.mxu0 %v304
    %666 = vmatprep.subr.bf16.mxu0 %v309
    %667 = vmatpush1.bf16.msra.mxu0 %v308
    %668 = vmatprep.subr.bf16.mxu0 %v313
    %669 = vmatpush1.bf16.msra.mxu0 %v312
    %670 = vmatprep.subr.bf16.mxu0 %v317
    %671 = vmatpush1.bf16.msra.mxu0 %v316
    %672 = vmatprep.subr.bf16.mxu0 %v321
    %673 = vmatpush1.bf16.msra.mxu0 %v320
    %674 = vmatprep.subr.bf16.mxu0 %v325
    %675 = vmatpush1.bf16.msra.mxu0 %v324
    %676 = vmatprep.subr.bf16.mxu0 %v329
    %677 = vmatpush1.bf16.msra.mxu0 %v328
    %678 = vmatprep.subr.bf16.mxu0 %v333
    %679 = vmatpush1.bf16.msra.mxu0 %v332
    %680 = vmatprep.subr.bf16.mxu0 %v337
    %681 = vmatpush1.bf16.msra.mxu0 %v336
    %682 = vmatprep.subr.bf16.mxu0 %v341
    %683 = vmatpush1.bf16.msra.mxu0 %v340
    %684 = vmatprep.subr.bf16.mxu0 %v345
    %685 = vmatpush1.bf16.msra.mxu0 %v344
    %686 = vmatprep.subr.bf16.mxu0 %v349
    %687 = vmatpush1.bf16.msra.mxu0 %v348
    %688 = vmatprep.mubr.bf16.mxu0 %v421
    %689 = vmatmul.mubr.bf16.gmra.mrb[0].mxu0 %v420
    %v690 = vpop.f32.mrb[0].mxu0
    %v691 = vadd.f32 %v650, %v690
    %v692 = vpop.f32.mrb[0].mxu0
    %v693 = vadd.f32 %v652, %v692
    %v694 = vpop.f32.mrb[0].mxu0
    %v695 = vpop.f32.mrb[0].mxu0
    %696 = vdwg.mxu0
    %697 = vmatprep.subr.bf16.mxu0 %v353
    %698 = vmatpush1.bf16.msra.mxu0 %v352
    %699 = vmatprep.subr.bf16.mxu0 %v357
    %700 = vmatpush1.bf16.msra.mxu0 %v356
    %701 = vmatprep.subr.bf16.mxu0 %v361
    %702 = vmatpush1.bf16.msra.mxu0 %v360
    %703 = vmatprep.subr.bf16.mxu0 %v365
    %704 = vmatpush1.bf16.msra.mxu0 %v364
    %705 = vmatprep.subr.bf16.mxu0 %v369
    %706 = vmatpush1.bf16.msra.mxu0 %v368
    %707 = vmatprep.subr.bf16.mxu0 %v373
    %708 = vmatpush1.bf16.msra.mxu0 %v372
    %709 = vmatprep.subr.bf16.mxu0 %v377
    %710 = vmatpush1.bf16.msra.mxu0 %v376
    %711 = vmatprep.subr.bf16.mxu0 %v381
    %712 = vmatpush1.bf16.msra.mxu0 %v380
    %713 = vmatprep.subr.bf16.mxu0 %v385
    %714 = vmatpush1.bf16.msra.mxu0 %v384
    %715 = vmatprep.subr.bf16.mxu0 %v389
    %716 = vmatpush1.bf16.msra.mxu0 %v388
    %717 = vmatprep.subr.bf16.mxu0 %v393
    %718 = vmatpush1.bf16.msra.mxu0 %v392
    %719 = vmatprep.subr.bf16.mxu0 %v397
    %720 = vmatpush1.bf16.msra.mxu0 %v396
    %721 = vmatprep.subr.bf16.mxu0 %v401
    %722 = vmatpush1.bf16.msra.mxu0 %v400
    %723 = vmatprep.subr.bf16.mxu0 %v405
    %724 = vmatpush1.bf16.msra.mxu0 %v404
    %725 = vmatprep.subr.bf16.mxu0 %v409
    %726 = vmatpush1.bf16.msra.mxu0 %v408
    %727 = vmatprep.subr.bf16.mxu0 %v413
    %728 = vmatpush1.bf16.msra.mxu0 %v412
    %729 = vmatprep.mubr.bf16.mxu0 %v423
    %730 = vmatmul.mubr.bf16.gmra.mrb[0].mxu0 %v422
    %v731 = vpop.f32.mrb[0].mxu0
    %v732 = vadd.f32 %v691, %v731
    %v733 = vpop.f32.mrb[0].mxu0
    %v734 = vadd.f32 %v693, %v733
    %v735 = vpop.f32.mrb[0].mxu0
    %v736 = vpop.f32.mrb[0].mxu0
    %737 = vdwg.mxu0
    %738 = vmatprep.subr.bf16.mxu0 %v417
    %739 = vmatpush1.bf16.msra.mxu0 %v416
    %740 = vmatprep.subr.bf16.mxu0 0
    %741 = vmatpush1.bf16.msra.mxu0 0
    %742 = vmatprep.subr.bf16.mxu0 0
    %743 = vmatpush1.bf16.msra.mxu0 0
    %744 = vmatprep.subr.bf16.mxu0 0
    %745 = vmatpush1.bf16.msra.mxu0 0
    %746 = vmatprep.subr.bf16.mxu0 0
    %747 = vmatpush1.bf16.msra.mxu0 0
    %748 = vmatprep.subr.bf16.mxu0 0
    %749 = vmatpush1.bf16.msra.mxu0 0
    %750 = vmatprep.subr.bf16.mxu0 0
    %751 = vmatpush1.bf16.msra.mxu0 0
    %752 = vmatprep.subr.bf16.mxu0 0
    %753 = vmatpush1.bf16.msra.mxu0 0
    %754 = vmatprep.subr.bf16.mxu0 0
    %755 = vmatpush1.bf16.msra.mxu0 0
    %756 = vmatprep.subr.bf16.mxu0 0
    %757 = vmatpush1.bf16.msra.mxu0 0
    %758 = vmatprep.subr.bf16.mxu0 0
    %759 = vmatpush1.bf16.msra.mxu0 0
    %760 = vmatprep.subr.bf16.mxu0 0
    %761 = vmatpush1.bf16.msra.mxu0 0
    %762 = vmatprep.subr.bf16.mxu0 0
    %763 = vmatpush1.bf16.msra.mxu0 0
    %764 = vmatprep.subr.bf16.mxu0 0
    %765 = vmatpush1.bf16.msra.mxu0 0
    %766 = vmatprep.subr.bf16.mxu0 0
    %767 = vmatpush1.bf16.msra.mxu0 0
    %768 = vmatprep.subr.bf16.mxu0 0
    %769 = vmatpush1.bf16.msra.mxu0 0
    %770 = vmatprep.mubr.bf16.mxu0 0
    %771 = vmatmul.mubr.bf16.gmra.mrb[0].mxu0 %v449
    %v772 = vpop.f32.mrb[0].mxu0
    %v773 = vadd.f32 %v732, %v772
    %v774 = vpop.f32.mrb[0].mxu0
    %v775 = vadd.f32 %v734, %v774
    %v776 = vpop.f32.mrb[0].mxu0
    %v777 = vpop.f32.mrb[0].mxu0
    %778 = vdwg.mxu0
    %v779 = vxor.u32 %v609, 2147483648
    %v780 = vxor.u32 %v611, 2147483648
    %v781 = vxor.u32 %v773, 2147483648
    %v782 = vxor.u32 %v775, 2147483648
    %v783 = vmul.f32 %v779, 1.442695
    %v784 = vpow.pop %v783
    %v785 = vmul.f32 %v780, 1.442695
    %v786 = vpow.pop %v785
    %v787 = vmul.f32 %v781, 1.442695
    %v788 = vpow.pop %v787
    %v789 = vmul.f32 %v782, 1.442695
    %v790 = vpow.pop %v789
    %v791 = vadd.f32 %v784, 1.0
    %v792 = vadd.f32 %v786, 1.0
    %v793 = vadd.f32 %v788, 1.0
    %v794 = vadd.f32 %v790, 1.0
    %v795 = vrcp.pop %v791
    %v796 = vmul.f32 1.0, %v795
    %v797 = vrcp.pop %v792
    %v798 = vmul.f32 1.0, %v797
    %v799 = vrcp.pop %v793
    %v800 = vmul.f32 1.0, %v799
    %v801 = vrcp.pop %v794
    %v802 = vmul.f32 1.0, %v801
    %v803 = vmul.f32 %v609, %v796
    %v804 = vmul.f32 %v611, %v798
    %v805 = vmul.f32 %v773, %v800
    %v806 = vmul.f32 %v775, %v802
    %s807 = smul.u32 4, 64
    %s808 = smul.u32 %s807, 10
    %s809 = sshll.u32 %s808, 4
    %810 = dma.done %s74, %s809
    %v811 = vld [vmem:[#allocation3] sm:$0xff]
    %v812 = vld [vmem:[#allocation3 + $0x8] sm:$0xff]
    %v813 = vld [vmem:[#allocation3 + $0x10] sm:$0xff]
    %v814 = vld [vmem:[#allocation3 + $0x18] sm:$0xff]
    %v815 = vld [vmem:[#allocation3 + $0x50] sm:$0xff]
    %v816 = vld [vmem:[#allocation3 + $0x58] sm:$0xff]
    %v817 = vld [vmem:[#allocation3 + $0x60] sm:$0xff]
    %v818 = vld [vmem:[#allocation3 + $0x68] sm:$0xff]
    %v819 = vld [vmem:[#allocation3 + $0xa0] sm:$0xff]
    %v820 = vld [vmem:[#allocation3 + $0xa8] sm:$0xff]
    %v821 = vld [vmem:[#allocation3 + $0xb0] sm:$0xff]
    %v822 = vld [vmem:[#allocation3 + $0xb8] sm:$0xff]
    %v823 = vld [vmem:[#allocation3 + $0xf0] sm:$0xff]
    %v824 = vld [vmem:[#allocation3 + $0xf8] sm:$0xff]
    %v825 = vld [vmem:[#allocation3 + $0x100] sm:$0xff]
    %v826 = vld [vmem:[#allocation3 + $0x108] sm:$0xff]
    %v827 = vld [vmem:[#allocation3 + $0x140] sm:$0xff]
    %v828 = vld [vmem:[#allocation3 + $0x148] sm:$0xff]
    %v829 = vld [vmem:[#allocation3 + $0x150] sm:$0xff]
    %v830 = vld [vmem:[#allocation3 + $0x158] sm:$0xff]
    %v831 = vld [vmem:[#allocation3 + $0x190] sm:$0xff]
    %v832 = vld [vmem:[#allocation3 + $0x198] sm:$0xff]
    %v833 = vld [vmem:[#allocation3 + $0x1a0] sm:$0xff]
    %v834 = vld [vmem:[#allocation3 + $0x1a8] sm:$0xff]
    %v835 = vld [vmem:[#allocation3 + $0x1e0] sm:$0xff]
    %v836 = vld [vmem:[#allocation3 + $0x1e8] sm:$0xff]
    %v837 = vld [vmem:[#allocation3 + $0x1f0] sm:$0xff]
    %v838 = vld [vmem:[#allocation3 + $0x1f8] sm:$0xff]
    %v839 = vld [vmem:[#allocation3 + $0x230] sm:$0xff]
    %v840 = vld [vmem:[#allocation3 + $0x238] sm:$0xff]
    %v841 = vld [vmem:[#allocation3 + $0x240] sm:$0xff]
    %v842 = vld [vmem:[#allocation3 + $0x248] sm:$0xff]
    %v843 = vld [vmem:[#allocation3 + $0x280] sm:$0xff]
    %v844 = vld [vmem:[#allocation3 + $0x288] sm:$0xff]
    %v845 = vld [vmem:[#allocation3 + $0x290] sm:$0xff]
    %v846 = vld [vmem:[#allocation3 + $0x298] sm:$0xff]
    %v847 = vld [vmem:[#allocation3 + $0x2d0] sm:$0xff]
    %v848 = vld [vmem:[#allocation3 + $0x2d8] sm:$0xff]
    %v849 = vld [vmem:[#allocation3 + $0x2e0] sm:$0xff]
    %v850 = vld [vmem:[#allocation3 + $0x2e8] sm:$0xff]
    %v851 = vld [vmem:[#allocation3 + $0x320] sm:$0xff]
    %v852 = vld [vmem:[#allocation3 + $0x328] sm:$0xff]
    %v853 = vld [vmem:[#allocation3 + $0x330] sm:$0xff]
    %v854 = vld [vmem:[#allocation3 + $0x338] sm:$0xff]
    %v855 = vld [vmem:[#allocation3 + $0x370] sm:$0xff]
    %v856 = vld [vmem:[#allocation3 + $0x378] sm:$0xff]
    %v857 = vld [vmem:[#allocation3 + $0x380] sm:$0xff]
    %v858 = vld [vmem:[#allocation3 + $0x388] sm:$0xff]
    %v859 = vld [vmem:[#allocation3 + $0x3c0] sm:$0xff]
    %v860 = vld [vmem:[#allocation3 + $0x3c8] sm:$0xff]
    %v861 = vld [vmem:[#allocation3 + $0x3d0] sm:$0xff]
    %v862 = vld [vmem:[#allocation3 + $0x3d8] sm:$0xff]
    %v863 = vld [vmem:[#allocation3 + $0x410] sm:$0xff]
    %v864 = vld [vmem:[#allocation3 + $0x418] sm:$0xff]
    %v865 = vld [vmem:[#allocation3 + $0x420] sm:$0xff]
    %v866 = vld [vmem:[#allocation3 + $0x428] sm:$0xff]
    %v867 = vld [vmem:[#allocation3 + $0x460] sm:$0xff]
    %v868 = vld [vmem:[#allocation3 + $0x468] sm:$0xff]
    %v869 = vld [vmem:[#allocation3 + $0x470] sm:$0xff]
    %v870 = vld [vmem:[#allocation3 + $0x478] sm:$0xff]
    %v871 = vld [vmem:[#allocation3 + $0x4b0] sm:$0xff]
    %v872 = vld [vmem:[#allocation3 + $0x4b8] sm:$0xff]
    %v873 = vld [vmem:[#allocation3 + $0x4c0] sm:$0xff]
    %v874 = vld [vmem:[#allocation3 + $0x4c8] sm:$0xff]
    %v875 = vld [vmem:[#allocation3 + $0x500] sm:$0xff]
    %v876 = vld [vmem:[#allocation3 + $0x508] sm:$0xff]
    %v877 = vld [vmem:[#allocation3 + $0x510] sm:$0xff]
    %v878 = vld [vmem:[#allocation3 + $0x518] sm:$0xff]
    %v879 = vld [vmem:[#allocation3 + $0x550] sm:$0xff]
    %v880 = vld [vmem:[#allocation3 + $0x558] sm:$0xff]
    %v881 = vld [vmem:[#allocation3 + $0x560] sm:$0xff]
    %v882 = vld [vmem:[#allocation3 + $0x568] sm:$0xff]
    %v883 = vld [vmem:[#allocation3 + $0x5a0] sm:$0xff]
    %v884 = vld [vmem:[#allocation3 + $0x5a8] sm:$0xff]
    %v885 = vld [vmem:[#allocation3 + $0x5b0] sm:$0xff]
    %v886 = vld [vmem:[#allocation3 + $0x5b8] sm:$0xff]
    %v887 = vld [vmem:[#allocation3 + $0x5f0] sm:$0xff]
    %v888 = vld [vmem:[#allocation3 + $0x5f8] sm:$0xff]
    %v889 = vld [vmem:[#allocation3 + $0x600] sm:$0xff]
    %v890 = vld [vmem:[#allocation3 + $0x608] sm:$0xff]
    %v891 = vld [vmem:[#allocation3 + $0x640] sm:$0xff]
    %v892 = vld [vmem:[#allocation3 + $0x648] sm:$0xff]
    %v893 = vld [vmem:[#allocation3 + $0x650] sm:$0xff]
    %v894 = vld [vmem:[#allocation3 + $0x658] sm:$0xff]
    %v895 = vld [vmem:[#allocation3 + $0x690] sm:$0xff]
    %v896 = vld [vmem:[#allocation3 + $0x698] sm:$0xff]
    %v897 = vld [vmem:[#allocation3 + $0x6a0] sm:$0xff]
    %v898 = vld [vmem:[#allocation3 + $0x6a8] sm:$0xff]
    %v899 = vld [vmem:[#allocation3 + $0x6e0] sm:$0xff]
    %v900 = vld [vmem:[#allocation3 + $0x6e8] sm:$0xff]
    %v901 = vld [vmem:[#allocation3 + $0x6f0] sm:$0xff]
    %v902 = vld [vmem:[#allocation3 + $0x6f8] sm:$0xff]
    %v903 = vld [vmem:[#allocation3 + $0x730] sm:$0xff]
    %v904 = vld [vmem:[#allocation3 + $0x738] sm:$0xff]
    %v905 = vld [vmem:[#allocation3 + $0x740] sm:$0xff]
    %v906 = vld [vmem:[#allocation3 + $0x748] sm:$0xff]
    %v907 = vld [vmem:[#allocation3 + $0x780] sm:$0xff]
    %v908 = vld [vmem:[#allocation3 + $0x788] sm:$0xff]
    %v909 = vld [vmem:[#allocation3 + $0x790] sm:$0xff]
    %v910 = vld [vmem:[#allocation3 + $0x798] sm:$0xff]
    %v911 = vld [vmem:[#allocation3 + $0x7d0] sm:$0xff]
    %v912 = vld [vmem:[#allocation3 + $0x7d8] sm:$0xff]
    %v913 = vld [vmem:[#allocation3 + $0x7e0] sm:$0xff]
    %v914 = vld [vmem:[#allocation3 + $0x7e8] sm:$0xff]
    %v915 = vld [vmem:[#allocation3 + $0x820] sm:$0xff]
    %v916 = vld [vmem:[#allocation3 + $0x828] sm:$0xff]
    %v917 = vld [vmem:[#allocation3 + $0x830] sm:$0xff]
    %v918 = vld [vmem:[#allocation3 + $0x838] sm:$0xff]
    %v919 = vld [vmem:[#allocation3 + $0x870] sm:$0xff]
    %v920 = vld [vmem:[#allocation3 + $0x878] sm:$0xff]
    %v921 = vld [vmem:[#allocation3 + $0x880] sm:$0xff]
    %v922 = vld [vmem:[#allocation3 + $0x888] sm:$0xff]
    %v923 = vld [vmem:[#allocation3 + $0x8c0] sm:$0xff]
    %v924 = vld [vmem:[#allocation3 + $0x8c8] sm:$0xff]
    %v925 = vld [vmem:[#allocation3 + $0x8d0] sm:$0xff]
    %v926 = vld [vmem:[#allocation3 + $0x8d8] sm:$0xff]
    %v927 = vld [vmem:[#allocation3 + $0x910] sm:$0xff]
    %v928 = vld [vmem:[#allocation3 + $0x918] sm:$0xff]
    %v929 = vld [vmem:[#allocation3 + $0x920] sm:$0xff]
    %v930 = vld [vmem:[#allocation3 + $0x928] sm:$0xff]
    %v931 = vld [vmem:[#allocation3 + $0x960] sm:$0xff]
    %v932 = vld [vmem:[#allocation3 + $0x968] sm:$0xff]
    %v933 = vld [vmem:[#allocation3 + $0x970] sm:$0xff]
    %v934 = vld [vmem:[#allocation3 + $0x978] sm:$0xff]
    %v935 = vld [vmem:[#allocation3 + $0x9b0] sm:$0xff]
    %v936 = vld [vmem:[#allocation3 + $0x9b8] sm:$0xff]
    %v937 = vld [vmem:[#allocation3 + $0x9c0] sm:$0xff]
    %v938 = vld [vmem:[#allocation3 + $0x9c8] sm:$0xff]
    %v939 = vpack.c.bf16 %v803, %v803
    %v940 = vpack.c.bf16 %v804, %v804
    %v941 = vpack.c.bf16 %v805, %v805
    %v942 = vpack.c.bf16 %v806, %v806
    %v943 = vld [vmem:[#allocation7 + $0x4] sm:$0xf]
    %v945 = vlaneseq
    %v946 = vshrl.u32 %v945, 7
    %v947 = vsub.s32 0, %v946
    %v948 = vrot.slane %v943, %v947
    %v949 = vlaneseq
    %v950 = vshrl.u32 %v949, 7
    %v951 = vsub.s32 1, %v950
    %v952 = vrot.slane %v943, %v951
    %v953 = vlaneseq
    %v954 = vshrl.u32 %v953, 7
    %v955 = vsub.s32 2, %v954
    %v956 = vrot.slane %v943, %v955
    %v957 = vlaneseq
    %v958 = vshrl.u32 %v957, 7
    %v959 = vsub.s32 3, %v958
    %v960 = vrot.slane %v943, %v959
    %965 = vmatprep.subr.bf16.mxu0 %v812
    %966 = vmatpush1.bf16.msra.mxu0 %v811
    %967 = vmatprep.subr.bf16.mxu0 %v816
    %968 = vmatpush1.bf16.msra.mxu0 %v815
    %969 = vmatprep.subr.bf16.mxu0 %v820
    %970 = vmatpush1.bf16.msra.mxu0 %v819
    %971 = vmatprep.subr.bf16.mxu0 %v824
    %972 = vmatpush1.bf16.msra.mxu0 %v823
    %973 = vmatprep.subr.bf16.mxu0 %v828
    %974 = vmatpush1.bf16.msra.mxu0 %v827
    %975 = vmatprep.subr.bf16.mxu0 %v832
    %976 = vmatpush1.bf16.msra.mxu0 %v831
    %977 = vmatprep.subr.bf16.mxu0 %v836
    %978 = vmatpush1.bf16.msra.mxu0 %v835
    %979 = vmatprep.subr.bf16.mxu0 %v840
    %980 = vmatpush1.bf16.msra.mxu0 %v839
    %981 = vmatprep.subr.bf16.mxu0 %v844
    %982 = vmatpush1.bf16.msra.mxu0 %v843
    %983 = vmatprep.subr.bf16.mxu0 %v848
    %984 = vmatpush1.bf16.msra.mxu0 %v847
    %985 = vmatprep.subr.bf16.mxu0 %v852
    %986 = vmatpush1.bf16.msra.mxu0 %v851
    %987 = vmatprep.subr.bf16.mxu0 %v856
    %988 = vmatpush1.bf16.msra.mxu0 %v855
    %989 = vmatprep.subr.bf16.mxu0 %v860
    %990 = vmatpush1.bf16.msra.mxu0 %v859
    %991 = vmatprep.subr.bf16.mxu0 %v864
    %992 = vmatpush1.bf16.msra.mxu0 %v863
    %993 = vmatprep.subr.bf16.mxu0 %v868
    %994 = vmatpush1.bf16.msra.mxu0 %v867
    %995 = vmatprep.subr.bf16.mxu0 %v872
    %996 = vmatpush1.bf16.msra.mxu0 %v871
    %997 = vmatprep.mubr.bf16.mxu0 %v940
    %998 = vmatmul.mubr.bf16.gmra.mrb[0].mxu0 %v939
    %v999 = vpop.f32.mrb[0].mxu0
    %v1000 = vadd.f32 %v948, %v999
    %v1001 = vpop.f32.mrb[0].mxu0
    %v1002 = vadd.f32 %v952, %v1001
    %v1003 = vpop.f32.mrb[0].mxu0
    %v1004 = vpop.f32.mrb[0].mxu0
    %1005 = vdwg.mxu0
    %1006 = vmatprep.subr.bf16.mxu0 %v876
    %1007 = vmatpush1.bf16.msra.mxu0 %v875
    %1008 = vmatprep.subr.bf16.mxu0 %v880
    %1009 = vmatpush1.bf16.msra.mxu0 %v879
    %1010 = vmatprep.subr.bf16.mxu0 %v884
    %1011 = vmatpush1.bf16.msra.mxu0 %v883
    %1012 = vmatprep.subr.bf16.mxu0 %v888
    %1013 = vmatpush1.bf16.msra.mxu0 %v887
    %1014 = vmatprep.subr.bf16.mxu0 %v892
    %1015 = vmatpush1.bf16.msra.mxu0 %v891
    %1016 = vmatprep.subr.bf16.mxu0 %v896
    %1017 = vmatpush1.bf16.msra.mxu0 %v895
    %1018 = vmatprep.subr.bf16.mxu0 %v900
    %1019 = vmatpush1.bf16.msra.mxu0 %v899
    %1020 = vmatprep.subr.bf16.mxu0 %v904
    %1021 = vmatpush1.bf16.msra.mxu0 %v903
    %1022 = vmatprep.subr.bf16.mxu0 %v908
    %1023 = vmatpush1.bf16.msra.mxu0 %v907
    %1024 = vmatprep.subr.bf16.mxu0 %v912
    %1025 = vmatpush1.bf16.msra.mxu0 %v911
    %1026 = vmatprep.subr.bf16.mxu0 %v916
    %1027 = vmatpush1.bf16.msra.mxu0 %v915
    %1028 = vmatprep.subr.bf16.mxu0 %v920
    %1029 = vmatpush1.bf16.msra.mxu0 %v919
    %1030 = vmatprep.subr.bf16.mxu0 %v924
    %1031 = vmatpush1.bf16.msra.mxu0 %v923
    %1032 = vmatprep.subr.bf16.mxu0 %v928
    %1033 = vmatpush1.bf16.msra.mxu0 %v927
    %1034 = vmatprep.subr.bf16.mxu0 %v932
    %1035 = vmatpush1.bf16.msra.mxu0 %v931
    %1036 = vmatprep.subr.bf16.mxu0 %v936
    %1037 = vmatpush1.bf16.msra.mxu0 %v935
    %1038 = vmatprep.mubr.bf16.mxu0 %v942
    %1039 = vmatmul.mubr.bf16.gmra.mrb[0].mxu0 %v941
    %v1040 = vpop.f32.mrb[0].mxu0
    %v1041 = vadd.f32 %v1000, %v1040
    %v1042 = vpop.f32.mrb[0].mxu0
    %v1043 = vadd.f32 %v1002, %v1042
    %v1044 = vpop.f32.mrb[0].mxu0
    %v1045 = vpop.f32.mrb[0].mxu0
    %1046 = vdwg.mxu0
    %1047 = vmatprep.subr.bf16.mxu0 %v814
    %1048 = vmatpush1.bf16.msra.mxu0 %v813
    %1049 = vmatprep.subr.bf16.mxu0 %v818
    %1050 = vmatpush1.bf16.msra.mxu0 %v817
    %1051 = vmatprep.subr.bf16.mxu0 %v822
    %1052 = vmatpush1.bf16.msra.mxu0 %v821
    %1053 = vmatprep.subr.bf16.mxu0 %v826
    %1054 = vmatpush1.bf16.msra.mxu0 %v825
    %1055 = vmatprep.subr.bf16.mxu0 %v830
    %1056 = vmatpush1.bf16.msra.mxu0 %v829
    %1057 = vmatprep.subr.bf16.mxu0 %v834
    %1058 = vmatpush1.bf16.msra.mxu0 %v833
    %1059 = vmatprep.subr.bf16.mxu0 %v838
    %1060 = vmatpush1.bf16.msra.mxu0 %v837
    %1061 = vmatprep.subr.bf16.mxu0 %v842
    %1062 = vmatpush1.bf16.msra.mxu0 %v841
    %1063 = vmatprep.subr.bf16.mxu0 %v846
    %1064 = vmatpush1.bf16.msra.mxu0 %v845
    %1065 = vmatprep.subr.bf16.mxu0 %v850
    %1066 = vmatpush1.bf16.msra.mxu0 %v849
    %1067 = vmatprep.subr.bf16.mxu0 %v854
    %1068 = vmatpush1.bf16.msra.mxu0 %v853
    %1069 = vmatprep.subr.bf16.mxu0 %v858
    %1070 = vmatpush1.bf16.msra.mxu0 %v857
    %1071 = vmatprep.subr.bf16.mxu0 %v862
    %1072 = vmatpush1.bf16.msra.mxu0 %v861
    %1073 = vmatprep.subr.bf16.mxu0 %v866
    %1074 = vmatpush1.bf16.msra.mxu0 %v865
    %1075 = vmatprep.subr.bf16.mxu0 %v870
    %1076 = vmatpush1.bf16.msra.mxu0 %v869
    %1077 = vmatprep.subr.bf16.mxu0 %v874
    %1078 = vmatpush1.bf16.msra.mxu0 %v873
    %1079 = vmatprep.mubr.bf16.mxu0 %v940
    %1080 = vmatmul.mubr.bf16.gmra.mrb[0].mxu0 %v939
    %v1081 = vpop.f32.mrb[0].mxu0
    %v1082 = vadd.f32 %v956, %v1081
    %v1083 = vpop.f32.mrb[0].mxu0
    %v1084 = vadd.f32 %v960, %v1083
    %v1085 = vpop.f32.mrb[0].mxu0
    %v1086 = vpop.f32.mrb[0].mxu0
    %1087 = vdwg.mxu0
    %1088 = vmatprep.subr.bf16.mxu0 %v878
    %1089 = vmatpush1.bf16.msra.mxu0 %v877
    %1090 = vmatprep.subr.bf16.mxu0 %v882
    %1091 = vmatpush1.bf16.msra.mxu0 %v881
    %1092 = vmatprep.subr.bf16.mxu0 %v886
    %1093 = vmatpush1.bf16.msra.mxu0 %v885
    %1094 = vmatprep.subr.bf16.mxu0 %v890
    %1095 = vmatpush1.bf16.msra.mxu0 %v889
    %1096 = vmatprep.subr.bf16.mxu0 %v894
    %1097 = vmatpush1.bf16.msra.mxu0 %v893
    %1098 = vmatprep.subr.bf16.mxu0 %v898
    %1099 = vmatpush1.bf16.msra.mxu0 %v897
    %1100 = vmatprep.subr.bf16.mxu0 %v902
    %1101 = vmatpush1.bf16.msra.mxu0 %v901
    %1102 = vmatprep.subr.bf16.mxu0 %v906
    %1103 = vmatpush1.bf16.msra.mxu0 %v905
    %1104 = vmatprep.subr.bf16.mxu0 %v910
    %1105 = vmatpush1.bf16.msra.mxu0 %v909
    %1106 = vmatprep.subr.bf16.mxu0 %v914
    %1107 = vmatpush1.bf16.msra.mxu0 %v913
    %1108 = vmatprep.subr.bf16.mxu0 %v918
    %1109 = vmatpush1.bf16.msra.mxu0 %v917
    %1110 = vmatprep.subr.bf16.mxu0 %v922
    %1111 = vmatpush1.bf16.msra.mxu0 %v921
    %1112 = vmatprep.subr.bf16.mxu0 %v926
    %1113 = vmatpush1.bf16.msra.mxu0 %v925
    %1114 = vmatprep.subr.bf16.mxu0 %v930
    %1115 = vmatpush1.bf16.msra.mxu0 %v929
    %1116 = vmatprep.subr.bf16.mxu0 %v934
    %1117 = vmatpush1.bf16.msra.mxu0 %v933
    %1118 = vmatprep.subr.bf16.mxu0 %v938
    %1119 = vmatpush1.bf16.msra.mxu0 %v937
    %1120 = vmatprep.mubr.bf16.mxu0 %v942
    %1121 = vmatmul.mubr.bf16.gmra.mrb[0].mxu0 %v941
    %v1122 = vpop.f32.mrb[0].mxu0
    %v1123 = vadd.f32 %v1082, %v1122
    %v1124 = vpop.f32.mrb[0].mxu0
    %v1125 = vadd.f32 %v1084, %v1124
    %v1126 = vpop.f32.mrb[0].mxu0
    %v1127 = vpop.f32.mrb[0].mxu0
    %1128 = vdwg.mxu0
    %v1129 = vxor.u32 %v1041, 2147483648
    %v1130 = vxor.u32 %v1043, 2147483648
    %v1131 = vxor.u32 %v1123, 2147483648
    %v1132 = vxor.u32 %v1125, 2147483648
    %v1133 = vmul.f32 %v1129, 1.442695
    %v1134 = vpow.pop %v1133
    %v1135 = vmul.f32 %v1130, 1.442695
    %v1136 = vpow.pop %v1135
    %v1137 = vmul.f32 %v1131, 1.442695
    %v1138 = vpow.pop %v1137
    %v1139 = vmul.f32 %v1132, 1.442695
    %v1140 = vpow.pop %v1139
    %v1141 = vadd.f32 %v1134, 1.0
    %v1142 = vadd.f32 %v1136, 1.0
    %v1143 = vadd.f32 %v1138, 1.0
    %v1144 = vadd.f32 %v1140, 1.0
    %v1145 = vrcp.pop %v1141
    %v1146 = vmul.f32 1.0, %v1145
    %v1147 = vrcp.pop %v1142
    %v1148 = vmul.f32 1.0, %v1147
    %v1149 = vrcp.pop %v1143
    %v1150 = vmul.f32 1.0, %v1149
    %v1151 = vrcp.pop %v1144
    %v1152 = vmul.f32 1.0, %v1151
    %v1153 = vmul.f32 %v1041, %v1146
    %v1154 = vmul.f32 %v1043, %v1148
    %v1155 = vmul.f32 %v1123, %v1150
    %v1156 = vmul.f32 %v1125, %v1152
    %v1157 = vld [vmem:[#allocation3 + $0x20] sm:$0xff]
    %v1158 = vld [vmem:[#allocation3 + $0x70] sm:$0xff]
    %v1159 = vld [vmem:[#allocation3 + $0xc0] sm:$0xff]
    %v1160 = vld [vmem:[#allocation3 + $0x110] sm:$0xff]
    %v1161 = vld [vmem:[#allocation3 + $0x160] sm:$0xff]
    %v1162 = vld [vmem:[#allocation3 + $0x1b0] sm:$0xff]
    %v1163 = vld [vmem:[#allocation3 + $0x200] sm:$0xff]
    %v1164 = vld [vmem:[#allocation3 + $0x250] sm:$0xff]
    %v1165 = vld [vmem:[#allocation3 + $0x2a0] sm:$0xff]
    %v1166 = vld [vmem:[#allocation3 + $0x2f0] sm:$0xff]
    %v1167 = vld [vmem:[#allocation3 + $0x340] sm:$0xff]
    %v1168 = vld [vmem:[#allocation3 + $0x390] sm:$0xff]
    %v1169 = vld [vmem:[#allocation3 + $0x3e0] sm:$0xff]
    %v1170 = vld [vmem:[#allocation3 + $0x430] sm:$0xff]
    %v1171 = vld [vmem:[#allocation3 + $0x480] sm:$0xff]
    %v1172 = vld [vmem:[#allocation3 + $0x4d0] sm:$0xff]
    %v1173 = vld [vmem:[#allocation3 + $0x520] sm:$0xff]
    %v1174 = vld [vmem:[#allocation3 + $0x570] sm:$0xff]
    %v1175 = vld [vmem:[#allocation3 + $0x5c0] sm:$0xff]
    %v1176 = vld [vmem:[#allocation3 + $0x610] sm:$0xff]
    %v1177 = vld [vmem:[#allocation3 + $0x660] sm:$0xff]
    %v1178 = vld [vmem:[#allocation3 + $0x6b0] sm:$0xff]
    %v1179 = vld [vmem:[#allocation3 + $0x700] sm:$0xff]
    %v1180 = vld [vmem:[#allocation3 + $0x750] sm:$0xff]
    %v1181 = vld [vmem:[#allocation3 + $0x7a0] sm:$0xff]
    %v1182 = vld [vmem:[#allocation3 + $0x7f0] sm:$0xff]
    %v1183 = vld [vmem:[#allocation3 + $0x840] sm:$0xff]
    %v1184 = vld [vmem:[#allocation3 + $0x890] sm:$0xff]
    %v1185 = vld [vmem:[#allocation3 + $0x8e0] sm:$0xff]
    %v1186 = vld [vmem:[#allocation3 + $0x930] sm:$0xff]
    %v1187 = vld [vmem:[#allocation3 + $0x980] sm:$0xff]
    %v1188 = vld [vmem:[#allocation3 + $0x9d0] sm:$0xff]
    %v1189 = vpack.c.bf16 %v1153, %v1153
    %v1190 = vpack.c.bf16 %v1154, %v1154
    %v1191 = vpack.c.bf16 %v1155, %v1155
    %v1192 = vpack.c.bf16 %v1156, %v1156
    %v1193 = vld [vmem:[#allocation7 + $0x8] sm:$0x1]
    %v1195 = vlaneseq
    %v1196 = vshrl.u32 %v1195, 7
    %v1197 = vsub.s32 0, %v1196
    %v1198 = vrot.slane %v1193, %v1197
    %1200 = vmatprep.subr.bf16.mxu0 0
    %1201 = vmatpush1.bf16.msra.mxu0 %v1157
    %1202 = vmatprep.subr.bf16.mxu0 0
    %1203 = vmatpush1.bf16.msra.mxu0 %v1158
    %1204 = vmatprep.subr.bf16.mxu0 0
    %1205 = vmatpush1.bf16.msra.mxu0 %v1159
    %1206 = vmatprep.subr.bf16.mxu0 0
    %1207 = vmatpush1.bf16.msra.mxu0 %v1160
    %1208 = vmatprep.subr.bf16.mxu0 0
    %1209 = vmatpush1.bf16.msra.mxu0 %v1161
    %1210 = vmatprep.subr.bf16.mxu0 0
    %1211 = vmatpush1.bf16.msra.mxu0 %v1162
    %1212 = vmatprep.subr.bf16.mxu0 0
    %1213 = vmatpush1.bf16.msra.mxu0 %v1163
    %1214 = vmatprep.subr.bf16.mxu0 0
    %1215 = vmatpush1.bf16.msra.mxu0 %v1164
    %1216 = vmatprep.subr.bf16.mxu0 0
    %1217 = vmatpush1.bf16.msra.mxu0 %v1165
    %1218 = vmatprep.subr.bf16.mxu0 0
    %1219 = vmatpush1.bf16.msra.mxu0 %v1166
    %1220 = vmatprep.subr.bf16.mxu0 0
    %1221 = vmatpush1.bf16.msra.mxu0 %v1167
    %1222 = vmatprep.subr.bf16.mxu0 0
    %1223 = vmatpush1.bf16.msra.mxu0 %v1168
    %1224 = vmatprep.subr.bf16.mxu0 0
    %1225 = vmatpush1.bf16.msra.mxu0 %v1169
    %1226 = vmatprep.subr.bf16.mxu0 0
    %1227 = vmatpush1.bf16.msra.mxu0 %v1170
    %1228 = vmatprep.subr.bf16.mxu0 0
    %1229 = vmatpush1.bf16.msra.mxu0 %v1171
    %1230 = vmatprep.subr.bf16.mxu0 0
    %1231 = vmatpush1.bf16.msra.mxu0 %v1172
    %1232 = vmatprep.mubr.bf16.mxu0 %v1190
    %1233 = vmatmul.mubr.bf16.gmra.mrb[0].mxu0 %v1189
    %v1234 = vpop.f32.mrb[0].mxu0
    %v1235 = vadd.f32 %v1198, %v1234
    %v1236 = vpop.f32.mrb[0].mxu0
    %v1237 = vpop.f32.mrb[0].mxu0
    %v1238 = vpop.f32.mrb[0].mxu0
    %1239 = vdwg.mxu0
    %1240 = vmatprep.subr.bf16.mxu0 0
    %1241 = vmatpush1.bf16.msra.mxu0 %v1173
    %1242 = vmatprep.subr.bf16.mxu0 0
    %1243 = vmatpush1.bf16.msra.mxu0 %v1174
    %1244 = vmatprep.subr.bf16.mxu0 0
    %1245 = vmatpush1.bf16.msra.mxu0 %v1175
    %1246 = vmatprep.subr.bf16.mxu0 0
    %1247 = vmatpush1.bf16.msra.mxu0 %v1176
    %1248 = vmatprep.subr.bf16.mxu0 0
    %1249 = vmatpush1.bf16.msra.mxu0 %v1177
    %1250 = vmatprep.subr.bf16.mxu0 0
    %1251 = vmatpush1.bf16.msra.mxu0 %v1178
    %1252 = vmatprep.subr.bf16.mxu0 0
    %1253 = vmatpush1.bf16.msra.mxu0 %v1179
    %1254 = vmatprep.subr.bf16.mxu0 0
    %1255 = vmatpush1.bf16.msra.mxu0 %v1180
    %1256 = vmatprep.subr.bf16.mxu0 0
    %1257 = vmatpush1.bf16.msra.mxu0 %v1181
    %1258 = vmatprep.subr.bf16.mxu0 0
    %1259 = vmatpush1.bf16.msra.mxu0 %v1182
    %1260 = vmatprep.subr.bf16.mxu0 0
    %1261 = vmatpush1.bf16.msra.mxu0 %v1183
    %1262 = vmatprep.subr.bf16.mxu0 0
    %1263 = vmatpush1.bf16.msra.mxu0 %v1184
    %1264 = vmatprep.subr.bf16.mxu0 0
    %1265 = vmatpush1.bf16.msra.mxu0 %v1185
    %1266 = vmatprep.subr.bf16.mxu0 0
    %1267 = vmatpush1.bf16.msra.mxu0 %v1186
    %1268 = vmatprep.subr.bf16.mxu0 0
    %1269 = vmatpush1.bf16.msra.mxu0 %v1187
    %1270 = vmatprep.subr.bf16.mxu0 0
    %1271 = vmatpush1.bf16.msra.mxu0 %v1188
    %1272 = vmatprep.mubr.bf16.mxu0 %v1192
    %1273 = vmatmul.mubr.bf16.gmra.mrb[0].mxu0 %v1191
    %v1274 = vpop.f32.mrb[0].mxu0
    %v1275 = vadd.f32 %v1235, %v1274
    %v1276 = vpop.f32.mrb[0].mxu0
    %v1277 = vpop.f32.mrb[0].mxu0
    %v1278 = vpop.f32.mrb[0].mxu0
    %1279 = vdwg.mxu0
    %v1280 = vld [vmem:[#allocation3 + $0x28] sm:$0xff]
    %v1281 = vld [vmem:[#allocation3 + $0x30] sm:$0xff]
    %v1282 = vld [vmem:[#allocation3 + $0x38] sm:$0xff]
    %v1283 = vld [vmem:[#allocation3 + $0x40] sm:$0xff]
    %v1284 = vld [vmem:[#allocation3 + $0x78] sm:$0xff]
    %v1285 = vld [vmem:[#allocation3 + $0x80] sm:$0xff]
    %v1286 = vld [vmem:[#allocation3 + $0x88] sm:$0xff]
    %v1287 = vld [vmem:[#allocation3 + $0x90] sm:$0xff]
    %v1288 = vld [vmem:[#allocation3 + $0xc8] sm:$0xff]
    %v1289 = vld [vmem:[#allocation3 + $0xd0] sm:$0xff]
    %v1290 = vld [vmem:[#allocation3 + $0xd8] sm:$0xff]
    %v1291 = vld [vmem:[#allocation3 + $0xe0] sm:$0xff]
    %v1292 = vld [vmem:[#allocation3 + $0x118] sm:$0xff]
    %v1293 = vld [vmem:[#allocation3 + $0x120] sm:$0xff]
    %v1294 = vld [vmem:[#allocation3 + $0x128] sm:$0xff]
    %v1295 = vld [vmem:[#allocation3 + $0x130] sm:$0xff]
    %v1296 = vld [vmem:[#allocation3 + $0x168] sm:$0xff]
    %v1297 = vld [vmem:[#allocation3 + $0x170] sm:$0xff]
    %v1298 = vld [vmem:[#allocation3 + $0x178] sm:$0xff]
    %v1299 = vld [vmem:[#allocation3 + $0x180] sm:$0xff]
    %v1300 = vld [vmem:[#allocation3 + $0x1b8] sm:$0xff]
    %v1301 = vld [vmem:[#allocation3 + $0x1c0] sm:$0xff]
    %v1302 = vld [vmem:[#allocation3 + $0x1c8] sm:$0xff]
    %v1303 = vld [vmem:[#allocation3 + $0x1d0] sm:$0xff]
    %v1304 = vld [vmem:[#allocation3 + $0x208] sm:$0xff]
    %v1305 = vld [vmem:[#allocation3 + $0x210] sm:$0xff]
    %v1306 = vld [vmem:[#allocation3 + $0x218] sm:$0xff]
    %v1307 = vld [vmem:[#allocation3 + $0x220] sm:$0xff]
    %v1308 = vld [vmem:[#allocation3 + $0x258] sm:$0xff]
    %v1309 = vld [vmem:[#allocation3 + $0x260] sm:$0xff]
    %v1310 = vld [vmem:[#allocation3 + $0x268] sm:$0xff]
    %v1311 = vld [vmem:[#allocation3 + $0x270] sm:$0xff]
    %v1312 = vld [vmem:[#allocation3 + $0x2a8] sm:$0xff]
    %v1313 = vld [vmem:[#allocation3 + $0x2b0] sm:$0xff]
    %v1314 = vld [vmem:[#allocation3 + $0x2b8] sm:$0xff]
    %v1315 = vld [vmem:[#allocation3 + $0x2c0] sm:$0xff]
    %v1316 = vld [vmem:[#allocation3 + $0x2f8] sm:$0xff]
    %v1317 = vld [vmem:[#allocation3 + $0x300] sm:$0xff]
    %v1318 = vld [vmem:[#allocation3 + $0x308] sm:$0xff]
    %v1319 = vld [vmem:[#allocation3 + $0x310] sm:$0xff]
    %v1320 = vld [vmem:[#allocation3 + $0x348] sm:$0xff]
    %v1321 = vld [vmem:[#allocation3 + $0x350] sm:$0xff]
    %v1322 = vld [vmem:[#allocation3 + $0x358] sm:$0xff]
    %v1323 = vld [vmem:[#allocation3 + $0x360] sm:$0xff]
    %v1324 = vld [vmem:[#allocation3 + $0x398] sm:$0xff]
    %v1325 = vld [vmem:[#allocation3 + $0x3a0] sm:$0xff]
    %v1326 = vld [vmem:[#allocation3 + $0x3a8] sm:$0xff]
    %v1327 = vld [vmem:[#allocation3 + $0x3b0] sm:$0xff]
    %v1328 = vld [vmem:[#allocation3 + $0x3e8] sm:$0xff]
    %v1329 = vld [vmem:[#allocation3 + $0x3f0] sm:$0xff]
    %v1330 = vld [vmem:[#allocation3 + $0x3f8] sm:$0xff]
    %v1331 = vld [vmem:[#allocation3 + $0x400] sm:$0xff]
    %v1332 = vld [vmem:[#allocation3 + $0x438] sm:$0xff]
    %v1333 = vld [vmem:[#allocation3 + $0x440] sm:$0xff]
    %v1334 = vld [vmem:[#allocation3 + $0x448] sm:$0xff]
    %v1335 = vld [vmem:[#allocation3 + $0x450] sm:$0xff]
    %v1336 = vld [vmem:[#allocation3 + $0x488] sm:$0xff]
    %v1337 = vld [vmem:[#allocation3 + $0x490] sm:$0xff]
    %v1338 = vld [vmem:[#allocation3 + $0x498] sm:$0xff]
    %v1339 = vld [vmem:[#allocation3 + $0x4a0] sm:$0xff]
    %v1340 = vld [vmem:[#allocation3 + $0x4d8] sm:$0xff]
    %v1341 = vld [vmem:[#allocation3 + $0x4e0] sm:$0xff]
    %v1342 = vld [vmem:[#allocation3 + $0x4e8] sm:$0xff]
    %v1343 = vld [vmem:[#allocation3 + $0x4f0] sm:$0xff]
    %v1344 = vld [vmem:[#allocation3 + $0x528] sm:$0xff]
    %v1345 = vld [vmem:[#allocation3 + $0x530] sm:$0xff]
    %v1346 = vld [vmem:[#allocation3 + $0x538] sm:$0xff]
    %v1347 = vld [vmem:[#allocation3 + $0x540] sm:$0xff]
    %v1348 = vld [vmem:[#allocation3 + $0x578] sm:$0xff]
    %v1349 = vld [vmem:[#allocation3 + $0x580] sm:$0xff]
    %v1350 = vld [vmem:[#allocation3 + $0x588] sm:$0xff]
    %v1351 = vld [vmem:[#allocation3 + $0x590] sm:$0xff]
    %v1352 = vld [vmem:[#allocation3 + $0x5c8] sm:$0xff]
    %v1353 = vld [vmem:[#allocation3 + $0x5d0] sm:$0xff]
    %v1354 = vld [vmem:[#allocation3 + $0x5d8] sm:$0xff]
    %v1355 = vld [vmem:[#allocation3 + $0x5e0] sm:$0xff]
    %v1356 = vld [vmem:[#allocation3 + $0x618] sm:$0xff]
    %v1357 = vld [vmem:[#allocation3 + $0x620] sm:$0xff]
    %v1358 = vld [vmem:[#allocation3 + $0x628] sm:$0xff]
    %v1359 = vld [vmem:[#allocation3 + $0x630] sm:$0xff]
    %v1360 = vld [vmem:[#allocation3 + $0x668] sm:$0xff]
    %v1361 = vld [vmem:[#allocation3 + $0x670] sm:$0xff]
    %v1362 = vld [vmem:[#allocation3 + $0x678] sm:$0xff]
    %v1363 = vld [vmem:[#allocation3 + $0x680] sm:$0xff]
    %v1364 = vld [vmem:[#allocation3 + $0x6b8] sm:$0xff]
    %v1365 = vld [vmem:[#allocation3 + $0x6c0] sm:$0xff]
    %v1366 = vld [vmem:[#allocation3 + $0x6c8] sm:$0xff]
    %v1367 = vld [vmem:[#allocation3 + $0x6d0] sm:$0xff]
    %v1368 = vld [vmem:[#allocation3 + $0x708] sm:$0xff]
    %v1369 = vld [vmem:[#allocation3 + $0x710] sm:$0xff]
    %v1370 = vld [vmem:[#allocation3 + $0x718] sm:$0xff]
    %v1371 = vld [vmem:[#allocation3 + $0x720] sm:$0xff]
    %v1372 = vld [vmem:[#allocation3 + $0x758] sm:$0xff]
    %v1373 = vld [vmem:[#allocation3 + $0x760] sm:$0xff]
    %v1374 = vld [vmem:[#allocation3 + $0x768] sm:$0xff]
    %v1375 = vld [vmem:[#allocation3 + $0x770] sm:$0xff]
    %v1376 = vld [vmem:[#allocation3 + $0x7a8] sm:$0xff]
    %v1377 = vld [vmem:[#allocation3 + $0x7b0] sm:$0xff]
    %v1378 = vld [vmem:[#allocation3 + $0x7b8] sm:$0xff]
    %v1379 = vld [vmem:[#allocation3 + $0x7c0] sm:$0xff]
    %v1380 = vld [vmem:[#allocation3 + $0x7f8] sm:$0xff]
    %v1381 = vld [vmem:[#allocation3 + $0x800] sm:$0xff]
    %v1382 = vld [vmem:[#allocation3 + $0x808] sm:$0xff]
    %v1383 = vld [vmem:[#allocation3 + $0x810] sm:$0xff]
    %v1384 = vld [vmem:[#allocation3 + $0x848] sm:$0xff]
    %v1385 = vld [vmem:[#allocation3 + $0x850] sm:$0xff]
    %v1386 = vld [vmem:[#allocation3 + $0x858] sm:$0xff]
    %v1387 = vld [vmem:[#allocation3 + $0x860] sm:$0xff]
    %v1388 = vld [vmem:[#allocation3 + $0x898] sm:$0xff]
    %v1389 = vld [vmem:[#allocation3 + $0x8a0] sm:$0xff]
    %v1390 = vld [vmem:[#allocation3 + $0x8a8] sm:$0xff]
    %v1391 = vld [vmem:[#allocation3 + $0x8b0] sm:$0xff]
    %v1392 = vld [vmem:[#allocation3 + $0x8e8] sm:$0xff]
    %v1393 = vld [vmem:[#allocation3 + $0x8f0] sm:$0xff]
    %v1394 = vld [vmem:[#allocation3 + $0x8f8] sm:$0xff]
    %v1395 = vld [vmem:[#allocation3 + $0x900] sm:$0xff]
    %v1396 = vld [vmem:[#allocation3 + $0x938] sm:$0xff]
    %v1397 = vld [vmem:[#allocation3 + $0x940] sm:$0xff]
    %v1398 = vld [vmem:[#allocation3 + $0x948] sm:$0xff]
    %v1399 = vld [vmem:[#allocation3 + $0x950] sm:$0xff]
    %v1400 = vld [vmem:[#allocation3 + $0x988] sm:$0xff]
    %v1401 = vld [vmem:[#allocation3 + $0x990] sm:$0xff]
    %v1402 = vld [vmem:[#allocation3 + $0x998] sm:$0xff]
    %v1403 = vld [vmem:[#allocation3 + $0x9a0] sm:$0xff]
    %v1404 = vld [vmem:[#allocation3 + $0x9d8] sm:$0xff]
    %v1405 = vld [vmem:[#allocation3 + $0x9e0] sm:$0xff]
    %v1406 = vld [vmem:[#allocation3 + $0x9e8] sm:$0xff]
    %v1407 = vld [vmem:[#allocation3 + $0x9f0] sm:$0xff]
    %v1408 = vpack.c.bf16 %v207, %v207
    %v1409 = vpack.c.bf16 %v208, %v208
    %v1410 = vpack.c.bf16 %v209, %v209
    %v1411 = vpack.c.bf16 %v210, %v210
    %v1412 = vld [vmem:[#allocation7 + $0x9] sm:$0xf]
    %v1414 = vlaneseq
    %v1415 = vshrl.u32 %v1414, 7
    %v1416 = vsub.s32 0, %v1415
    %v1417 = vrot.slane %v1412, %v1416
    %v1418 = vlaneseq
    %v1419 = vshrl.u32 %v1418, 7
    %v1420 = vsub.s32 1, %v1419
    %v1421 = vrot.slane %v1412, %v1420
    %v1422 = vlaneseq
    %v1423 = vshrl.u32 %v1422, 7
    %v1424 = vsub.s32 2, %v1423
    %v1425 = vrot.slane %v1412, %v1424
    %v1426 = vlaneseq
    %v1427 = vshrl.u32 %v1426, 7
    %v1428 = vsub.s32 3, %v1427
    %v1429 = vrot.slane %v1412, %v1428
    %1434 = vmatprep.subr.bf16.mxu0 %v1281
    %1435 = vmatpush1.bf16.msra.mxu0 %v1280
    %1436 = vmatprep.subr.bf16.mxu0 %v1285
    %1437 = vmatpush1.bf16.msra.mxu0 %v1284
    %1438 = vmatprep.subr.bf16.mxu0 %v1289
    %1439 = vmatpush1.bf16.msra.mxu0 %v1288
    %1440 = vmatprep.subr.bf16.mxu0 %v1293
    %1441 = vmatpush1.bf16.msra.mxu0 %v1292
    %1442 = vmatprep.subr.bf16.mxu0 %v1297
    %1443 = vmatpush1.bf16.msra.mxu0 %v1296
    %1444 = vmatprep.subr.bf16.mxu0 %v1301
    %1445 = vmatpush1.bf16.msra.mxu0 %v1300
    %1446 = vmatprep.subr.bf16.mxu0 %v1305
    %1447 = vmatpush1.bf16.msra.mxu0 %v1304
    %1448 = vmatprep.subr.bf16.mxu0 %v1309
    %1449 = vmatpush1.bf16.msra.mxu0 %v1308
    %1450 = vmatprep.subr.bf16.mxu0 %v1313
    %1451 = vmatpush1.bf16.msra.mxu0 %v1312
    %1452 = vmatprep.subr.bf16.mxu0 %v1317
    %1453 = vmatpush1.bf16.msra.mxu0 %v1316
    %1454 = vmatprep.subr.bf16.mxu0 %v1321
    %1455 = vmatpush1.bf16.msra.mxu0 %v1320
    %1456 = vmatprep.subr.bf16.mxu0 %v1325
    %1457 = vmatpush1.bf16.msra.mxu0 %v1324
    %1458 = vmatprep.subr.bf16.mxu0 %v1329
    %1459 = vmatpush1.bf16.msra.mxu0 %v1328
    %1460 = vmatprep.subr.bf16.mxu0 %v1333
    %1461 = vmatpush1.bf16.msra.mxu0 %v1332
    %1462 = vmatprep.subr.bf16.mxu0 %v1337
    %1463 = vmatpush1.bf16.msra.mxu0 %v1336
    %1464 = vmatprep.subr.bf16.mxu0 %v1341
    %1465 = vmatpush1.bf16.msra.mxu0 %v1340
    %1466 = vmatprep.mubr.bf16.mxu0 %v1409
    %1467 = vmatmul.mubr.bf16.gmra.mrb[0].mxu0 %v1408
    %v1468 = vpop.f32.mrb[0].mxu0
    %v1469 = vadd.f32 %v1417, %v1468
    %v1470 = vpop.f32.mrb[0].mxu0
    %v1471 = vadd.f32 %v1421, %v1470
    %v1472 = vpop.f32.mrb[0].mxu0
    %v1473 = vpop.f32.mrb[0].mxu0
    %1474 = vdwg.mxu0
    %1475 = vmatprep.subr.bf16.mxu0 %v1345
    %1476 = vmatpush1.bf16.msra.mxu0 %v1344
    %1477 = vmatprep.subr.bf16.mxu0 %v1349
    %1478 = vmatpush1.bf16.msra.mxu0 %v1348
    %1479 = vmatprep.subr.bf16.mxu0 %v1353
    %1480 = vmatpush1.bf16.msra.mxu0 %v1352
    %1481 = vmatprep.subr.bf16.mxu0 %v1357
    %1482 = vmatpush1.bf16.msra.mxu0 %v1356
    %1483 = vmatprep.subr.bf16.mxu0 %v1361
    %1484 = vmatpush1.bf16.msra.mxu0 %v1360
    %1485 = vmatprep.subr.bf16.mxu0 %v1365
    %1486 = vmatpush1.bf16.msra.mxu0 %v1364
    %1487 = vmatprep.subr.bf16.mxu0 %v1369
    %1488 = vmatpush1.bf16.msra.mxu0 %v1368
    %1489 = vmatprep.subr.bf16.mxu0 %v1373
    %1490 = vmatpush1.bf16.msra.mxu0 %v1372
    %1491 = vmatprep.subr.bf16.mxu0 %v1377
    %1492 = vmatpush1.bf16.msra.mxu0 %v1376
    %1493 = vmatprep.subr.bf16.mxu0 %v1381
    %1494 = vmatpush1.bf16.msra.mxu0 %v1380
    %1495 = vmatprep.subr.bf16.mxu0 %v1385
    %1496 = vmatpush1.bf16.msra.mxu0 %v1384
    %1497 = vmatprep.subr.bf16.mxu0 %v1389
    %1498 = vmatpush1.bf16.msra.mxu0 %v1388
    %1499 = vmatprep.subr.bf16.mxu0 %v1393
    %1500 = vmatpush1.bf16.msra.mxu0 %v1392
    %1501 = vmatprep.subr.bf16.mxu0 %v1397
    %1502 = vmatpush1.bf16.msra.mxu0 %v1396
    %1503 = vmatprep.subr.bf16.mxu0 %v1401
    %1504 = vmatpush1.bf16.msra.mxu0 %v1400
    %1505 = vmatprep.subr.bf16.mxu0 %v1405
    %1506 = vmatpush1.bf16.msra.mxu0 %v1404
    %1507 = vmatprep.mubr.bf16.mxu0 %v1411
    %1508 = vmatmul.mubr.bf16.gmra.mrb[0].mxu0 %v1410
    %v1509 = vpop.f32.mrb[0].mxu0
    %v1510 = vadd.f32 %v1469, %v1509
    %v1511 = vpop.f32.mrb[0].mxu0
    %v1512 = vadd.f32 %v1471, %v1511
    %v1513 = vpop.f32.mrb[0].mxu0
    %v1514 = vpop.f32.mrb[0].mxu0
    %1515 = vdwg.mxu0
    %1516 = vmatprep.subr.bf16.mxu0 %v1283
    %1517 = vmatpush1.bf16.msra.mxu0 %v1282
    %1518 = vmatprep.subr.bf16.mxu0 %v1287
    %1519 = vmatpush1.bf16.msra.mxu0 %v1286
    %1520 = vmatprep.subr.bf16.mxu0 %v1291
    %1521 = vmatpush1.bf16.msra.mxu0 %v1290
    %1522 = vmatprep.subr.bf16.mxu0 %v1295
    %1523 = vmatpush1.bf16.msra.mxu0 %v1294
    %1524 = vmatprep.subr.bf16.mxu0 %v1299
    %1525 = vmatpush1.bf16.msra.mxu0 %v1298
    %1526 = vmatprep.subr.bf16.mxu0 %v1303
    %1527 = vmatpush1.bf16.msra.mxu0 %v1302
    %1528 = vmatprep.subr.bf16.mxu0 %v1307
    %1529 = vmatpush1.bf16.msra.mxu0 %v1306
    %1530 = vmatprep.subr.bf16.mxu0 %v1311
    %1531 = vmatpush1.bf16.msra.mxu0 %v1310
    %1532 = vmatprep.subr.bf16.mxu0 %v1315
    %1533 = vmatpush1.bf16.msra.mxu0 %v1314
    %1534 = vmatprep.subr.bf16.mxu0 %v1319
    %1535 = vmatpush1.bf16.msra.mxu0 %v1318
    %1536 = vmatprep.subr.bf16.mxu0 %v1323
    %1537 = vmatpush1.bf16.msra.mxu0 %v1322
    %1538 = vmatprep.subr.bf16.mxu0 %v1327
    %1539 = vmatpush1.bf16.msra.mxu0 %v1326
    %1540 = vmatprep.subr.bf16.mxu0 %v1331
    %1541 = vmatpush1.bf16.msra.mxu0 %v1330
    %1542 = vmatprep.subr.bf16.mxu0 %v1335
    %1543 = vmatpush1.bf16.msra.mxu0 %v1334
    %1544 = vmatprep.subr.bf16.mxu0 %v1339
    %1545 = vmatpush1.bf16.msra.mxu0 %v1338
    %1546 = vmatprep.subr.bf16.mxu0 %v1343
    %1547 = vmatpush1.bf16.msra.mxu0 %v1342
    %1548 = vmatprep.mubr.bf16.mxu0 %v1409
    %1549 = vmatmul.mubr.bf16.gmra.mrb[0].mxu0 %v1408
    %v1550 = vpop.f32.mrb[0].mxu0
    %v1551 = vadd.f32 %v1425, %v1550
    %v1552 = vpop.f32.mrb[0].mxu0
    %v1553 = vadd.f32 %v1429, %v1552
    %v1554 = vpop.f32.mrb[0].mxu0
    %v1555 = vpop.f32.mrb[0].mxu0
    %1556 = vdwg.mxu0
    %1557 = vmatprep.subr.bf16.mxu0 %v1347
    %1558 = vmatpush1.bf16.msra.mxu0 %v1346
    %1559 = vmatprep.subr.bf16.mxu0 %v1351
    %1560 = vmatpush1.bf16.msra.mxu0 %v1350
    %1561 = vmatprep.subr.bf16.mxu0 %v1355
    %1562 = vmatpush1.bf16.msra.mxu0 %v1354
    %1563 = vmatprep.subr.bf16.mxu0 %v1359
    %1564 = vmatpush1.bf16.msra.mxu0 %v1358
    %1565 = vmatprep.subr.bf16.mxu0 %v1363
    %1566 = vmatpush1.bf16.msra.mxu0 %v1362
    %1567 = vmatprep.subr.bf16.mxu0 %v1367
    %1568 = vmatpush1.bf16.msra.mxu0 %v1366
    %1569 = vmatprep.subr.bf16.mxu0 %v1371
    %1570 = vmatpush1.bf16.msra.mxu0 %v1370
    %1571 = vmatprep.subr.bf16.mxu0 %v1375
    %1572 = vmatpush1.bf16.msra.mxu0 %v1374
    %1573 = vmatprep.subr.bf16.mxu0 %v1379
    %1574 = vmatpush1.bf16.msra.mxu0 %v1378
    %1575 = vmatprep.subr.bf16.mxu0 %v1383
    %1576 = vmatpush1.bf16.msra.mxu0 %v1382
    %1577 = vmatprep.subr.bf16.mxu0 %v1387
    %1578 = vmatpush1.bf16.msra.mxu0 %v1386
    %1579 = vmatprep.subr.bf16.mxu0 %v1391
    %1580 = vmatpush1.bf16.msra.mxu0 %v1390
    %1581 = vmatprep.subr.bf16.mxu0 %v1395
    %1582 = vmatpush1.bf16.msra.mxu0 %v1394
    %1583 = vmatprep.subr.bf16.mxu0 %v1399
    %1584 = vmatpush1.bf16.msra.mxu0 %v1398
    %1585 = vmatprep.subr.bf16.mxu0 %v1403
    %1586 = vmatpush1.bf16.msra.mxu0 %v1402
    %1587 = vmatprep.subr.bf16.mxu0 %v1407
    %1588 = vmatpush1.bf16.msra.mxu0 %v1406
    %1589 = vmatprep.mubr.bf16.mxu0 %v1411
    %1590 = vmatmul.mubr.bf16.gmra.mrb[0].mxu0 %v1410
    %v1591 = vpop.f32.mrb[0].mxu0
    %v1592 = vadd.f32 %v1551, %v1591
    %v1593 = vpop.f32.mrb[0].mxu0
    %v1594 = vadd.f32 %v1553, %v1593
    %v1595 = vpop.f32.mrb[0].mxu0
    %v1596 = vpop.f32.mrb[0].mxu0
    %1597 = vdwg.mxu0
    %v1598 = vxor.u32 %v1510, 2147483648
    %v1599 = vxor.u32 %v1512, 2147483648
    %v1600 = vxor.u32 %v1592, 2147483648
    %v1601 = vxor.u32 %v1594, 2147483648
    %v1602 = vmul.f32 %v1598, 1.442695
    %v1603 = vpow.pop %v1602
    %v1604 = vmul.f32 %v1599, 1.442695
    %v1605 = vpow.pop %v1604
    %v1606 = vmul.f32 %v1600, 1.442695
    %v1607 = vpow.pop %v1606
    %v1608 = vmul.f32 %v1601, 1.442695
    %v1609 = vpow.pop %v1608
    %v1610 = vadd.f32 %v1603, 1.0
    %v1611 = vadd.f32 %v1605, 1.0
    %v1612 = vadd.f32 %v1607, 1.0
    %v1613 = vadd.f32 %v1609, 1.0
    %v1614 = vrcp.pop %v1610
    %v1615 = vmul.f32 1.0, %v1614
    %v1616 = vrcp.pop %v1611
    %v1617 = vmul.f32 1.0, %v1616
    %v1618 = vrcp.pop %v1612
    %v1619 = vmul.f32 1.0, %v1618
    %v1620 = vrcp.pop %v1613
    %v1621 = vmul.f32 1.0, %v1620
    %v1622 = vmul.f32 %v1510, %v1615
    %v1623 = vmul.f32 %v1512, %v1617
    %v1624 = vmul.f32 %v1592, %v1619
    %v1625 = vmul.f32 %v1594, %v1621
    %v1626 = vld [vmem:[#allocation3 + $0x48] sm:$0xff]
    %v1627 = vld [vmem:[#allocation3 + $0x98] sm:$0xff]
    %v1628 = vld [vmem:[#allocation3 + $0xe8] sm:$0xff]
    %v1629 = vld [vmem:[#allocation3 + $0x138] sm:$0xff]
    %v1630 = vld [vmem:[#allocation3 + $0x188] sm:$0xff]
    %v1631 = vld [vmem:[#allocation3 + $0x1d8] sm:$0xff]
    %v1632 = vld [vmem:[#allocation3 + $0x228] sm:$0xff]
    %v1633 = vld [vmem:[#allocation3 + $0x278] sm:$0xff]
    %v1634 = vld [vmem:[#allocation3 + $0x2c8] sm:$0xff]
    %v1635 = vld [vmem:[#allocation3 + $0x318] sm:$0xff]
    %v1636 = vld [vmem:[#allocation3 + $0x368] sm:$0xff]
    %v1637 = vld [vmem:[#allocation3 + $0x3b8] sm:$0xff]
    %v1638 = vld [vmem:[#allocation3 + $0x408] sm:$0xff]
    %v1639 = vld [vmem:[#allocation3 + $0x458] sm:$0xff]
    %v1640 = vld [vmem:[#allocation3 + $0x4a8] sm:$0xff]
    %v1641 = vld [vmem:[#allocation3 + $0x4f8] sm:$0xff]
    %v1642 = vld [vmem:[#allocation3 + $0x548] sm:$0xff]
    %v1643 = vld [vmem:[#allocation3 + $0x598] sm:$0xff]
    %v1644 = vld [vmem:[#allocation3 + $0x5e8] sm:$0xff]
    %v1645 = vld [vmem:[#allocation3 + $0x638] sm:$0xff]
    %v1646 = vld [vmem:[#allocation3 + $0x688] sm:$0xff]
    %v1647 = vld [vmem:[#allocation3 + $0x6d8] sm:$0xff]
    %v1648 = vld [vmem:[#allocation3 + $0x728] sm:$0xff]
    %v1649 = vld [vmem:[#allocation3 + $0x778] sm:$0xff]
    %v1650 = vld [vmem:[#allocation3 + $0x7c8] sm:$0xff]
    %v1651 = vld [vmem:[#allocation3 + $0x818] sm:$0xff]
    %v1652 = vld [vmem:[#allocation3 + $0x868] sm:$0xff]
    %v1653 = vld [vmem:[#allocation3 + $0x8b8] sm:$0xff]
    %v1654 = vld [vmem:[#allocation3 + $0x908] sm:$0xff]
    %v1655 = vld [vmem:[#allocation3 + $0x958] sm:$0xff]
    %v1656 = vld [vmem:[#allocation3 + $0x9a8] sm:$0xff]
    %v1657 = vld [vmem:[#allocation3 + $0x9f8] sm:$0xff]
    %v1658 = vpack.c.bf16 %v1622, %v1622
    %v1659 = vpack.c.bf16 %v1623, %v1623
    %v1660 = vpack.c.bf16 %v1624, %v1624
    %v1661 = vpack.c.bf16 %v1625, %v1625
    %v1662 = vld [vmem:[#allocation7 + $0xd] sm:$0x1]
    %v1664 = vlaneseq
    %v1665 = vshrl.u32 %v1664, 7
    %v1666 = vsub.s32 0, %v1665
    %v1667 = vrot.slane %v1662, %v1666
    %1669 = vmatprep.subr.bf16.mxu0 0
    %1670 = vmatpush1.bf16.msra.mxu0 %v1626
    %1671 = vmatprep.subr.bf16.mxu0 0
    %1672 = vmatpush1.bf16.msra.mxu0 %v1627
    %1673 = vmatprep.subr.bf16.mxu0 0
    %1674 = vmatpush1.bf16.msra.mxu0 %v1628
    %1675 = vmatprep.subr.bf16.mxu0 0
    %1676 = vmatpush1.bf16.msra.mxu0 %v1629
    %1677 = vmatprep.subr.bf16.mxu0 0
    %1678 = vmatpush1.bf16.msra.mxu0 %v1630
    %1679 = vmatprep.subr.bf16.mxu0 0
    %1680 = vmatpush1.bf16.msra.mxu0 %v1631
    %1681 = vmatprep.subr.bf16.mxu0 0
    %1682 = vmatpush1.bf16.msra.mxu0 %v1632
    %1683 = vmatprep.subr.bf16.mxu0 0
    %1684 = vmatpush1.bf16.msra.mxu0 %v1633
    %1685 = vmatprep.subr.bf16.mxu0 0
    %1686 = vmatpush1.bf16.msra.mxu0 %v1634
    %1687 = vmatprep.subr.bf16.mxu0 0
    %1688 = vmatpush1.bf16.msra.mxu0 %v1635
    %1689 = vmatprep.subr.bf16.mxu0 0
    %1690 = vmatpush1.bf16.msra.mxu0 %v1636
    %1691 = vmatprep.subr.bf16.mxu0 0
    %1692 = vmatpush1.bf16.msra.mxu0 %v1637
    %1693 = vmatprep.subr.bf16.mxu0 0
    %1694 = vmatpush1.bf16.msra.mxu0 %v1638
    %1695 = vmatprep.subr.bf16.mxu0 0
    %1696 = vmatpush1.bf16.msra.mxu0 %v1639
    %1697 = vmatprep.subr.bf16.mxu0 0
    %1698 = vmatpush1.bf16.msra.mxu0 %v1640
    %1699 = vmatprep.subr.bf16.mxu0 0
    %1700 = vmatpush1.bf16.msra.mxu0 %v1641
    %1701 = vmatprep.mubr.bf16.mxu0 %v1659
    %1702 = vmatmul.mubr.bf16.gmra.mrb[0].mxu0 %v1658
    %v1703 = vpop.f32.mrb[0].mxu0
    %v1704 = vadd.f32 %v1667, %v1703
    %v1705 = vpop.f32.mrb[0].mxu0
    %v1706 = vpop.f32.mrb[0].mxu0
    %v1707 = vpop.f32.mrb[0].mxu0
    %1708 = vdwg.mxu0
    %1709 = vmatprep.subr.bf16.mxu0 0
    %1710 = vmatpush1.bf16.msra.mxu0 %v1642
    %1711 = vmatprep.subr.bf16.mxu0 0
    %1712 = vmatpush1.bf16.msra.mxu0 %v1643
    %1713 = vmatprep.subr.bf16.mxu0 0
    %1714 = vmatpush1.bf16.msra.mxu0 %v1644
    %1715 = vmatprep.subr.bf16.mxu0 0
    %1716 = vmatpush1.bf16.msra.mxu0 %v1645
    %1717 = vmatprep.subr.bf16.mxu0 0
    %1718 = vmatpush1.bf16.msra.mxu0 %v1646
    %1719 = vmatprep.subr.bf16.mxu0 0
    %1720 = vmatpush1.bf16.msra.mxu0 %v1647
    %1721 = vmatprep.subr.bf16.mxu0 0
    %1722 = vmatpush1.bf16.msra.mxu0 %v1648
    %1723 = vmatprep.subr.bf16.mxu0 0
    %1724 = vmatpush1.bf16.msra.mxu0 %v1649
    %1725 = vmatprep.subr.bf16.mxu0 0
    %1726 = vmatpush1.bf16.msra.mxu0 %v1650
    %1727 = vmatprep.subr.bf16.mxu0 0
    %1728 = vmatpush1.bf16.msra.mxu0 %v1651
    %1729 = vmatprep.subr.bf16.mxu0 0
    %1730 = vmatpush1.bf16.msra.mxu0 %v1652
    %1731 = vmatprep.subr.bf16.mxu0 0
    %1732 = vmatpush1.bf16.msra.mxu0 %v1653
    %1733 = vmatprep.subr.bf16.mxu0 0
    %1734 = vmatpush1.bf16.msra.mxu0 %v1654
    %1735 = vmatprep.subr.bf16.mxu0 0
    %1736 = vmatpush1.bf16.msra.mxu0 %v1655
    %1737 = vmatprep.subr.bf16.mxu0 0
    %1738 = vmatpush1.bf16.msra.mxu0 %v1656
    %1739 = vmatprep.subr.bf16.mxu0 0
    %1740 = vmatpush1.bf16.msra.mxu0 %v1657
    %1741 = vmatprep.mubr.bf16.mxu0 %v1661
    %1742 = vmatmul.mubr.bf16.gmra.mrb[0].mxu0 %v1660
    %v1743 = vpop.f32.mrb[0].mxu0
    %v1744 = vadd.f32 %v1704, %v1743
    %v1745 = vpop.f32.mrb[0].mxu0
    %v1746 = vpop.f32.mrb[0].mxu0
    %v1747 = vpop.f32.mrb[0].mxu0
    %1748 = vdwg.mxu0
    %v1749 = vmul.f32 %v1275, 1.442695
    %v1750 = vpow.pop %v1749
    %v1751 = vadd.f32 %v1750, 1e-08
    %v1752 = vadd.f32 %v1751, 1e-08
    %v1753 = vrcp.pop %v1752
    %v1754 = vmul.f32 1.0, %v1753
    %v1755 = vmul.f32 %v1744, 1.442695
    %v1756 = vpow.pop %v1755
    %v1757 = vadd.f32 %v1756, 1e-08
    %v1758 = vadd.f32 %v1757, 1e-08
    %v1759 = vrcp.pop %v1758
    %v1760 = vmul.f32 1.0, %v1759
    %v1761 = vadd.f32 %v1754, 1.0
    %v1762 = vadd.f32 %v1761, %v1760
    %v1763 = vrcp.pop %v1762
    %v1764 = vmul.f32 1.0, %v1763
    %1766 = vrot.lane.b32.xlu0 %v1754, 96
    %v1767 = vpop.permute.xlu0 %1766
    %v1769 = vmul.f32 %v1275, %v1767
    %1771 = vrot.lane.b32.xlu0 %v1760, 96
    %v1772 = vpop.permute.xlu0 %1771
    %v1774 = vmul.f32 %v1744, %v1772
    %v1775 = vadd.f32 %v1769, %v1774
    %1777 = vrot.lane.b32.xlu0 %v1764, 96
    %v1778 = vpop.permute.xlu0 %1777
    %v1780 = vmul.f32 %v1775, %v1778
    %v1781 = vadd.f32 %v1764, 1e-08
    %v1782 = vlog2.pop %v1781
    %v1783 = vmul.f32 %v1782, 0.6931472
    %v1784 = vld [vmem:[%s2] sm:$0xff]
    %v1785 = vrsqrt.pop %v1781
    %v1786 = vmul.f32 %v1781, %v1785
    %vm1787 = vcmp.eq.f32.partialorder %v1781, inf
    %v1788 = vsel %vm1787, %v1781, %v1786
    %vm1789 = vcmp.eq.f32.partialorder %v1781, 0.0
    %v1790 = vand.u32 %v1781, 2147483648
    %v1791 = vsel %vm1789, %v1790, %v1788
    %1793 = vrot.lane.b32.xlu0 %v1791, 96
    %v1794 = vpop.permute.xlu0 %1793
    %v1796 = vmul.f32 %v1784, %v1794
    %v1797 = vadd.f32 %v1780, %v1796
    %vm1798 = vcmask 261120
    %v1799 = vsel %vm1798, %v1780, %v1783
    %vm1800 = vcmask 523264
    %1801 = vst.msk [vmem:[%s10] sm:$0xff] %vm1800, %v1799
    %s1802 = smul.u32 4, 4
    %s1803 = smul.u32 %s1802, 8
    %s1804 = sshll.u32 %s1803, 4
    %1805 = dma.done %s109, %s1804
    %v1806 = vld [vmem:[#allocation4] sm:$0xff]
    %v1807 = vld [vmem:[#allocation4 + $0x8] sm:$0xff]
    %v1808 = vld [vmem:[#allocation4 + $0x10] sm:$0xff]
    %v1809 = vld [vmem:[#allocation4 + $0x18] sm:$0xff]
    %v1810 = vld [vmem:[#allocation4 + $0x40] sm:$0xff]
    %v1811 = vld [vmem:[#allocation4 + $0x48] sm:$0xff]
    %v1812 = vld [vmem:[#allocation4 + $0x50] sm:$0xff]
    %v1813 = vld [vmem:[#allocation4 + $0x58] sm:$0xff]
    %v1814 = vpack.c.bf16 %v1797, %v1797
    %v1815 = vld [vmem:[#allocation7 + $0xe] sm:$0xf]
    %v1817 = vlaneseq
    %v1818 = vshrl.u32 %v1817, 7
    %v1819 = vsub.s32 0, %v1818
    %v1820 = vrot.slane %v1815, %v1819
    %v1821 = vlaneseq
    %v1822 = vshrl.u32 %v1821, 7
    %v1823 = vsub.s32 1, %v1822
    %v1824 = vrot.slane %v1815, %v1823
    %v1825 = vlaneseq
    %v1826 = vshrl.u32 %v1825, 7
    %v1827 = vsub.s32 2, %v1826
    %v1828 = vrot.slane %v1815, %v1827
    %v1829 = vlaneseq
    %v1830 = vshrl.u32 %v1829, 7
    %v1831 = vsub.s32 3, %v1830
    %v1832 = vrot.slane %v1815, %v1831
    %v1838 = vsel %vm1798, %v1814, 0
    %1840 = vmatprep.subr.bf16.mxu0 %v1807
    %1841 = vmatpush1.bf16.msra.mxu0 %v1806
    %1842 = vmatprep.subr.bf16.mxu0 %v1811
    %1843 = vmatpush1.bf16.msra.mxu0 %v1810
    %1844 = vmatprep.subr.bf16.mxu0 0
    %1845 = vmatpush1.bf16.msra.mxu0 0
    %1846 = vmatprep.subr.bf16.mxu0 0
    %1847 = vmatpush1.bf16.msra.mxu0 0
    %1848 = vmatprep.subr.bf16.mxu0 0
    %1849 = vmatpush1.bf16.msra.mxu0 0
    %1850 = vmatprep.subr.bf16.mxu0 0
    %1851 = vmatpush1.bf16.msra.mxu0 0
    %1852 = vmatprep.subr.bf16.mxu0 0
    %1853 = vmatpush1.bf16.msra.mxu0 0
    %1854 = vmatprep.subr.bf16.mxu0 0
    %1855 = vmatpush1.bf16.msra.mxu0 0
    %1856 = vmatprep.subr.bf16.mxu0 0
    %1857 = vmatpush1.bf16.msra.mxu0 0
    %1858 = vmatprep.subr.bf16.mxu0 0
    %1859 = vmatpush1.bf16.msra.mxu0 0
    %1860 = vmatprep.subr.bf16.mxu0 0
    %1861 = vmatpush1.bf16.msra.mxu0 0
    %1862 = vmatprep.subr.bf16.mxu0 0
    %1863 = vmatpush1.bf16.msra.mxu0 0
    %1864 = vmatprep.subr.bf16.mxu0 0
    %1865 = vmatpush1.bf16.msra.mxu0 0
    %1866 = vmatprep.subr.bf16.mxu0 0
    %1867 = vmatpush1.bf16.msra.mxu0 0
    %1868 = vmatprep.subr.bf16.mxu0 0
    %1869 = vmatpush1.bf16.msra.mxu0 0
    %1870 = vmatprep.subr.bf16.mxu0 0
    %1871 = vmatpush1.bf16.msra.mxu0 0
    %1872 = vmatprep.mubr.bf16.mxu0 0
    %1873 = vmatmul.mubr.bf16.gmra.mrb[0].mxu0 %v1838
    %v1874 = vpop.f32.mrb[0].mxu0
    %v1875 = vadd.f32 %v1820, %v1874
    %v1876 = vpop.f32.mrb[0].mxu0
    %v1877 = vadd.f32 %v1824, %v1876
    %v1878 = vpop.f32.mrb[0].mxu0
    %v1879 = vpop.f32.mrb[0].mxu0
    %1880 = vdwg.mxu0
    %1881 = vmatprep.subr.bf16.mxu0 %v1809
    %1882 = vmatpush1.bf16.msra.mxu0 %v1808
    %1883 = vmatprep.subr.bf16.mxu0 %v1813
    %1884 = vmatpush1.bf16.msra.mxu0 %v1812
    %1885 = vmatprep.subr.bf16.mxu0 0
    %1886 = vmatpush1.bf16.msra.mxu0 0
    %1887 = vmatprep.subr.bf16.mxu0 0
    %1888 = vmatpush1.bf16.msra.mxu0 0
    %1889 = vmatprep.subr.bf16.mxu0 0
    %1890 = vmatpush1.bf16.msra.mxu0 0
    %1891 = vmatprep.subr.bf16.mxu0 0
    %1892 = vmatpush1.bf16.msra.mxu0 0
    %1893 = vmatprep.subr.bf16.mxu0 0
    %1894 = vmatpush1.bf16.msra.mxu0 0
    %1895 = vmatprep.subr.bf16.mxu0 0
    %1896 = vmatpush1.bf16.msra.mxu0 0
    %1897 = vmatprep.subr.bf16.mxu0 0
    %1898 = vmatpush1.bf16.msra.mxu0 0
    %1899 = vmatprep.subr.bf16.mxu0 0
    %1900 = vmatpush1.bf16.msra.mxu0 0
    %1901 = vmatprep.subr.bf16.mxu0 0
    %1902 = vmatpush1.bf16.msra.mxu0 0
    %1903 = vmatprep.subr.bf16.mxu0 0
    %1904 = vmatpush1.bf16.msra.mxu0 0
    %1905 = vmatprep.subr.bf16.mxu0 0
    %1906 = vmatpush1.bf16.msra.mxu0 0
    %1907 = vmatprep.subr.bf16.mxu0 0
    %1908 = vmatpush1.bf16.msra.mxu0 0
    %1909 = vmatprep.subr.bf16.mxu0 0
    %1910 = vmatpush1.bf16.msra.mxu0 0
    %1911 = vmatprep.subr.bf16.mxu0 0
    %1912 = vmatpush1.bf16.msra.mxu0 0
    %1913 = vmatprep.mubr.bf16.mxu0 0
    %1914 = vmatmul.mubr.bf16.gmra.mrb[0].mxu0 %v1838
    %v1915 = vpop.f32.mrb[0].mxu0
    %v1916 = vadd.f32 %v1828, %v1915
    %v1917 = vpop.f32.mrb[0].mxu0
    %v1918 = vadd.f32 %v1832, %v1917
    %v1919 = vpop.f32.mrb[0].mxu0
    %v1920 = vpop.f32.mrb[0].mxu0
    %1921 = vdwg.mxu0
    %v1922 = vxor.u32 %v1875, 2147483648
    %v1923 = vxor.u32 %v1877, 2147483648
    %v1924 = vxor.u32 %v1916, 2147483648
    %v1925 = vxor.u32 %v1918, 2147483648
    %v1926 = vmul.f32 %v1922, 1.442695
    %v1927 = vpow.pop %v1926
    %v1928 = vmul.f32 %v1923, 1.442695
    %v1929 = vpow.pop %v1928
    %v1930 = vmul.f32 %v1924, 1.442695
    %v1931 = vpow.pop %v1930
    %v1932 = vmul.f32 %v1925, 1.442695
    %v1933 = vpow.pop %v1932
    %v1934 = vadd.f32 %v1927, 1.0
    %v1935 = vadd.f32 %v1929, 1.0
    %v1936 = vadd.f32 %v1931, 1.0
    %v1937 = vadd.f32 %v1933, 1.0
    %v1938 = vrcp.pop %v1934
    %v1939 = vmul.f32 1.0, %v1938
    %v1940 = vrcp.pop %v1935
    %v1941 = vmul.f32 1.0, %v1940
    %v1942 = vrcp.pop %v1936
    %v1943 = vmul.f32 1.0, %v1942
    %v1944 = vrcp.pop %v1937
    %v1945 = vmul.f32 1.0, %v1944
    %v1946 = vmul.f32 %v1875, %v1939
    %v1947 = vmul.f32 %v1877, %v1941
    %v1948 = vmul.f32 %v1916, %v1943
    %v1949 = vmul.f32 %v1918, %v1945
    %v1950 = vld [vmem:[#allocation4 + $0x20] sm:$0xff]
    %v1951 = vld [vmem:[#allocation4 + $0x28] sm:$0xff]
    %v1952 = vld [vmem:[#allocation4 + $0x30] sm:$0xff]
    %v1953 = vld [vmem:[#allocation4 + $0x38] sm:$0xff]
    %v1954 = vld [vmem:[#allocation4 + $0x60] sm:$0xff]
    %v1955 = vld [vmem:[#allocation4 + $0x68] sm:$0xff]
    %v1956 = vld [vmem:[#allocation4 + $0x70] sm:$0xff]
    %v1957 = vld [vmem:[#allocation4 + $0x78] sm:$0xff]
    %v1958 = vld [vmem:[#allocation7 + $0x21] sm:$0xf]
    %v1960 = vlaneseq
    %v1961 = vshrl.u32 %v1960, 7
    %v1962 = vsub.s32 0, %v1961
    %v1963 = vrot.slane %v1958, %v1962
    %v1964 = vlaneseq
    %v1965 = vshrl.u32 %v1964, 7
    %v1966 = vsub.s32 1, %v1965
    %v1967 = vrot.slane %v1958, %v1966
    %v1968 = vlaneseq
    %v1969 = vshrl.u32 %v1968, 7
    %v1970 = vsub.s32 2, %v1969
    %v1971 = vrot.slane %v1958, %v1970
    %v1972 = vlaneseq
    %v1973 = vshrl.u32 %v1972, 7
    %v1974 = vsub.s32 3, %v1973
    %v1975 = vrot.slane %v1958, %v1974
    %1980 = vmatprep.subr.bf16.mxu0 %v1951
    %1981 = vmatpush1.bf16.msra.mxu0 %v1950
    %1982 = vmatprep.subr.bf16.mxu0 %v1955
    %1983 = vmatpush1.bf16.msra.mxu0 %v1954
    %1984 = vmatprep.subr.bf16.mxu0 0
    %1985 = vmatpush1.bf16.msra.mxu0 0
    %1986 = vmatprep.subr.bf16.mxu0 0
    %1987 = vmatpush1.bf16.msra.mxu0 0
    %1988 = vmatprep.subr.bf16.mxu0 0
    %1989 = vmatpush1.bf16.msra.mxu0 0
    %1990 = vmatprep.subr.bf16.mxu0 0
    %1991 = vmatpush1.bf16.msra.mxu0 0
    %1992 = vmatprep.subr.bf16.mxu0 0
    %1993 = vmatpush1.bf16.msra.mxu0 0
    %1994 = vmatprep.subr.bf16.mxu0 0
    %1995 = vmatpush1.bf16.msra.mxu0 0
    %1996 = vmatprep.subr.bf16.mxu0 0
    %1997 = vmatpush1.bf16.msra.mxu0 0
    %1998 = vmatprep.subr.bf16.mxu0 0
    %1999 = vmatpush1.bf16.msra.mxu0 0
    %2000 = vmatprep.subr.bf16.mxu0 0
    %2001 = vmatpush1.bf16.msra.mxu0 0
    %2002 = vmatprep.subr.bf16.mxu0 0
    %2003 = vmatpush1.bf16.msra.mxu0 0
    %2004 = vmatprep.subr.bf16.mxu0 0
    %2005 = vmatpush1.bf16.msra.mxu0 0
    %2006 = vmatprep.subr.bf16.mxu0 0
    %2007 = vmatpush1.bf16.msra.mxu0 0
    %2008 = vmatprep.subr.bf16.mxu0 0
    %2009 = vmatpush1.bf16.msra.mxu0 0
    %2010 = vmatprep.subr.bf16.mxu0 0
    %2011 = vmatpush1.bf16.msra.mxu0 0
    %2012 = vmatprep.mubr.bf16.mxu0 0
    %2013 = vmatmul.mubr.bf16.gmra.mrb[0].mxu0 %v1838
    %v2014 = vpop.f32.mrb[0].mxu0
    %v2015 = vadd.f32 %v1963, %v2014
    %v2016 = vpop.f32.mrb[0].mxu0
    %v2017 = vadd.f32 %v1967, %v2016
    %v2018 = vpop.f32.mrb[0].mxu0
    %v2019 = vpop.f32.mrb[0].mxu0
    %2020 = vdwg.mxu0
    %2021 = vmatprep.subr.bf16.mxu0 %v1953
    %2022 = vmatpush1.bf16.msra.mxu0 %v1952
    %2023 = vmatprep.subr.bf16.mxu0 %v1957
    %2024 = vmatpush1.bf16.msra.mxu0 %v1956
    %2025 = vmatprep.subr.bf16.mxu0 0
    %2026 = vmatpush1.bf16.msra.mxu0 0
    %2027 = vmatprep.subr.bf16.mxu0 0
    %2028 = vmatpush1.bf16.msra.mxu0 0
    %2029 = vmatprep.subr.bf16.mxu0 0
    %2030 = vmatpush1.bf16.msra.mxu0 0
    %2031 = vmatprep.subr.bf16.mxu0 0
    %2032 = vmatpush1.bf16.msra.mxu0 0
    %2033 = vmatprep.subr.bf16.mxu0 0
    %2034 = vmatpush1.bf16.msra.mxu0 0
    %2035 = vmatprep.subr.bf16.mxu0 0
    %2036 = vmatpush1.bf16.msra.mxu0 0
    %2037 = vmatprep.subr.bf16.mxu0 0
    %2038 = vmatpush1.bf16.msra.mxu0 0
    %2039 = vmatprep.subr.bf16.mxu0 0
    %2040 = vmatpush1.bf16.msra.mxu0 0
    %2041 = vmatprep.subr.bf16.mxu0 0
    %2042 = vmatpush1.bf16.msra.mxu0 0
    %2043 = vmatprep.subr.bf16.mxu0 0
    %2044 = vmatpush1.bf16.msra.mxu0 0
    %2045 = vmatprep.subr.bf16.mxu0 0
    %2046 = vmatpush1.bf16.msra.mxu0 0
    %2047 = vmatprep.subr.bf16.mxu0 0
    %2048 = vmatpush1.bf16.msra.mxu0 0
    %2049 = vmatprep.subr.bf16.mxu0 0
    %2050 = vmatpush1.bf16.msra.mxu0 0
    %2051 = vmatprep.subr.bf16.mxu0 0
    %2052 = vmatpush1.bf16.msra.mxu0 0
    %2053 = vmatprep.mubr.bf16.mxu0 0
    %2054 = vmatmul.mubr.bf16.gmra.mrb[0].mxu0 %v1838
    %v2055 = vpop.f32.mrb[0].mxu0
    %v2056 = vadd.f32 %v1971, %v2055
    %v2057 = vpop.f32.mrb[0].mxu0
    %v2058 = vadd.f32 %v1975, %v2057
    %v2059 = vpop.f32.mrb[0].mxu0
    %v2060 = vpop.f32.mrb[0].mxu0
    %2061 = vdwg.mxu0
    %v2062 = vxor.u32 %v2015, 2147483648
    %v2063 = vxor.u32 %v2017, 2147483648
    %v2064 = vxor.u32 %v2056, 2147483648
    %v2065 = vxor.u32 %v2058, 2147483648
    %v2066 = vmul.f32 %v2062, 1.442695
    %v2067 = vpow.pop %v2066
    %v2068 = vmul.f32 %v2063, 1.442695
    %v2069 = vpow.pop %v2068
    %v2070 = vmul.f32 %v2064, 1.442695
    %v2071 = vpow.pop %v2070
    %v2072 = vmul.f32 %v2065, 1.442695
    %v2073 = vpow.pop %v2072
    %v2074 = vadd.f32 %v2067, 1.0
    %v2075 = vadd.f32 %v2069, 1.0
    %v2076 = vadd.f32 %v2071, 1.0
    %v2077 = vadd.f32 %v2073, 1.0
    %v2078 = vrcp.pop %v2074
    %v2079 = vmul.f32 1.0, %v2078
    %v2080 = vrcp.pop %v2075
    %v2081 = vmul.f32 1.0, %v2080
    %v2082 = vrcp.pop %v2076
    %v2083 = vmul.f32 1.0, %v2082
    %v2084 = vrcp.pop %v2077
    %v2085 = vmul.f32 1.0, %v2084
    %v2086 = vmul.f32 %v2015, %v2079
    %v2087 = vmul.f32 %v2017, %v2081
    %v2088 = vmul.f32 %v2056, %v2083
    %v2089 = vmul.f32 %v2058, %v2085
    %s2090 = smul.u32 %s807, 24
    %s2091 = sshll.u32 %s2090, 4
    %2092 = dma.done %s144, %s2091
    %v2093 = vld [vmem:[#allocation5] sm:$0xff]
    %v2094 = vld [vmem:[#allocation5 + $0x8] sm:$0xff]
    %v2095 = vld [vmem:[#allocation5 + $0x10] sm:$0xff]
    %v2096 = vld [vmem:[#allocation5 + $0x18] sm:$0xff]
    %v2097 = vld [vmem:[#allocation5 + $0xc0] sm:$0xff]
    %v2098 = vld [vmem:[#allocation5 + $0xc8] sm:$0xff]
    %v2099 = vld [vmem:[#allocation5 + $0xd0] sm:$0xff]
    %v2100 = vld [vmem:[#allocation5 + $0xd8] sm:$0xff]
    %v2101 = vld [vmem:[#allocation5 + $0x180] sm:$0xff]
    %v2102 = vld [vmem:[#allocation5 + $0x188] sm:$0xff]
    %v2103 = vld [vmem:[#allocation5 + $0x190] sm:$0xff]
    %v2104 = vld [vmem:[#allocation5 + $0x198] sm:$0xff]
    %v2105 = vld [vmem:[#allocation5 + $0x240] sm:$0xff]
    %v2106 = vld [vmem:[#allocation5 + $0x248] sm:$0xff]
    %v2107 = vld [vmem:[#allocation5 + $0x250] sm:$0xff]
    %v2108 = vld [vmem:[#allocation5 + $0x258] sm:$0xff]
    %v2109 = vld [vmem:[#allocation5 + $0x300] sm:$0xff]
    %v2110 = vld [vmem:[#allocation5 + $0x308] sm:$0xff]
    %v2111 = vld [vmem:[#allocation5 + $0x310] sm:$0xff]
    %v2112 = vld [vmem:[#allocation5 + $0x318] sm:$0xff]
    %v2113 = vld [vmem:[#allocation5 + $0x3c0] sm:$0xff]
    %v2114 = vld [vmem:[#allocation5 + $0x3c8] sm:$0xff]
    %v2115 = vld [vmem:[#allocation5 + $0x3d0] sm:$0xff]
    %v2116 = vld [vmem:[#allocation5 + $0x3d8] sm:$0xff]
    %v2117 = vld [vmem:[#allocation5 + $0x480] sm:$0xff]
    %v2118 = vld [vmem:[#allocation5 + $0x488] sm:$0xff]
    %v2119 = vld [vmem:[#allocation5 + $0x490] sm:$0xff]
    %v2120 = vld [vmem:[#allocation5 + $0x498] sm:$0xff]
    %v2121 = vld [vmem:[#allocation5 + $0x540] sm:$0xff]
    %v2122 = vld [vmem:[#allocation5 + $0x548] sm:$0xff]
    %v2123 = vld [vmem:[#allocation5 + $0x550] sm:$0xff]
    %v2124 = vld [vmem:[#allocation5 + $0x558] sm:$0xff]
    %v2125 = vld [vmem:[#allocation5 + $0x600] sm:$0xff]
    %v2126 = vld [vmem:[#allocation5 + $0x608] sm:$0xff]
    %v2127 = vld [vmem:[#allocation5 + $0x610] sm:$0xff]
    %v2128 = vld [vmem:[#allocation5 + $0x618] sm:$0xff]
    %v2129 = vld [vmem:[#allocation5 + $0x6c0] sm:$0xff]
    %v2130 = vld [vmem:[#allocation5 + $0x6c8] sm:$0xff]
    %v2131 = vld [vmem:[#allocation5 + $0x6d0] sm:$0xff]
    %v2132 = vld [vmem:[#allocation5 + $0x6d8] sm:$0xff]
    %v2133 = vld [vmem:[#allocation5 + $0x780] sm:$0xff]
    %v2134 = vld [vmem:[#allocation5 + $0x788] sm:$0xff]
    %v2135 = vld [vmem:[#allocation5 + $0x790] sm:$0xff]
    %v2136 = vld [vmem:[#allocation5 + $0x798] sm:$0xff]
    %v2137 = vld [vmem:[#allocation5 + $0x840] sm:$0xff]
    %v2138 = vld [vmem:[#allocation5 + $0x848] sm:$0xff]
    %v2139 = vld [vmem:[#allocation5 + $0x850] sm:$0xff]
    %v2140 = vld [vmem:[#allocation5 + $0x858] sm:$0xff]
    %v2141 = vld [vmem:[#allocation5 + $0x900] sm:$0xff]
    %v2142 = vld [vmem:[#allocation5 + $0x908] sm:$0xff]
    %v2143 = vld [vmem:[#allocation5 + $0x910] sm:$0xff]
    %v2144 = vld [vmem:[#allocation5 + $0x918] sm:$0xff]
    %v2145 = vld [vmem:[#allocation5 + $0x9c0] sm:$0xff]
    %v2146 = vld [vmem:[#allocation5 + $0x9c8] sm:$0xff]
    %v2147 = vld [vmem:[#allocation5 + $0x9d0] sm:$0xff]
    %v2148 = vld [vmem:[#allocation5 + $0x9d8] sm:$0xff]
    %v2149 = vld [vmem:[#allocation5 + $0xa80] sm:$0xff]
    %v2150 = vld [vmem:[#allocation5 + $0xa88] sm:$0xff]
    %v2151 = vld [vmem:[#allocation5 + $0xa90] sm:$0xff]
    %v2152 = vld [vmem:[#allocation5 + $0xa98] sm:$0xff]
    %v2153 = vld [vmem:[#allocation5 + $0xb40] sm:$0xff]
    %v2154 = vld [vmem:[#allocation5 + $0xb48] sm:$0xff]
    %v2155 = vld [vmem:[#allocation5 + $0xb50] sm:$0xff]
    %v2156 = vld [vmem:[#allocation5 + $0xb58] sm:$0xff]
    %v2157 = vld [vmem:[#allocation5 + $0xc00] sm:$0xff]
    %v2158 = vld [vmem:[#allocation5 + $0xc08] sm:$0xff]
    %v2159 = vld [vmem:[#allocation5 + $0xc10] sm:$0xff]
    %v2160 = vld [vmem:[#allocation5 + $0xc18] sm:$0xff]
    %v2161 = vld [vmem:[#allocation5 + $0xcc0] sm:$0xff]
    %v2162 = vld [vmem:[#allocation5 + $0xcc8] sm:$0xff]
    %v2163 = vld [vmem:[#allocation5 + $0xcd0] sm:$0xff]
    %v2164 = vld [vmem:[#allocation5 + $0xcd8] sm:$0xff]
    %v2165 = vld [vmem:[#allocation5 + $0xd80] sm:$0xff]
    %v2166 = vld [vmem:[#allocation5 + $0xd88] sm:$0xff]
    %v2167 = vld [vmem:[#allocation5 + $0xd90] sm:$0xff]
    %v2168 = vld [vmem:[#allocation5 + $0xd98] sm:$0xff]
    %v2169 = vld [vmem:[#allocation5 + $0xe40] sm:$0xff]
    %v2170 = vld [vmem:[#allocation5 + $0xe48] sm:$0xff]
    %v2171 = vld [vmem:[#allocation5 + $0xe50] sm:$0xff]
    %v2172 = vld [vmem:[#allocation5 + $0xe58] sm:$0xff]
    %v2173 = vld [vmem:[#allocation5 + $0xf00] sm:$0xff]
    %v2174 = vld [vmem:[#allocation5 + $0xf08] sm:$0xff]
    %v2175 = vld [vmem:[#allocation5 + $0xf10] sm:$0xff]
    %v2176 = vld [vmem:[#allocation5 + $0xf18] sm:$0xff]
    %v2177 = vld [vmem:[#allocation5 + $0xfc0] sm:$0xff]
    %v2178 = vld [vmem:[#allocation5 + $0xfc8] sm:$0xff]
    %v2179 = vld [vmem:[#allocation5 + $0xfd0] sm:$0xff]
    %v2180 = vld [vmem:[#allocation5 + $0xfd8] sm:$0xff]
    %v2181 = vld [vmem:[#allocation5 + $0x1080] sm:$0xff]
    %v2182 = vld [vmem:[#allocation5 + $0x1088] sm:$0xff]
    %v2183 = vld [vmem:[#allocation5 + $0x1090] sm:$0xff]
    %v2184 = vld [vmem:[#allocation5 + $0x1098] sm:$0xff]
    %v2185 = vld [vmem:[#allocation5 + $0x1140] sm:$0xff]
    %v2186 = vld [vmem:[#allocation5 + $0x1148] sm:$0xff]
    %v2187 = vld [vmem:[#allocation5 + $0x1150] sm:$0xff]
    %v2188 = vld [vmem:[#allocation5 + $0x1158] sm:$0xff]
    %v2189 = vld [vmem:[#allocation5 + $0x1200] sm:$0xff]
    %v2190 = vld [vmem:[#allocation5 + $0x1208] sm:$0xff]
    %v2191 = vld [vmem:[#allocation5 + $0x1210] sm:$0xff]
    %v2192 = vld [vmem:[#allocation5 + $0x1218] sm:$0xff]
    %v2193 = vld [vmem:[#allocation5 + $0x12c0] sm:$0xff]
    %v2194 = vld [vmem:[#allocation5 + $0x12c8] sm:$0xff]
    %v2195 = vld [vmem:[#allocation5 + $0x12d0] sm:$0xff]
    %v2196 = vld [vmem:[#allocation5 + $0x12d8] sm:$0xff]
    %v2197 = vld [vmem:[#allocation5 + $0x1380] sm:$0xff]
    %v2198 = vld [vmem:[#allocation5 + $0x1388] sm:$0xff]
    %v2199 = vld [vmem:[#allocation5 + $0x1390] sm:$0xff]
    %v2200 = vld [vmem:[#allocation5 + $0x1398] sm:$0xff]
    %v2201 = vld [vmem:[#allocation5 + $0x1440] sm:$0xff]
    %v2202 = vld [vmem:[#allocation5 + $0x1448] sm:$0xff]
    %v2203 = vld [vmem:[#allocation5 + $0x1450] sm:$0xff]
    %v2204 = vld [vmem:[#allocation5 + $0x1458] sm:$0xff]
    %v2205 = vld [vmem:[#allocation5 + $0x1500] sm:$0xff]
    %v2206 = vld [vmem:[#allocation5 + $0x1508] sm:$0xff]
    %v2207 = vld [vmem:[#allocation5 + $0x1510] sm:$0xff]
    %v2208 = vld [vmem:[#allocation5 + $0x1518] sm:$0xff]
    %v2209 = vld [vmem:[#allocation5 + $0x15c0] sm:$0xff]
    %v2210 = vld [vmem:[#allocation5 + $0x15c8] sm:$0xff]
    %v2211 = vld [vmem:[#allocation5 + $0x15d0] sm:$0xff]
    %v2212 = vld [vmem:[#allocation5 + $0x15d8] sm:$0xff]
    %v2213 = vld [vmem:[#allocation5 + $0x1680] sm:$0xff]
    %v2214 = vld [vmem:[#allocation5 + $0x1688] sm:$0xff]
    %v2215 = vld [vmem:[#allocation5 + $0x1690] sm:$0xff]
    %v2216 = vld [vmem:[#allocation5 + $0x1698] sm:$0xff]
    %v2217 = vld [vmem:[#allocation5 + $0x1740] sm:$0xff]
    %v2218 = vld [vmem:[#allocation5 + $0x1748] sm:$0xff]
    %v2219 = vld [vmem:[#allocation5 + $0x1750] sm:$0xff]
    %v2220 = vld [vmem:[#allocation5 + $0x1758] sm:$0xff]
    %v2221 = vpack.c.bf16 %v1946, %v1946
    %v2222 = vpack.c.bf16 %v1947, %v1947
    %v2223 = vpack.c.bf16 %v1948, %v1948
    %v2224 = vpack.c.bf16 %v1949, %v1949
    %v2225 = vld [vmem:[#allocation7 + $0x12] sm:$0xf]
    %v2227 = vlaneseq
    %v2228 = vshrl.u32 %v2227, 7
    %v2229 = vsub.s32 0, %v2228
    %v2230 = vrot.slane %v2225, %v2229
    %v2231 = vlaneseq
    %v2232 = vshrl.u32 %v2231, 7
    %v2233 = vsub.s32 1, %v2232
    %v2234 = vrot.slane %v2225, %v2233
    %v2235 = vlaneseq
    %v2236 = vshrl.u32 %v2235, 7
    %v2237 = vsub.s32 2, %v2236
    %v2238 = vrot.slane %v2225, %v2237
    %v2239 = vlaneseq
    %v2240 = vshrl.u32 %v2239, 7
    %v2241 = vsub.s32 3, %v2240
    %v2242 = vrot.slane %v2225, %v2241
    %2247 = vmatprep.subr.bf16.mxu0 %v2094
    %2248 = vmatpush1.bf16.msra.mxu0 %v2093
    %2249 = vmatprep.subr.bf16.mxu0 %v2098
    %2250 = vmatpush1.bf16.msra.mxu0 %v2097
    %2251 = vmatprep.subr.bf16.mxu0 %v2102
    %2252 = vmatpush1.bf16.msra.mxu0 %v2101
    %2253 = vmatprep.subr.bf16.mxu0 %v2106
    %2254 = vmatpush1.bf16.msra.mxu0 %v2105
    %2255 = vmatprep.subr.bf16.mxu0 %v2110
    %2256 = vmatpush1.bf16.msra.mxu0 %v2109
    %2257 = vmatprep.subr.bf16.mxu0 %v2114
    %2258 = vmatpush1.bf16.msra.mxu0 %v2113
    %2259 = vmatprep.subr.bf16.mxu0 %v2118
    %2260 = vmatpush1.bf16.msra.mxu0 %v2117
    %2261 = vmatprep.subr.bf16.mxu0 %v2122
    %2262 = vmatpush1.bf16.msra.mxu0 %v2121
    %2263 = vmatprep.subr.bf16.mxu0 %v2126
    %2264 = vmatpush1.bf16.msra.mxu0 %v2125
    %2265 = vmatprep.subr.bf16.mxu0 %v2130
    %2266 = vmatpush1.bf16.msra.mxu0 %v2129
    %2267 = vmatprep.subr.bf16.mxu0 %v2134
    %2268 = vmatpush1.bf16.msra.mxu0 %v2133
    %2269 = vmatprep.subr.bf16.mxu0 %v2138
    %2270 = vmatpush1.bf16.msra.mxu0 %v2137
    %2271 = vmatprep.subr.bf16.mxu0 %v2142
    %2272 = vmatpush1.bf16.msra.mxu0 %v2141
    %2273 = vmatprep.subr.bf16.mxu0 %v2146
    %2274 = vmatpush1.bf16.msra.mxu0 %v2145
    %2275 = vmatprep.subr.bf16.mxu0 %v2150
    %2276 = vmatpush1.bf16.msra.mxu0 %v2149
    %2277 = vmatprep.subr.bf16.mxu0 %v2154
    %2278 = vmatpush1.bf16.msra.mxu0 %v2153
    %2279 = vmatprep.mubr.bf16.mxu0 %v2222
    %2280 = vmatmul.mubr.bf16.gmra.mrb[0].mxu0 %v2221
    %v2281 = vpop.f32.mrb[0].mxu0
    %v2282 = vadd.f32 %v2230, %v2281
    %v2283 = vpop.f32.mrb[0].mxu0
    %v2284 = vadd.f32 %v2234, %v2283
    %v2285 = vpop.f32.mrb[0].mxu0
    %v2286 = vpop.f32.mrb[0].mxu0
    %2287 = vdwg.mxu0
    %2288 = vmatprep.subr.bf16.mxu0 %v2158
    %2289 = vmatpush1.bf16.msra.mxu0 %v2157
    %2290 = vmatprep.subr.bf16.mxu0 %v2162
    %2291 = vmatpush1.bf16.msra.mxu0 %v2161
    %2292 = vmatprep.subr.bf16.mxu0 %v2166
    %2293 = vmatpush1.bf16.msra.mxu0 %v2165
    %2294 = vmatprep.subr.bf16.mxu0 %v2170
    %2295 = vmatpush1.bf16.msra.mxu0 %v2169
    %2296 = vmatprep.subr.bf16.mxu0 %v2174
    %2297 = vmatpush1.bf16.msra.mxu0 %v2173
    %2298 = vmatprep.subr.bf16.mxu0 %v2178
    %2299 = vmatpush1.bf16.msra.mxu0 %v2177
    %2300 = vmatprep.subr.bf16.mxu0 %v2182
    %2301 = vmatpush1.bf16.msra.mxu0 %v2181
    %2302 = vmatprep.subr.bf16.mxu0 %v2186
    %2303 = vmatpush1.bf16.msra.mxu0 %v2185
    %2304 = vmatprep.subr.bf16.mxu0 %v2190
    %2305 = vmatpush1.bf16.msra.mxu0 %v2189
    %2306 = vmatprep.subr.bf16.mxu0 %v2194
    %2307 = vmatpush1.bf16.msra.mxu0 %v2193
    %2308 = vmatprep.subr.bf16.mxu0 %v2198
    %2309 = vmatpush1.bf16.msra.mxu0 %v2197
    %2310 = vmatprep.subr.bf16.mxu0 %v2202
    %2311 = vmatpush1.bf16.msra.mxu0 %v2201
    %2312 = vmatprep.subr.bf16.mxu0 %v2206
    %2313 = vmatpush1.bf16.msra.mxu0 %v2205
    %2314 = vmatprep.subr.bf16.mxu0 %v2210
    %2315 = vmatpush1.bf16.msra.mxu0 %v2209
    %2316 = vmatprep.subr.bf16.mxu0 %v2214
    %2317 = vmatpush1.bf16.msra.mxu0 %v2213
    %2318 = vmatprep.subr.bf16.mxu0 %v2218
    %2319 = vmatpush1.bf16.msra.mxu0 %v2217
    %2320 = vmatprep.mubr.bf16.mxu0 %v2224
    %2321 = vmatmul.mubr.bf16.gmra.mrb[0].mxu0 %v2223
    %v2322 = vpop.f32.mrb[0].mxu0
    %v2323 = vadd.f32 %v2282, %v2322
    %v2324 = vpop.f32.mrb[0].mxu0
    %v2325 = vadd.f32 %v2284, %v2324
    %v2326 = vpop.f32.mrb[0].mxu0
    %v2327 = vpop.f32.mrb[0].mxu0
    %2328 = vdwg.mxu0
    %2329 = vmatprep.subr.bf16.mxu0 %v2096
    %2330 = vmatpush1.bf16.msra.mxu0 %v2095
    %2331 = vmatprep.subr.bf16.mxu0 %v2100
    %2332 = vmatpush1.bf16.msra.mxu0 %v2099
    %2333 = vmatprep.subr.bf16.mxu0 %v2104
    %2334 = vmatpush1.bf16.msra.mxu0 %v2103
    %2335 = vmatprep.subr.bf16.mxu0 %v2108
    %2336 = vmatpush1.bf16.msra.mxu0 %v2107
    %2337 = vmatprep.subr.bf16.mxu0 %v2112
    %2338 = vmatpush1.bf16.msra.mxu0 %v2111
    %2339 = vmatprep.subr.bf16.mxu0 %v2116
    %2340 = vmatpush1.bf16.msra.mxu0 %v2115
    %2341 = vmatprep.subr.bf16.mxu0 %v2120
    %2342 = vmatpush1.bf16.msra.mxu0 %v2119
    %2343 = vmatprep.subr.bf16.mxu0 %v2124
    %2344 = vmatpush1.bf16.msra.mxu0 %v2123
    %2345 = vmatprep.subr.bf16.mxu0 %v2128
    %2346 = vmatpush1.bf16.msra.mxu0 %v2127
    %2347 = vmatprep.subr.bf16.mxu0 %v2132
    %2348 = vmatpush1.bf16.msra.mxu0 %v2131
    %2349 = vmatprep.subr.bf16.mxu0 %v2136
    %2350 = vmatpush1.bf16.msra.mxu0 %v2135
    %2351 = vmatprep.subr.bf16.mxu0 %v2140
    %2352 = vmatpush1.bf16.msra.mxu0 %v2139
    %2353 = vmatprep.subr.bf16.mxu0 %v2144
    %2354 = vmatpush1.bf16.msra.mxu0 %v2143
    %2355 = vmatprep.subr.bf16.mxu0 %v2148
    %2356 = vmatpush1.bf16.msra.mxu0 %v2147
    %2357 = vmatprep.subr.bf16.mxu0 %v2152
    %2358 = vmatpush1.bf16.msra.mxu0 %v2151
    %2359 = vmatprep.subr.bf16.mxu0 %v2156
    %2360 = vmatpush1.bf16.msra.mxu0 %v2155
    %2361 = vmatprep.mubr.bf16.mxu0 %v2222
    %2362 = vmatmul.mubr.bf16.gmra.mrb[0].mxu0 %v2221
    %v2363 = vpop.f32.mrb[0].mxu0
    %v2364 = vadd.f32 %v2238, %v2363
    %v2365 = vpop.f32.mrb[0].mxu0
    %v2366 = vadd.f32 %v2242, %v2365
    %v2367 = vpop.f32.mrb[0].mxu0
    %v2368 = vpop.f32.mrb[0].mxu0
    %2369 = vdwg.mxu0
    %2370 = vmatprep.subr.bf16.mxu0 %v2160
    %2371 = vmatpush1.bf16.msra.mxu0 %v2159
    %2372 = vmatprep.subr.bf16.mxu0 %v2164
    %2373 = vmatpush1.bf16.msra.mxu0 %v2163
    %2374 = vmatprep.subr.bf16.mxu0 %v2168
    %2375 = vmatpush1.bf16.msra.mxu0 %v2167
    %2376 = vmatprep.subr.bf16.mxu0 %v2172
    %2377 = vmatpush1.bf16.msra.mxu0 %v2171
    %2378 = vmatprep.subr.bf16.mxu0 %v2176
    %2379 = vmatpush1.bf16.msra.mxu0 %v2175
    %2380 = vmatprep.subr.bf16.mxu0 %v2180
    %2381 = vmatpush1.bf16.msra.mxu0 %v2179
    %2382 = vmatprep.subr.bf16.mxu0 %v2184
    %2383 = vmatpush1.bf16.msra.mxu0 %v2183
    %2384 = vmatprep.subr.bf16.mxu0 %v2188
    %2385 = vmatpush1.bf16.msra.mxu0 %v2187
    %2386 = vmatprep.subr.bf16.mxu0 %v2192
    %2387 = vmatpush1.bf16.msra.mxu0 %v2191
    %2388 = vmatprep.subr.bf16.mxu0 %v2196
    %2389 = vmatpush1.bf16.msra.mxu0 %v2195
    %2390 = vmatprep.subr.bf16.mxu0 %v2200
    %2391 = vmatpush1.bf16.msra.mxu0 %v2199
    %2392 = vmatprep.subr.bf16.mxu0 %v2204
    %2393 = vmatpush1.bf16.msra.mxu0 %v2203
    %2394 = vmatprep.subr.bf16.mxu0 %v2208
    %2395 = vmatpush1.bf16.msra.mxu0 %v2207
    %2396 = vmatprep.subr.bf16.mxu0 %v2212
    %2397 = vmatpush1.bf16.msra.mxu0 %v2211
    %2398 = vmatprep.subr.bf16.mxu0 %v2216
    %2399 = vmatpush1.bf16.msra.mxu0 %v2215
    %2400 = vmatprep.subr.bf16.mxu0 %v2220
    %2401 = vmatpush1.bf16.msra.mxu0 %v2219
    %2402 = vmatprep.mubr.bf16.mxu0 %v2224
    %2403 = vmatmul.mubr.bf16.gmra.mrb[0].mxu0 %v2223
    %v2404 = vpop.f32.mrb[0].mxu0
    %v2405 = vadd.f32 %v2364, %v2404
    %v2406 = vpop.f32.mrb[0].mxu0
    %v2407 = vadd.f32 %v2366, %v2406
    %v2408 = vpop.f32.mrb[0].mxu0
    %v2409 = vpop.f32.mrb[0].mxu0
    %2410 = vdwg.mxu0
    %v2411 = vxor.u32 %v2323, 2147483648
    %v2412 = vxor.u32 %v2325, 2147483648
    %v2413 = vxor.u32 %v2405, 2147483648
    %v2414 = vxor.u32 %v2407, 2147483648
    %v2415 = vmul.f32 %v2411, 1.442695
    %v2416 = vpow.pop %v2415
    %v2417 = vmul.f32 %v2412, 1.442695
    %v2418 = vpow.pop %v2417
    %v2419 = vmul.f32 %v2413, 1.442695
    %v2420 = vpow.pop %v2419
    %v2421 = vmul.f32 %v2414, 1.442695
    %v2422 = vpow.pop %v2421
    %v2423 = vadd.f32 %v2416, 1.0
    %v2424 = vadd.f32 %v2418, 1.0
    %v2425 = vadd.f32 %v2420, 1.0
    %v2426 = vadd.f32 %v2422, 1.0
    %v2427 = vrcp.pop %v2423
    %v2428 = vmul.f32 1.0, %v2427
    %v2429 = vrcp.pop %v2424
    %v2430 = vmul.f32 1.0, %v2429
    %v2431 = vrcp.pop %v2425
    %v2432 = vmul.f32 1.0, %v2431
    %v2433 = vrcp.pop %v2426
    %v2434 = vmul.f32 1.0, %v2433
    %v2435 = vmul.f32 %v2323, %v2428
    %v2436 = vmul.f32 %v2325, %v2430
    %v2437 = vmul.f32 %v2405, %v2432
    %v2438 = vmul.f32 %v2407, %v2434
    %v2439 = vld [vmem:[#allocation5 + $0x20] sm:$0xff]
    %v2440 = vld [vmem:[#allocation5 + $0x28] sm:$0xff]
    %v2441 = vld [vmem:[#allocation5 + $0x30] sm:$0xff]
    %v2442 = vld [vmem:[#allocation5 + $0x38] sm:$0xff]
    %v2443 = vld [vmem:[#allocation5 + $0xe0] sm:$0xff]
    %v2444 = vld [vmem:[#allocation5 + $0xe8] sm:$0xff]
    %v2445 = vld [vmem:[#allocation5 + $0xf0] sm:$0xff]
    %v2446 = vld [vmem:[#allocation5 + $0xf8] sm:$0xff]
    %v2447 = vld [vmem:[#allocation5 + $0x1a0] sm:$0xff]
    %v2448 = vld [vmem:[#allocation5 + $0x1a8] sm:$0xff]
    %v2449 = vld [vmem:[#allocation5 + $0x1b0] sm:$0xff]
    %v2450 = vld [vmem:[#allocation5 + $0x1b8] sm:$0xff]
    %v2451 = vld [vmem:[#allocation5 + $0x260] sm:$0xff]
    %v2452 = vld [vmem:[#allocation5 + $0x268] sm:$0xff]
    %v2453 = vld [vmem:[#allocation5 + $0x270] sm:$0xff]
    %v2454 = vld [vmem:[#allocation5 + $0x278] sm:$0xff]
    %v2455 = vld [vmem:[#allocation5 + $0x320] sm:$0xff]
    %v2456 = vld [vmem:[#allocation5 + $0x328] sm:$0xff]
    %v2457 = vld [vmem:[#allocation5 + $0x330] sm:$0xff]
    %v2458 = vld [vmem:[#allocation5 + $0x338] sm:$0xff]
    %v2459 = vld [vmem:[#allocation5 + $0x3e0] sm:$0xff]
    %v2460 = vld [vmem:[#allocation5 + $0x3e8] sm:$0xff]
    %v2461 = vld [vmem:[#allocation5 + $0x3f0] sm:$0xff]
    %v2462 = vld [vmem:[#allocation5 + $0x3f8] sm:$0xff]
    %v2463 = vld [vmem:[#allocation5 + $0x4a0] sm:$0xff]
    %v2464 = vld [vmem:[#allocation5 + $0x4a8] sm:$0xff]
    %v2465 = vld [vmem:[#allocation5 + $0x4b0] sm:$0xff]
    %v2466 = vld [vmem:[#allocation5 + $0x4b8] sm:$0xff]
    %v2467 = vld [vmem:[#allocation5 + $0x560] sm:$0xff]
    %v2468 = vld [vmem:[#allocation5 + $0x568] sm:$0xff]
    %v2469 = vld [vmem:[#allocation5 + $0x570] sm:$0xff]
    %v2470 = vld [vmem:[#allocation5 + $0x578] sm:$0xff]
    %v2471 = vld [vmem:[#allocation5 + $0x620] sm:$0xff]
    %v2472 = vld [vmem:[#allocation5 + $0x628] sm:$0xff]
    %v2473 = vld [vmem:[#allocation5 + $0x630] sm:$0xff]
    %v2474 = vld [vmem:[#allocation5 + $0x638] sm:$0xff]
    %v2475 = vld [vmem:[#allocation5 + $0x6e0] sm:$0xff]
    %v2476 = vld [vmem:[#allocation5 + $0x6e8] sm:$0xff]
    %v2477 = vld [vmem:[#allocation5 + $0x6f0] sm:$0xff]
    %v2478 = vld [vmem:[#allocation5 + $0x6f8] sm:$0xff]
    %v2479 = vld [vmem:[#allocation5 + $0x7a0] sm:$0xff]
    %v2480 = vld [vmem:[#allocation5 + $0x7a8] sm:$0xff]
    %v2481 = vld [vmem:[#allocation5 + $0x7b0] sm:$0xff]
    %v2482 = vld [vmem:[#allocation5 + $0x7b8] sm:$0xff]
    %v2483 = vld [vmem:[#allocation5 + $0x860] sm:$0xff]
    %v2484 = vld [vmem:[#allocation5 + $0x868] sm:$0xff]
    %v2485 = vld [vmem:[#allocation5 + $0x870] sm:$0xff]
    %v2486 = vld [vmem:[#allocation5 + $0x878] sm:$0xff]
    %v2487 = vld [vmem:[#allocation5 + $0x920] sm:$0xff]
    %v2488 = vld [vmem:[#allocation5 + $0x928] sm:$0xff]
    %v2489 = vld [vmem:[#allocation5 + $0x930] sm:$0xff]
    %v2490 = vld [vmem:[#allocation5 + $0x938] sm:$0xff]
    %v2491 = vld [vmem:[#allocation5 + $0x9e0] sm:$0xff]
    %v2492 = vld [vmem:[#allocation5 + $0x9e8] sm:$0xff]
    %v2493 = vld [vmem:[#allocation5 + $0x9f0] sm:$0xff]
    %v2494 = vld [vmem:[#allocation5 + $0x9f8] sm:$0xff]
    %v2495 = vld [vmem:[#allocation5 + $0xaa0] sm:$0xff]
    %v2496 = vld [vmem:[#allocation5 + $0xaa8] sm:$0xff]
    %v2497 = vld [vmem:[#allocation5 + $0xab0] sm:$0xff]
    %v2498 = vld [vmem:[#allocation5 + $0xab8] sm:$0xff]
    %v2499 = vld [vmem:[#allocation5 + $0xb60] sm:$0xff]
    %v2500 = vld [vmem:[#allocation5 + $0xb68] sm:$0xff]
    %v2501 = vld [vmem:[#allocation5 + $0xb70] sm:$0xff]
    %v2502 = vld [vmem:[#allocation5 + $0xb78] sm:$0xff]
    %v2503 = vld [vmem:[#allocation5 + $0xc20] sm:$0xff]
    %v2504 = vld [vmem:[#allocation5 + $0xc28] sm:$0xff]
    %v2505 = vld [vmem:[#allocation5 + $0xc30] sm:$0xff]
    %v2506 = vld [vmem:[#allocation5 + $0xc38] sm:$0xff]
    %v2507 = vld [vmem:[#allocation5 + $0xce0] sm:$0xff]
    %v2508 = vld [vmem:[#allocation5 + $0xce8] sm:$0xff]
    %v2509 = vld [vmem:[#allocation5 + $0xcf0] sm:$0xff]
    %v2510 = vld [vmem:[#allocation5 + $0xcf8] sm:$0xff]
    %v2511 = vld [vmem:[#allocation5 + $0xda0] sm:$0xff]
    %v2512 = vld [vmem:[#allocation5 + $0xda8] sm:$0xff]
    %v2513 = vld [vmem:[#allocation5 + $0xdb0] sm:$0xff]
    %v2514 = vld [vmem:[#allocation5 + $0xdb8] sm:$0xff]
    %v2515 = vld [vmem:[#allocation5 + $0xe60] sm:$0xff]
    %v2516 = vld [vmem:[#allocation5 + $0xe68] sm:$0xff]
    %v2517 = vld [vmem:[#allocation5 + $0xe70] sm:$0xff]
    %v2518 = vld [vmem:[#allocation5 + $0xe78] sm:$0xff]
    %v2519 = vld [vmem:[#allocation5 + $0xf20] sm:$0xff]
    %v2520 = vld [vmem:[#allocation5 + $0xf28] sm:$0xff]
    %v2521 = vld [vmem:[#allocation5 + $0xf30] sm:$0xff]
    %v2522 = vld [vmem:[#allocation5 + $0xf38] sm:$0xff]
    %v2523 = vld [vmem:[#allocation5 + $0xfe0] sm:$0xff]
    %v2524 = vld [vmem:[#allocation5 + $0xfe8] sm:$0xff]
    %v2525 = vld [vmem:[#allocation5 + $0xff0] sm:$0xff]
    %v2526 = vld [vmem:[#allocation5 + $0xff8] sm:$0xff]
    %v2527 = vld [vmem:[#allocation5 + $0x10a0] sm:$0xff]
    %v2528 = vld [vmem:[#allocation5 + $0x10a8] sm:$0xff]
    %v2529 = vld [vmem:[#allocation5 + $0x10b0] sm:$0xff]
    %v2530 = vld [vmem:[#allocation5 + $0x10b8] sm:$0xff]
    %v2531 = vld [vmem:[#allocation5 + $0x1160] sm:$0xff]
    %v2532 = vld [vmem:[#allocation5 + $0x1168] sm:$0xff]
    %v2533 = vld [vmem:[#allocation5 + $0x1170] sm:$0xff]
    %v2534 = vld [vmem:[#allocation5 + $0x1178] sm:$0xff]
    %v2535 = vld [vmem:[#allocation5 + $0x1220] sm:$0xff]
    %v2536 = vld [vmem:[#allocation5 + $0x1228] sm:$0xff]
    %v2537 = vld [vmem:[#allocation5 + $0x1230] sm:$0xff]
    %v2538 = vld [vmem:[#allocation5 + $0x1238] sm:$0xff]
    %v2539 = vld [vmem:[#allocation5 + $0x12e0] sm:$0xff]
    %v2540 = vld [vmem:[#allocation5 + $0x12e8] sm:$0xff]
    %v2541 = vld [vmem:[#allocation5 + $0x12f0] sm:$0xff]
    %v2542 = vld [vmem:[#allocation5 + $0x12f8] sm:$0xff]
    %v2543 = vld [vmem:[#allocation5 + $0x13a0] sm:$0xff]
    %v2544 = vld [vmem:[#allocation5 + $0x13a8] sm:$0xff]
    %v2545 = vld [vmem:[#allocation5 + $0x13b0] sm:$0xff]
    %v2546 = vld [vmem:[#allocation5 + $0x13b8] sm:$0xff]
    %v2547 = vld [vmem:[#allocation5 + $0x1460] sm:$0xff]
    %v2548 = vld [vmem:[#allocation5 + $0x1468] sm:$0xff]
    %v2549 = vld [vmem:[#allocation5 + $0x1470] sm:$0xff]
    %v2550 = vld [vmem:[#allocation5 + $0x1478] sm:$0xff]
    %v2551 = vld [vmem:[#allocation5 + $0x1520] sm:$0xff]
    %v2552 = vld [vmem:[#allocation5 + $0x1528] sm:$0xff]
    %v2553 = vld [vmem:[#allocation5 + $0x1530] sm:$0xff]
    %v2554 = vld [vmem:[#allocation5 + $0x1538] sm:$0xff]
    %v2555 = vld [vmem:[#allocation5 + $0x15e0] sm:$0xff]
    %v2556 = vld [vmem:[#allocation5 + $0x15e8] sm:$0xff]
    %v2557 = vld [vmem:[#allocation5 + $0x15f0] sm:$0xff]
    %v2558 = vld [vmem:[#allocation5 + $0x15f8] sm:$0xff]
    %v2559 = vld [vmem:[#allocation5 + $0x16a0] sm:$0xff]
    %v2560 = vld [vmem:[#allocation5 + $0x16a8] sm:$0xff]
    %v2561 = vld [vmem:[#allocation5 + $0x16b0] sm:$0xff]
    %v2562 = vld [vmem:[#allocation5 + $0x16b8] sm:$0xff]
    %v2563 = vld [vmem:[#allocation5 + $0x1760] sm:$0xff]
    %v2564 = vld [vmem:[#allocation5 + $0x1768] sm:$0xff]
    %v2565 = vld [vmem:[#allocation5 + $0x1770] sm:$0xff]
    %v2566 = vld [vmem:[#allocation5 + $0x1778] sm:$0xff]
    %v2567 = vpack.c.bf16 %v2435, %v2435
    %v2568 = vpack.c.bf16 %v2436, %v2436
    %v2569 = vpack.c.bf16 %v2437, %v2437
    %v2570 = vpack.c.bf16 %v2438, %v2438
    %v2571 = vld [vmem:[#allocation7 + $0x16] sm:$0xf]
    %v2573 = vlaneseq
    %v2574 = vshrl.u32 %v2573, 7
    %v2575 = vsub.s32 0, %v2574
    %v2576 = vrot.slane %v2571, %v2575
    %v2577 = vlaneseq
    %v2578 = vshrl.u32 %v2577, 7
    %v2579 = vsub.s32 1, %v2578
    %v2580 = vrot.slane %v2571, %v2579
    %v2581 = vlaneseq
    %v2582 = vshrl.u32 %v2581, 7
    %v2583 = vsub.s32 2, %v2582
    %v2584 = vrot.slane %v2571, %v2583
    %v2585 = vlaneseq
    %v2586 = vshrl.u32 %v2585, 7
    %v2587 = vsub.s32 3, %v2586
    %v2588 = vrot.slane %v2571, %v2587
    %2593 = vmatprep.subr.bf16.mxu0 %v2440
    %2594 = vmatpush1.bf16.msra.mxu0 %v2439
    %2595 = vmatprep.subr.bf16.mxu0 %v2444
    %2596 = vmatpush1.bf16.msra.mxu0 %v2443
    %2597 = vmatprep.subr.bf16.mxu0 %v2448
    %2598 = vmatpush1.bf16.msra.mxu0 %v2447
    %2599 = vmatprep.subr.bf16.mxu0 %v2452
    %2600 = vmatpush1.bf16.msra.mxu0 %v2451
    %2601 = vmatprep.subr.bf16.mxu0 %v2456
    %2602 = vmatpush1.bf16.msra.mxu0 %v2455
    %2603 = vmatprep.subr.bf16.mxu0 %v2460
    %2604 = vmatpush1.bf16.msra.mxu0 %v2459
    %2605 = vmatprep.subr.bf16.mxu0 %v2464
    %2606 = vmatpush1.bf16.msra.mxu0 %v2463
    %2607 = vmatprep.subr.bf16.mxu0 %v2468
    %2608 = vmatpush1.bf16.msra.mxu0 %v2467
    %2609 = vmatprep.subr.bf16.mxu0 %v2472
    %2610 = vmatpush1.bf16.msra.mxu0 %v2471
    %2611 = vmatprep.subr.bf16.mxu0 %v2476
    %2612 = vmatpush1.bf16.msra.mxu0 %v2475
    %2613 = vmatprep.subr.bf16.mxu0 %v2480
    %2614 = vmatpush1.bf16.msra.mxu0 %v2479
    %2615 = vmatprep.subr.bf16.mxu0 %v2484
    %2616 = vmatpush1.bf16.msra.mxu0 %v2483
    %2617 = vmatprep.subr.bf16.mxu0 %v2488
    %2618 = vmatpush1.bf16.msra.mxu0 %v2487
    %2619 = vmatprep.subr.bf16.mxu0 %v2492
    %2620 = vmatpush1.bf16.msra.mxu0 %v2491
    %2621 = vmatprep.subr.bf16.mxu0 %v2496
    %2622 = vmatpush1.bf16.msra.mxu0 %v2495
    %2623 = vmatprep.subr.bf16.mxu0 %v2500
    %2624 = vmatpush1.bf16.msra.mxu0 %v2499
    %2625 = vmatprep.mubr.bf16.mxu0 %v2568
    %2626 = vmatmul.mubr.bf16.gmra.mrb[0].mxu0 %v2567
    %v2627 = vpop.f32.mrb[0].mxu0
    %v2628 = vadd.f32 %v2576, %v2627
    %v2629 = vpop.f32.mrb[0].mxu0
    %v2630 = vadd.f32 %v2580, %v2629
    %v2631 = vpop.f32.mrb[0].mxu0
    %v2632 = vpop.f32.mrb[0].mxu0
    %2633 = vdwg.mxu0
    %2634 = vmatprep.subr.bf16.mxu0 %v2504
    %2635 = vmatpush1.bf16.msra.mxu0 %v2503
    %2636 = vmatprep.subr.bf16.mxu0 %v2508
    %2637 = vmatpush1.bf16.msra.mxu0 %v2507
    %2638 = vmatprep.subr.bf16.mxu0 %v2512
    %2639 = vmatpush1.bf16.msra.mxu0 %v2511
    %2640 = vmatprep.subr.bf16.mxu0 %v2516
    %2641 = vmatpush1.bf16.msra.mxu0 %v2515
    %2642 = vmatprep.subr.bf16.mxu0 %v2520
    %2643 = vmatpush1.bf16.msra.mxu0 %v2519
    %2644 = vmatprep.subr.bf16.mxu0 %v2524
    %2645 = vmatpush1.bf16.msra.mxu0 %v2523
    %2646 = vmatprep.subr.bf16.mxu0 %v2528
    %2647 = vmatpush1.bf16.msra.mxu0 %v2527
    %2648 = vmatprep.subr.bf16.mxu0 %v2532
    %2649 = vmatpush1.bf16.msra.mxu0 %v2531
    %2650 = vmatprep.subr.bf16.mxu0 %v2536
    %2651 = vmatpush1.bf16.msra.mxu0 %v2535
    %2652 = vmatprep.subr.bf16.mxu0 %v2540
    %2653 = vmatpush1.bf16.msra.mxu0 %v2539
    %2654 = vmatprep.subr.bf16.mxu0 %v2544
    %2655 = vmatpush1.bf16.msra.mxu0 %v2543
    %2656 = vmatprep.subr.bf16.mxu0 %v2548
    %2657 = vmatpush1.bf16.msra.mxu0 %v2547
    %2658 = vmatprep.subr.bf16.mxu0 %v2552
    %2659 = vmatpush1.bf16.msra.mxu0 %v2551
    %2660 = vmatprep.subr.bf16.mxu0 %v2556
    %2661 = vmatpush1.bf16.msra.mxu0 %v2555
    %2662 = vmatprep.subr.bf16.mxu0 %v2560
    %2663 = vmatpush1.bf16.msra.mxu0 %v2559
    %2664 = vmatprep.subr.bf16.mxu0 %v2564
    %2665 = vmatpush1.bf16.msra.mxu0 %v2563
    %2666 = vmatprep.mubr.bf16.mxu0 %v2570
    %2667 = vmatmul.mubr.bf16.gmra.mrb[0].mxu0 %v2569
    %v2668 = vpop.f32.mrb[0].mxu0
    %v2669 = vadd.f32 %v2628, %v2668
    %v2670 = vpop.f32.mrb[0].mxu0
    %v2671 = vadd.f32 %v2630, %v2670
    %v2672 = vpop.f32.mrb[0].mxu0
    %v2673 = vpop.f32.mrb[0].mxu0
    %2674 = vdwg.mxu0
    %2675 = vmatprep.subr.bf16.mxu0 %v2442
    %2676 = vmatpush1.bf16.msra.mxu0 %v2441
    %2677 = vmatprep.subr.bf16.mxu0 %v2446
    %2678 = vmatpush1.bf16.msra.mxu0 %v2445
    %2679 = vmatprep.subr.bf16.mxu0 %v2450
    %2680 = vmatpush1.bf16.msra.mxu0 %v2449
    %2681 = vmatprep.subr.bf16.mxu0 %v2454
    %2682 = vmatpush1.bf16.msra.mxu0 %v2453
    %2683 = vmatprep.subr.bf16.mxu0 %v2458
    %2684 = vmatpush1.bf16.msra.mxu0 %v2457
    %2685 = vmatprep.subr.bf16.mxu0 %v2462
    %2686 = vmatpush1.bf16.msra.mxu0 %v2461
    %2687 = vmatprep.subr.bf16.mxu0 %v2466
    %2688 = vmatpush1.bf16.msra.mxu0 %v2465
    %2689 = vmatprep.subr.bf16.mxu0 %v2470
    %2690 = vmatpush1.bf16.msra.mxu0 %v2469
    %2691 = vmatprep.subr.bf16.mxu0 %v2474
    %2692 = vmatpush1.bf16.msra.mxu0 %v2473
    %2693 = vmatprep.subr.bf16.mxu0 %v2478
    %2694 = vmatpush1.bf16.msra.mxu0 %v2477
    %2695 = vmatprep.subr.bf16.mxu0 %v2482
    %2696 = vmatpush1.bf16.msra.mxu0 %v2481
    %2697 = vmatprep.subr.bf16.mxu0 %v2486
    %2698 = vmatpush1.bf16.msra.mxu0 %v2485
    %2699 = vmatprep.subr.bf16.mxu0 %v2490
    %2700 = vmatpush1.bf16.msra.mxu0 %v2489
    %2701 = vmatprep.subr.bf16.mxu0 %v2494
    %2702 = vmatpush1.bf16.msra.mxu0 %v2493
    %2703 = vmatprep.subr.bf16.mxu0 %v2498
    %2704 = vmatpush1.bf16.msra.mxu0 %v2497
    %2705 = vmatprep.subr.bf16.mxu0 %v2502
    %2706 = vmatpush1.bf16.msra.mxu0 %v2501
    %2707 = vmatprep.mubr.bf16.mxu0 %v2568
    %2708 = vmatmul.mubr.bf16.gmra.mrb[0].mxu0 %v2567
    %v2709 = vpop.f32.mrb[0].mxu0
    %v2710 = vadd.f32 %v2584, %v2709
    %v2711 = vpop.f32.mrb[0].mxu0
    %v2712 = vadd.f32 %v2588, %v2711
    %v2713 = vpop.f32.mrb[0].mxu0
    %v2714 = vpop.f32.mrb[0].mxu0
    %2715 = vdwg.mxu0
    %2716 = vmatprep.subr.bf16.mxu0 %v2506
    %2717 = vmatpush1.bf16.msra.mxu0 %v2505
    %2718 = vmatprep.subr.bf16.mxu0 %v2510
    %2719 = vmatpush1.bf16.msra.mxu0 %v2509
    %2720 = vmatprep.subr.bf16.mxu0 %v2514
    %2721 = vmatpush1.bf16.msra.mxu0 %v2513
    %2722 = vmatprep.subr.bf16.mxu0 %v2518
    %2723 = vmatpush1.bf16.msra.mxu0 %v2517
    %2724 = vmatprep.subr.bf16.mxu0 %v2522
    %2725 = vmatpush1.bf16.msra.mxu0 %v2521
    %2726 = vmatprep.subr.bf16.mxu0 %v2526
    %2727 = vmatpush1.bf16.msra.mxu0 %v2525
    %2728 = vmatprep.subr.bf16.mxu0 %v2530
    %2729 = vmatpush1.bf16.msra.mxu0 %v2529
    %2730 = vmatprep.subr.bf16.mxu0 %v2534
    %2731 = vmatpush1.bf16.msra.mxu0 %v2533
    %2732 = vmatprep.subr.bf16.mxu0 %v2538
    %2733 = vmatpush1.bf16.msra.mxu0 %v2537
    %2734 = vmatprep.subr.bf16.mxu0 %v2542
    %2735 = vmatpush1.bf16.msra.mxu0 %v2541
    %2736 = vmatprep.subr.bf16.mxu0 %v2546
    %2737 = vmatpush1.bf16.msra.mxu0 %v2545
    %2738 = vmatprep.subr.bf16.mxu0 %v2550
    %2739 = vmatpush1.bf16.msra.mxu0 %v2549
    %2740 = vmatprep.subr.bf16.mxu0 %v2554
    %2741 = vmatpush1.bf16.msra.mxu0 %v2553
    %2742 = vmatprep.subr.bf16.mxu0 %v2558
    %2743 = vmatpush1.bf16.msra.mxu0 %v2557
    %2744 = vmatprep.subr.bf16.mxu0 %v2562
    %2745 = vmatpush1.bf16.msra.mxu0 %v2561
    %2746 = vmatprep.subr.bf16.mxu0 %v2566
    %2747 = vmatpush1.bf16.msra.mxu0 %v2565
    %2748 = vmatprep.mubr.bf16.mxu0 %v2570
    %2749 = vmatmul.mubr.bf16.gmra.mrb[0].mxu0 %v2569
    %v2750 = vpop.f32.mrb[0].mxu0
    %v2751 = vadd.f32 %v2710, %v2750
    %v2752 = vpop.f32.mrb[0].mxu0
    %v2753 = vadd.f32 %v2712, %v2752
    %v2754 = vpop.f32.mrb[0].mxu0
    %v2755 = vpop.f32.mrb[0].mxu0
    %2756 = vdwg.mxu0
    %v2757 = vxor.u32 %v2669, 2147483648
    %v2758 = vxor.u32 %v2671, 2147483648
    %v2759 = vxor.u32 %v2751, 2147483648
    %v2760 = vxor.u32 %v2753, 2147483648
    %v2761 = vmul.f32 %v2757, 1.442695
    %v2762 = vpow.pop %v2761
    %v2763 = vmul.f32 %v2758, 1.442695
    %v2764 = vpow.pop %v2763
    %v2765 = vmul.f32 %v2759, 1.442695
    %v2766 = vpow.pop %v2765
    %v2767 = vmul.f32 %v2760, 1.442695
    %v2768 = vpow.pop %v2767
    %v2769 = vadd.f32 %v2762, 1.0
    %v2770 = vadd.f32 %v2764, 1.0
    %v2771 = vadd.f32 %v2766, 1.0
    %v2772 = vadd.f32 %v2768, 1.0
    %v2773 = vrcp.pop %v2769
    %v2774 = vmul.f32 1.0, %v2773
    %v2775 = vrcp.pop %v2770
    %v2776 = vmul.f32 1.0, %v2775
    %v2777 = vrcp.pop %v2771
    %v2778 = vmul.f32 1.0, %v2777
    %v2779 = vrcp.pop %v2772
    %v2780 = vmul.f32 1.0, %v2779
    %v2781 = vmul.f32 %v2669, %v2774
    %v2782 = vmul.f32 %v2671, %v2776
    %v2783 = vmul.f32 %v2751, %v2778
    %v2784 = vmul.f32 %v2753, %v2780
    %v2785 = vld [vmem:[#allocation5 + $0x40] sm:$0xff]
    %v2786 = vld [vmem:[#allocation5 + $0x48] sm:$0xff]
    %v2787 = vld [vmem:[#allocation5 + $0x50] sm:$0xff]
    %v2788 = vld [vmem:[#allocation5 + $0x58] sm:$0xff]
    %v2789 = vld [vmem:[#allocation5 + $0x60] sm:$0xff]
    %v2790 = vld [vmem:[#allocation5 + $0x68] sm:$0xff]
    %v2791 = vld [vmem:[#allocation5 + $0x70] sm:$0xff]
    %v2792 = vld [vmem:[#allocation5 + $0x100] sm:$0xff]
    %v2793 = vld [vmem:[#allocation5 + $0x108] sm:$0xff]
    %v2794 = vld [vmem:[#allocation5 + $0x110] sm:$0xff]
    %v2795 = vld [vmem:[#allocation5 + $0x118] sm:$0xff]
    %v2796 = vld [vmem:[#allocation5 + $0x120] sm:$0xff]
    %v2797 = vld [vmem:[#allocation5 + $0x128] sm:$0xff]
    %v2798 = vld [vmem:[#allocation5 + $0x130] sm:$0xff]
    %v2799 = vld [vmem:[#allocation5 + $0x1c0] sm:$0xff]
    %v2800 = vld [vmem:[#allocation5 + $0x1c8] sm:$0xff]
    %v2801 = vld [vmem:[#allocation5 + $0x1d0] sm:$0xff]
    %v2802 = vld [vmem:[#allocation5 + $0x1d8] sm:$0xff]
    %v2803 = vld [vmem:[#allocation5 + $0x1e0] sm:$0xff]
    %v2804 = vld [vmem:[#allocation5 + $0x1e8] sm:$0xff]
    %v2805 = vld [vmem:[#allocation5 + $0x1f0] sm:$0xff]
    %v2806 = vld [vmem:[#allocation5 + $0x280] sm:$0xff]
    %v2807 = vld [vmem:[#allocation5 + $0x288] sm:$0xff]
    %v2808 = vld [vmem:[#allocation5 + $0x290] sm:$0xff]
    %v2809 = vld [vmem:[#allocation5 + $0x298] sm:$0xff]
    %v2810 = vld [vmem:[#allocation5 + $0x2a0] sm:$0xff]
    %v2811 = vld [vmem:[#allocation5 + $0x2a8] sm:$0xff]
    %v2812 = vld [vmem:[#allocation5 + $0x2b0] sm:$0xff]
    %v2813 = vld [vmem:[#allocation5 + $0x340] sm:$0xff]
    %v2814 = vld [vmem:[#allocation5 + $0x348] sm:$0xff]
    %v2815 = vld [vmem:[#allocation5 + $0x350] sm:$0xff]
    %v2816 = vld [vmem:[#allocation5 + $0x358] sm:$0xff]
    %v2817 = vld [vmem:[#allocation5 + $0x360] sm:$0xff]
    %v2818 = vld [vmem:[#allocation5 + $0x368] sm:$0xff]
    %v2819 = vld [vmem:[#allocation5 + $0x370] sm:$0xff]
    %v2820 = vld [vmem:[#allocation5 + $0x400] sm:$0xff]
    %v2821 = vld [vmem:[#allocation5 + $0x408] sm:$0xff]
    %v2822 = vld [vmem:[#allocation5 + $0x410] sm:$0xff]
    %v2823 = vld [vmem:[#allocation5 + $0x418] sm:$0xff]
    %v2824 = vld [vmem:[#allocation5 + $0x420] sm:$0xff]
    %v2825 = vld [vmem:[#allocation5 + $0x428] sm:$0xff]
    %v2826 = vld [vmem:[#allocation5 + $0x430] sm:$0xff]
    %v2827 = vld [vmem:[#allocation5 + $0x4c0] sm:$0xff]
    %v2828 = vld [vmem:[#allocation5 + $0x4c8] sm:$0xff]
    %v2829 = vld [vmem:[#allocation5 + $0x4d0] sm:$0xff]
    %v2830 = vld [vmem:[#allocation5 + $0x4d8] sm:$0xff]
    %v2831 = vld [vmem:[#allocation5 + $0x4e0] sm:$0xff]
    %v2832 = vld [vmem:[#allocation5 + $0x4e8] sm:$0xff]
    %v2833 = vld [vmem:[#allocation5 + $0x4f0] sm:$0xff]
    %v2834 = vld [vmem:[#allocation5 + $0x580] sm:$0xff]
    %v2835 = vld [vmem:[#allocation5 + $0x588] sm:$0xff]
    %v2836 = vld [vmem:[#allocation5 + $0x590] sm:$0xff]
    %v2837 = vld [vmem:[#allocation5 + $0x598] sm:$0xff]
    %v2838 = vld [vmem:[#allocation5 + $0x5a0] sm:$0xff]
    %v2839 = vld [vmem:[#allocation5 + $0x5a8] sm:$0xff]
    %v2840 = vld [vmem:[#allocation5 + $0x5b0] sm:$0xff]
    %v2841 = vld [vmem:[#allocation5 + $0x640] sm:$0xff]
    %v2842 = vld [vmem:[#allocation5 + $0x648] sm:$0xff]
    %v2843 = vld [vmem:[#allocation5 + $0x650] sm:$0xff]
    %v2844 = vld [vmem:[#allocation5 + $0x658] sm:$0xff]
    %v2845 = vld [vmem:[#allocation5 + $0x660] sm:$0xff]
    %v2846 = vld [vmem:[#allocation5 + $0x668] sm:$0xff]
    %v2847 = vld [vmem:[#allocation5 + $0x670] sm:$0xff]
    %v2848 = vld [vmem:[#allocation5 + $0x700] sm:$0xff]
    %v2849 = vld [vmem:[#allocation5 + $0x708] sm:$0xff]
    %v2850 = vld [vmem:[#allocation5 + $0x710] sm:$0xff]
    %v2851 = vld [vmem:[#allocation5 + $0x718] sm:$0xff]
    %v2852 = vld [vmem:[#allocation5 + $0x720] sm:$0xff]
    %v2853 = vld [vmem:[#allocation5 + $0x728] sm:$0xff]
    %v2854 = vld [vmem:[#allocation5 + $0x730] sm:$0xff]
    %v2855 = vld [vmem:[#allocation5 + $0x7c0] sm:$0xff]
    %v2856 = vld [vmem:[#allocation5 + $0x7c8] sm:$0xff]
    %v2857 = vld [vmem:[#allocation5 + $0x7d0] sm:$0xff]
    %v2858 = vld [vmem:[#allocation5 + $0x7d8] sm:$0xff]
    %v2859 = vld [vmem:[#allocation5 + $0x7e0] sm:$0xff]
    %v2860 = vld [vmem:[#allocation5 + $0x7e8] sm:$0xff]
    %v2861 = vld [vmem:[#allocation5 + $0x7f0] sm:$0xff]
    %v2862 = vld [vmem:[#allocation5 + $0x880] sm:$0xff]
    %v2863 = vld [vmem:[#allocation5 + $0x888] sm:$0xff]
    %v2864 = vld [vmem:[#allocation5 + $0x890] sm:$0xff]
    %v2865 = vld [vmem:[#allocation5 + $0x898] sm:$0xff]
    %v2866 = vld [vmem:[#allocation5 + $0x8a0] sm:$0xff]
    %v2867 = vld [vmem:[#allocation5 + $0x8a8] sm:$0xff]
    %v2868 = vld [vmem:[#allocation5 + $0x8b0] sm:$0xff]
    %v2869 = vld [vmem:[#allocation5 + $0x940] sm:$0xff]
    %v2870 = vld [vmem:[#allocation5 + $0x948] sm:$0xff]
    %v2871 = vld [vmem:[#allocation5 + $0x950] sm:$0xff]
    %v2872 = vld [vmem:[#allocation5 + $0x958] sm:$0xff]
    %v2873 = vld [vmem:[#allocation5 + $0x960] sm:$0xff]
    %v2874 = vld [vmem:[#allocation5 + $0x968] sm:$0xff]
    %v2875 = vld [vmem:[#allocation5 + $0x970] sm:$0xff]
    %v2876 = vld [vmem:[#allocation5 + $0xa00] sm:$0xff]
    %v2877 = vld [vmem:[#allocation5 + $0xa08] sm:$0xff]
    %v2878 = vld [vmem:[#allocation5 + $0xa10] sm:$0xff]
    %v2879 = vld [vmem:[#allocation5 + $0xa18] sm:$0xff]
    %v2880 = vld [vmem:[#allocation5 + $0xa20] sm:$0xff]
    %v2881 = vld [vmem:[#allocation5 + $0xa28] sm:$0xff]
    %v2882 = vld [vmem:[#allocation5 + $0xa30] sm:$0xff]
    %v2883 = vld [vmem:[#allocation5 + $0xac0] sm:$0xff]
    %v2884 = vld [vmem:[#allocation5 + $0xac8] sm:$0xff]
    %v2885 = vld [vmem:[#allocation5 + $0xad0] sm:$0xff]
    %v2886 = vld [vmem:[#allocation5 + $0xad8] sm:$0xff]
    %v2887 = vld [vmem:[#allocation5 + $0xae0] sm:$0xff]
    %v2888 = vld [vmem:[#allocation5 + $0xae8] sm:$0xff]
    %v2889 = vld [vmem:[#allocation5 + $0xaf0] sm:$0xff]
    %v2890 = vld [vmem:[#allocation5 + $0xb80] sm:$0xff]
    %v2891 = vld [vmem:[#allocation5 + $0xb88] sm:$0xff]
    %v2892 = vld [vmem:[#allocation5 + $0xb90] sm:$0xff]
    %v2893 = vld [vmem:[#allocation5 + $0xb98] sm:$0xff]
    %v2894 = vld [vmem:[#allocation5 + $0xba0] sm:$0xff]
    %v2895 = vld [vmem:[#allocation5 + $0xba8] sm:$0xff]
    %v2896 = vld [vmem:[#allocation5 + $0xbb0] sm:$0xff]
    %v2897 = vld [vmem:[#allocation5 + $0xc40] sm:$0xff]
    %v2898 = vld [vmem:[#allocation5 + $0xc48] sm:$0xff]
    %v2899 = vld [vmem:[#allocation5 + $0xc50] sm:$0xff]
    %v2900 = vld [vmem:[#allocation5 + $0xc58] sm:$0xff]
    %v2901 = vld [vmem:[#allocation5 + $0xc60] sm:$0xff]
    %v2902 = vld [vmem:[#allocation5 + $0xc68] sm:$0xff]
    %v2903 = vld [vmem:[#allocation5 + $0xc70] sm:$0xff]
    %v2904 = vld [vmem:[#allocation5 + $0xd00] sm:$0xff]
    %v2905 = vld [vmem:[#allocation5 + $0xd08] sm:$0xff]
    %v2906 = vld [vmem:[#allocation5 + $0xd10] sm:$0xff]
    %v2907 = vld [vmem:[#allocation5 + $0xd18] sm:$0xff]
    %v2908 = vld [vmem:[#allocation5 + $0xd20] sm:$0xff]
    %v2909 = vld [vmem:[#allocation5 + $0xd28] sm:$0xff]
    %v2910 = vld [vmem:[#allocation5 + $0xd30] sm:$0xff]
    %v2911 = vld [vmem:[#allocation5 + $0xdc0] sm:$0xff]
    %v2912 = vld [vmem:[#allocation5 + $0xdc8] sm:$0xff]
    %v2913 = vld [vmem:[#allocation5 + $0xdd0] sm:$0xff]
    %v2914 = vld [vmem:[#allocation5 + $0xdd8] sm:$0xff]
    %v2915 = vld [vmem:[#allocation5 + $0xde0] sm:$0xff]
    %v2916 = vld [vmem:[#allocation5 + $0xde8] sm:$0xff]
    %v2917 = vld [vmem:[#allocation5 + $0xdf0] sm:$0xff]
    %v2918 = vld [vmem:[#allocation5 + $0xe80] sm:$0xff]
    %v2919 = vld [vmem:[#allocation5 + $0xe88] sm:$0xff]
    %v2920 = vld [vmem:[#allocation5 + $0xe90] sm:$0xff]
    %v2921 = vld [vmem:[#allocation5 + $0xe98] sm:$0xff]
    %v2922 = vld [vmem:[#allocation5 + $0xea0] sm:$0xff]
    %v2923 = vld [vmem:[#allocation5 + $0xea8] sm:$0xff]
    %v2924 = vld [vmem:[#allocation5 + $0xeb0] sm:$0xff]
    %v2925 = vld [vmem:[#allocation5 + $0xf40] sm:$0xff]
    %v2926 = vld [vmem:[#allocation5 + $0xf48] sm:$0xff]
    %v2927 = vld [vmem:[#allocation5 + $0xf50] sm:$0xff]
    %v2928 = vld [vmem:[#allocation5 + $0xf58] sm:$0xff]
    %v2929 = vld [vmem:[#allocation5 + $0xf60] sm:$0xff]
    %v2930 = vld [vmem:[#allocation5 + $0xf68] sm:$0xff]
    %v2931 = vld [vmem:[#allocation5 + $0xf70] sm:$0xff]
    %v2932 = vld [vmem:[#allocation5 + $0x1000] sm:$0xff]
    %v2933 = vld [vmem:[#allocation5 + $0x1008] sm:$0xff]
    %v2934 = vld [vmem:[#allocation5 + $0x1010] sm:$0xff]
    %v2935 = vld [vmem:[#allocation5 + $0x1018] sm:$0xff]
    %v2936 = vld [vmem:[#allocation5 + $0x1020] sm:$0xff]
    %v2937 = vld [vmem:[#allocation5 + $0x1028] sm:$0xff]
    %v2938 = vld [vmem:[#allocation5 + $0x1030] sm:$0xff]
    %v2939 = vld [vmem:[#allocation5 + $0x10c0] sm:$0xff]
    %v2940 = vld [vmem:[#allocation5 + $0x10c8] sm:$0xff]
    %v2941 = vld [vmem:[#allocation5 + $0x10d0] sm:$0xff]
    %v2942 = vld [vmem:[#allocation5 + $0x10d8] sm:$0xff]
    %v2943 = vld [vmem:[#allocation5 + $0x10e0] sm:$0xff]
    %v2944 = vld [vmem:[#allocation5 + $0x10e8] sm:$0xff]
    %v2945 = vld [vmem:[#allocation5 + $0x10f0] sm:$0xff]
    %v2946 = vld [vmem:[#allocation5 + $0x1180] sm:$0xff]
    %v2947 = vld [vmem:[#allocation5 + $0x1188] sm:$0xff]
    %v2948 = vld [vmem:[#allocation5 + $0x1190] sm:$0xff]
    %v2949 = vld [vmem:[#allocation5 + $0x1198] sm:$0xff]
    %v2950 = vld [vmem:[#allocation5 + $0x11a0] sm:$0xff]
    %v2951 = vld [vmem:[#allocation5 + $0x11a8] sm:$0xff]
    %v2952 = vld [vmem:[#allocation5 + $0x11b0] sm:$0xff]
    %v2953 = vld [vmem:[#allocation5 + $0x1240] sm:$0xff]
    %v2954 = vld [vmem:[#allocation5 + $0x1248] sm:$0xff]
    %v2955 = vld [vmem:[#allocation5 + $0x1250] sm:$0xff]
    %v2956 = vld [vmem:[#allocation5 + $0x1258] sm:$0xff]
    %v2957 = vld [vmem:[#allocation5 + $0x1260] sm:$0xff]
    %v2958 = vld [vmem:[#allocation5 + $0x1268] sm:$0xff]
    %v2959 = vld [vmem:[#allocation5 + $0x1270] sm:$0xff]
    %v2960 = vld [vmem:[#allocation5 + $0x1300] sm:$0xff]
    %v2961 = vld [vmem:[#allocation5 + $0x1308] sm:$0xff]
    %v2962 = vld [vmem:[#allocation5 + $0x1310] sm:$0xff]
    %v2963 = vld [vmem:[#allocation5 + $0x1318] sm:$0xff]
    %v2964 = vld [vmem:[#allocation5 + $0x1320] sm:$0xff]
    %v2965 = vld [vmem:[#allocation5 + $0x1328] sm:$0xff]
    %v2966 = vld [vmem:[#allocation5 + $0x1330] sm:$0xff]
    %v2967 = vld [vmem:[#allocation5 + $0x13c0] sm:$0xff]
    %v2968 = vld [vmem:[#allocation5 + $0x13c8] sm:$0xff]
    %v2969 = vld [vmem:[#allocation5 + $0x13d0] sm:$0xff]
    %v2970 = vld [vmem:[#allocation5 + $0x13d8] sm:$0xff]
    %v2971 = vld [vmem:[#allocation5 + $0x13e0] sm:$0xff]
    %v2972 = vld [vmem:[#allocation5 + $0x13e8] sm:$0xff]
    %v2973 = vld [vmem:[#allocation5 + $0x13f0] sm:$0xff]
    %v2974 = vld [vmem:[#allocation5 + $0x1480] sm:$0xff]
    %v2975 = vld [vmem:[#allocation5 + $0x1488] sm:$0xff]
    %v2976 = vld [vmem:[#allocation5 + $0x1490] sm:$0xff]
    %v2977 = vld [vmem:[#allocation5 + $0x1498] sm:$0xff]
    %v2978 = vld [vmem:[#allocation5 + $0x14a0] sm:$0xff]
    %v2979 = vld [vmem:[#allocation5 + $0x14a8] sm:$0xff]
    %v2980 = vld [vmem:[#allocation5 + $0x14b0] sm:$0xff]
    %v2981 = vld [vmem:[#allocation5 + $0x1540] sm:$0xff]
    %v2982 = vld [vmem:[#allocation5 + $0x1548] sm:$0xff]
    %v2983 = vld [vmem:[#allocation5 + $0x1550] sm:$0xff]
    %v2984 = vld [vmem:[#allocation5 + $0x1558] sm:$0xff]
    %v2985 = vld [vmem:[#allocation5 + $0x1560] sm:$0xff]
    %v2986 = vld [vmem:[#allocation5 + $0x1568] sm:$0xff]
    %v2987 = vld [vmem:[#allocation5 + $0x1570] sm:$0xff]
    %v2988 = vld [vmem:[#allocation5 + $0x1600] sm:$0xff]
    %v2989 = vld [vmem:[#allocation5 + $0x1608] sm:$0xff]
    %v2990 = vld [vmem:[#allocation5 + $0x1610] sm:$0xff]
    %v2991 = vld [vmem:[#allocation5 + $0x1618] sm:$0xff]
    %v2992 = vld [vmem:[#allocation5 + $0x1620] sm:$0xff]
    %v2993 = vld [vmem:[#allocation5 + $0x1628] sm:$0xff]
    %v2994 = vld [vmem:[#allocation5 + $0x1630] sm:$0xff]
    %v2995 = vld [vmem:[#allocation5 + $0x16c0] sm:$0xff]
    %v2996 = vld [vmem:[#allocation5 + $0x16c8] sm:$0xff]
    %v2997 = vld [vmem:[#allocation5 + $0x16d0] sm:$0xff]
    %v2998 = vld [vmem:[#allocation5 + $0x16d8] sm:$0xff]
    %v2999 = vld [vmem:[#allocation5 + $0x16e0] sm:$0xff]
    %v3000 = vld [vmem:[#allocation5 + $0x16e8] sm:$0xff]
    %v3001 = vld [vmem:[#allocation5 + $0x16f0] sm:$0xff]
    %v3002 = vld [vmem:[#allocation5 + $0x1780] sm:$0xff]
    %v3003 = vld [vmem:[#allocation5 + $0x1788] sm:$0xff]
    %v3004 = vld [vmem:[#allocation5 + $0x1790] sm:$0xff]
    %v3005 = vld [vmem:[#allocation5 + $0x1798] sm:$0xff]
    %v3006 = vld [vmem:[#allocation5 + $0x17a0] sm:$0xff]
    %v3007 = vld [vmem:[#allocation5 + $0x17a8] sm:$0xff]
    %v3008 = vld [vmem:[#allocation5 + $0x17b0] sm:$0xff]
    %v3009 = vpack.c.bf16 %v2781, %v2781
    %v3010 = vpack.c.bf16 %v2782, %v2782
    %v3011 = vpack.c.bf16 %v2783, %v2783
    %v3012 = vpack.c.bf16 %v2784, %v2784
    %v3013 = vld [vmem:[#allocation7 + $0x1a] sm:$0xff]
    %v3015 = vlaneseq
    %v3016 = vshrl.u32 %v3015, 7
    %v3017 = vsub.s32 0, %v3016
    %v3018 = vrot.slane %v3013, %v3017
    %v3019 = vlaneseq
    %v3020 = vshrl.u32 %v3019, 7
    %v3021 = vsub.s32 1, %v3020
    %v3022 = vrot.slane %v3013, %v3021
    %v3023 = vlaneseq
    %v3024 = vshrl.u32 %v3023, 7
    %v3025 = vsub.s32 2, %v3024
    %v3026 = vrot.slane %v3013, %v3025
    %v3027 = vlaneseq
    %v3028 = vshrl.u32 %v3027, 7
    %v3029 = vsub.s32 3, %v3028
    %v3030 = vrot.slane %v3013, %v3029
    %v3031 = vlaneseq
    %v3032 = vshrl.u32 %v3031, 7
    %v3033 = vsub.s32 4, %v3032
    %v3034 = vrot.slane %v3013, %v3033
    %v3035 = vlaneseq
    %v3036 = vshrl.u32 %v3035, 7
    %v3037 = vsub.s32 5, %v3036
    %v3038 = vrot.slane %v3013, %v3037
    %v3039 = vlaneseq
    %v3040 = vshrl.u32 %v3039, 7
    %v3041 = vsub.s32 6, %v3040
    %v3042 = vrot.slane %v3013, %v3041
    %3050 = vmatprep.subr.bf16.mxu0 %v2786
    %3051 = vmatpush1.bf16.msra.mxu0 %v2785
    %3052 = vmatprep.subr.bf16.mxu0 %v2793
    %3053 = vmatpush1.bf16.msra.mxu0 %v2792
    %3054 = vmatprep.subr.bf16.mxu0 %v2800
    %3055 = vmatpush1.bf16.msra.mxu0 %v2799
    %3056 = vmatprep.subr.bf16.mxu0 %v2807
    %3057 = vmatpush1.bf16.msra.mxu0 %v2806
    %3058 = vmatprep.subr.bf16.mxu0 %v2814
    %3059 = vmatpush1.bf16.msra.mxu0 %v2813
    %3060 = vmatprep.subr.bf16.mxu0 %v2821
    %3061 = vmatpush1.bf16.msra.mxu0 %v2820
    %3062 = vmatprep.subr.bf16.mxu0 %v2828
    %3063 = vmatpush1.bf16.msra.mxu0 %v2827
    %3064 = vmatprep.subr.bf16.mxu0 %v2835
    %3065 = vmatpush1.bf16.msra.mxu0 %v2834
    %3066 = vmatprep.subr.bf16.mxu0 %v2842
    %3067 = vmatpush1.bf16.msra.mxu0 %v2841
    %3068 = vmatprep.subr.bf16.mxu0 %v2849
    %3069 = vmatpush1.bf16.msra.mxu0 %v2848
    %3070 = vmatprep.subr.bf16.mxu0 %v2856
    %3071 = vmatpush1.bf16.msra.mxu0 %v2855
    %3072 = vmatprep.subr.bf16.mxu0 %v2863
    %3073 = vmatpush1.bf16.msra.mxu0 %v2862
    %3074 = vmatprep.subr.bf16.mxu0 %v2870
    %3075 = vmatpush1.bf16.msra.mxu0 %v2869
    %3076 = vmatprep.subr.bf16.mxu0 %v2877
    %3077 = vmatpush1.bf16.msra.mxu0 %v2876
    %3078 = vmatprep.subr.bf16.mxu0 %v2884
    %3079 = vmatpush1.bf16.msra.mxu0 %v2883
    %3080 = vmatprep.subr.bf16.mxu0 %v2891
    %3081 = vmatpush1.bf16.msra.mxu0 %v2890
    %3082 = vmatprep.mubr.bf16.mxu0 %v3010
    %3083 = vmatmul.mubr.bf16.gmra.mrb[0].mxu0 %v3009
    %v3084 = vpop.f32.mrb[0].mxu0
    %v3085 = vadd.f32 %v3018, %v3084
    %v3086 = vpop.f32.mrb[0].mxu0
    %v3087 = vadd.f32 %v3022, %v3086
    %v3088 = vpop.f32.mrb[0].mxu0
    %v3089 = vpop.f32.mrb[0].mxu0
    %3090 = vdwg.mxu0
    %3091 = vmatprep.subr.bf16.mxu0 %v2898
    %3092 = vmatpush1.bf16.msra.mxu0 %v2897
    %3093 = vmatprep.subr.bf16.mxu0 %v2905
    %3094 = vmatpush1.bf16.msra.mxu0 %v2904
    %3095 = vmatprep.subr.bf16.mxu0 %v2912
    %3096 = vmatpush1.bf16.msra.mxu0 %v2911
    %3097 = vmatprep.subr.bf16.mxu0 %v2919
    %3098 = vmatpush1.bf16.msra.mxu0 %v2918
    %3099 = vmatprep.subr.bf16.mxu0 %v2926
    %3100 = vmatpush1.bf16.msra.mxu0 %v2925
    %3101 = vmatprep.subr.bf16.mxu0 %v2933
    %3102 = vmatpush1.bf16.msra.mxu0 %v2932
    %3103 = vmatprep.subr.bf16.mxu0 %v2940
    %3104 = vmatpush1.bf16.msra.mxu0 %v2939
    %3105 = vmatprep.subr.bf16.mxu0 %v2947
    %3106 = vmatpush1.bf16.msra.mxu0 %v2946
    %3107 = vmatprep.subr.bf16.mxu0 %v2954
    %3108 = vmatpush1.bf16.msra.mxu0 %v2953
    %3109 = vmatprep.subr.bf16.mxu0 %v2961
    %3110 = vmatpush1.bf16.msra.mxu0 %v2960
    %3111 = vmatprep.subr.bf16.mxu0 %v2968
    %3112 = vmatpush1.bf16.msra.mxu0 %v2967
    %3113 = vmatprep.subr.bf16.mxu0 %v2975
    %3114 = vmatpush1.bf16.msra.mxu0 %v2974
    %3115 = vmatprep.subr.bf16.mxu0 %v2982
    %3116 = vmatpush1.bf16.msra.mxu0 %v2981
    %3117 = vmatprep.subr.bf16.mxu0 %v2989
    %3118 = vmatpush1.bf16.msra.mxu0 %v2988
    %3119 = vmatprep.subr.bf16.mxu0 %v2996
    %3120 = vmatpush1.bf16.msra.mxu0 %v2995
    %3121 = vmatprep.subr.bf16.mxu0 %v3003
    %3122 = vmatpush1.bf16.msra.mxu0 %v3002
    %3123 = vmatprep.mubr.bf16.mxu0 %v3012
    %3124 = vmatmul.mubr.bf16.gmra.mrb[0].mxu0 %v3011
    %v3125 = vpop.f32.mrb[0].mxu0
    %v3126 = vadd.f32 %v3085, %v3125
    %v3127 = vpop.f32.mrb[0].mxu0
    %v3128 = vadd.f32 %v3087, %v3127
    %v3129 = vpop.f32.mrb[0].mxu0
    %v3130 = vpop.f32.mrb[0].mxu0
    %3131 = vdwg.mxu0
    %3132 = vmatprep.subr.bf16.mxu0 %v2788
    %3133 = vmatpush1.bf16.msra.mxu0 %v2787
    %3134 = vmatprep.subr.bf16.mxu0 %v2795
    %3135 = vmatpush1.bf16.msra.mxu0 %v2794
    %3136 = vmatprep.subr.bf16.mxu0 %v2802
    %3137 = vmatpush1.bf16.msra.mxu0 %v2801
    %3138 = vmatprep.subr.bf16.mxu0 %v2809
    %3139 = vmatpush1.bf16.msra.mxu0 %v2808
    %3140 = vmatprep.subr.bf16.mxu0 %v2816
    %3141 = vmatpush1.bf16.msra.mxu0 %v2815
    %3142 = vmatprep.subr.bf16.mxu0 %v2823
    %3143 = vmatpush1.bf16.msra.mxu0 %v2822
    %3144 = vmatprep.subr.bf16.mxu0 %v2830
    %3145 = vmatpush1.bf16.msra.mxu0 %v2829
    %3146 = vmatprep.subr.bf16.mxu0 %v2837
    %3147 = vmatpush1.bf16.msra.mxu0 %v2836
    %3148 = vmatprep.subr.bf16.mxu0 %v2844
    %3149 = vmatpush1.bf16.msra.mxu0 %v2843
    %3150 = vmatprep.subr.bf16.mxu0 %v2851
    %3151 = vmatpush1.bf16.msra.mxu0 %v2850
    %3152 = vmatprep.subr.bf16.mxu0 %v2858
    %3153 = vmatpush1.bf16.msra.mxu0 %v2857
    %3154 = vmatprep.subr.bf16.mxu0 %v2865
    %3155 = vmatpush1.bf16.msra.mxu0 %v2864
    %3156 = vmatprep.subr.bf16.mxu0 %v2872
    %3157 = vmatpush1.bf16.msra.mxu0 %v2871
    %3158 = vmatprep.subr.bf16.mxu0 %v2879
    %3159 = vmatpush1.bf16.msra.mxu0 %v2878
    %3160 = vmatprep.subr.bf16.mxu0 %v2886
    %3161 = vmatpush1.bf16.msra.mxu0 %v2885
    %3162 = vmatprep.subr.bf16.mxu0 %v2893
    %3163 = vmatpush1.bf16.msra.mxu0 %v2892
    %3164 = vmatprep.mubr.bf16.mxu0 %v3010
    %3165 = vmatmul.mubr.bf16.gmra.mrb[0].mxu0 %v3009
    %v3166 = vpop.f32.mrb[0].mxu0
    %v3167 = vadd.f32 %v3026, %v3166
    %v3168 = vpop.f32.mrb[0].mxu0
    %v3169 = vadd.f32 %v3030, %v3168
    %v3170 = vpop.f32.mrb[0].mxu0
    %v3171 = vpop.f32.mrb[0].mxu0
    %3172 = vdwg.mxu0
    %3173 = vmatprep.subr.bf16.mxu0 %v2900
    %3174 = vmatpush1.bf16.msra.mxu0 %v2899
    %3175 = vmatprep.subr.bf16.mxu0 %v2907
    %3176 = vmatpush1.bf16.msra.mxu0 %v2906
    %3177 = vmatprep.subr.bf16.mxu0 %v2914
    %3178 = vmatpush1.bf16.msra.mxu0 %v2913
    %3179 = vmatprep.subr.bf16.mxu0 %v2921
    %3180 = vmatpush1.bf16.msra.mxu0 %v2920
    %3181 = vmatprep.subr.bf16.mxu0 %v2928
    %3182 = vmatpush1.bf16.msra.mxu0 %v2927
    %3183 = vmatprep.subr.bf16.mxu0 %v2935
    %3184 = vmatpush1.bf16.msra.mxu0 %v2934
    %3185 = vmatprep.subr.bf16.mxu0 %v2942
    %3186 = vmatpush1.bf16.msra.mxu0 %v2941
    %3187 = vmatprep.subr.bf16.mxu0 %v2949
    %3188 = vmatpush1.bf16.msra.mxu0 %v2948
    %3189 = vmatprep.subr.bf16.mxu0 %v2956
    %3190 = vmatpush1.bf16.msra.mxu0 %v2955
    %3191 = vmatprep.subr.bf16.mxu0 %v2963
    %3192 = vmatpush1.bf16.msra.mxu0 %v2962
    %3193 = vmatprep.subr.bf16.mxu0 %v2970
    %3194 = vmatpush1.bf16.msra.mxu0 %v2969
    %3195 = vmatprep.subr.bf16.mxu0 %v2977
    %3196 = vmatpush1.bf16.msra.mxu0 %v2976
    %3197 = vmatprep.subr.bf16.mxu0 %v2984
    %3198 = vmatpush1.bf16.msra.mxu0 %v2983
    %3199 = vmatprep.subr.bf16.mxu0 %v2991
    %3200 = vmatpush1.bf16.msra.mxu0 %v2990
    %3201 = vmatprep.subr.bf16.mxu0 %v2998
    %3202 = vmatpush1.bf16.msra.mxu0 %v2997
    %3203 = vmatprep.subr.bf16.mxu0 %v3005
    %3204 = vmatpush1.bf16.msra.mxu0 %v3004
    %3205 = vmatprep.mubr.bf16.mxu0 %v3012
    %3206 = vmatmul.mubr.bf16.gmra.mrb[0].mxu0 %v3011
    %v3207 = vpop.f32.mrb[0].mxu0
    %v3208 = vadd.f32 %v3167, %v3207
    %v3209 = vpop.f32.mrb[0].mxu0
    %v3210 = vadd.f32 %v3169, %v3209
    %v3211 = vpop.f32.mrb[0].mxu0
    %v3212 = vpop.f32.mrb[0].mxu0
    %3213 = vdwg.mxu0
    %3214 = vmatprep.subr.bf16.mxu0 %v2790
    %3215 = vmatpush1.bf16.msra.mxu0 %v2789
    %3216 = vmatprep.subr.bf16.mxu0 %v2797
    %3217 = vmatpush1.bf16.msra.mxu0 %v2796
    %3218 = vmatprep.subr.bf16.mxu0 %v2804
    %3219 = vmatpush1.bf16.msra.mxu0 %v2803
    %3220 = vmatprep.subr.bf16.mxu0 %v2811
    %3221 = vmatpush1.bf16.msra.mxu0 %v2810
    %3222 = vmatprep.subr.bf16.mxu0 %v2818
    %3223 = vmatpush1.bf16.msra.mxu0 %v2817
    %3224 = vmatprep.subr.bf16.mxu0 %v2825
    %3225 = vmatpush1.bf16.msra.mxu0 %v2824
    %3226 = vmatprep.subr.bf16.mxu0 %v2832
    %3227 = vmatpush1.bf16.msra.mxu0 %v2831
    %3228 = vmatprep.subr.bf16.mxu0 %v2839
    %3229 = vmatpush1.bf16.msra.mxu0 %v2838
    %3230 = vmatprep.subr.bf16.mxu0 %v2846
    %3231 = vmatpush1.bf16.msra.mxu0 %v2845
    %3232 = vmatprep.subr.bf16.mxu0 %v2853
    %3233 = vmatpush1.bf16.msra.mxu0 %v2852
    %3234 = vmatprep.subr.bf16.mxu0 %v2860
    %3235 = vmatpush1.bf16.msra.mxu0 %v2859
    %3236 = vmatprep.subr.bf16.mxu0 %v2867
    %3237 = vmatpush1.bf16.msra.mxu0 %v2866
    %3238 = vmatprep.subr.bf16.mxu0 %v2874
    %3239 = vmatpush1.bf16.msra.mxu0 %v2873
    %3240 = vmatprep.subr.bf16.mxu0 %v2881
    %3241 = vmatpush1.bf16.msra.mxu0 %v2880
    %3242 = vmatprep.subr.bf16.mxu0 %v2888
    %3243 = vmatpush1.bf16.msra.mxu0 %v2887
    %3244 = vmatprep.subr.bf16.mxu0 %v2895
    %3245 = vmatpush1.bf16.msra.mxu0 %v2894
    %3246 = vmatprep.mubr.bf16.mxu0 %v3010
    %3247 = vmatmul.mubr.bf16.gmra.mrb[0].mxu0 %v3009
    %v3248 = vpop.f32.mrb[0].mxu0
    %v3249 = vadd.f32 %v3034, %v3248
    %v3250 = vpop.f32.mrb[0].mxu0
    %v3251 = vadd.f32 %v3038, %v3250
    %v3252 = vpop.f32.mrb[0].mxu0
    %v3253 = vpop.f32.mrb[0].mxu0
    %3254 = vdwg.mxu0
    %3255 = vmatprep.subr.bf16.mxu0 %v2902
    %3256 = vmatpush1.bf16.msra.mxu0 %v2901
    %3257 = vmatprep.subr.bf16.mxu0 %v2909
    %3258 = vmatpush1.bf16.msra.mxu0 %v2908
    %3259 = vmatprep.subr.bf16.mxu0 %v2916
    %3260 = vmatpush1.bf16.msra.mxu0 %v2915
    %3261 = vmatprep.subr.bf16.mxu0 %v2923
    %3262 = vmatpush1.bf16.msra.mxu0 %v2922
    %3263 = vmatprep.subr.bf16.mxu0 %v2930
    %3264 = vmatpush1.bf16.msra.mxu0 %v2929
    %3265 = vmatprep.subr.bf16.mxu0 %v2937
    %3266 = vmatpush1.bf16.msra.mxu0 %v2936
    %3267 = vmatprep.subr.bf16.mxu0 %v2944
    %3268 = vmatpush1.bf16.msra.mxu0 %v2943
    %3269 = vmatprep.subr.bf16.mxu0 %v2951
    %3270 = vmatpush1.bf16.msra.mxu0 %v2950
    %3271 = vmatprep.subr.bf16.mxu0 %v2958
    %3272 = vmatpush1.bf16.msra.mxu0 %v2957
    %3273 = vmatprep.subr.bf16.mxu0 %v2965
    %3274 = vmatpush1.bf16.msra.mxu0 %v2964
    %3275 = vmatprep.subr.bf16.mxu0 %v2972
    %3276 = vmatpush1.bf16.msra.mxu0 %v2971
    %3277 = vmatprep.subr.bf16.mxu0 %v2979
    %3278 = vmatpush1.bf16.msra.mxu0 %v2978
    %3279 = vmatprep.subr.bf16.mxu0 %v2986
    %3280 = vmatpush1.bf16.msra.mxu0 %v2985
    %3281 = vmatprep.subr.bf16.mxu0 %v2993
    %3282 = vmatpush1.bf16.msra.mxu0 %v2992
    %3283 = vmatprep.subr.bf16.mxu0 %v3000
    %3284 = vmatpush1.bf16.msra.mxu0 %v2999
    %3285 = vmatprep.subr.bf16.mxu0 %v3007
    %3286 = vmatpush1.bf16.msra.mxu0 %v3006
    %3287 = vmatprep.mubr.bf16.mxu0 %v3012
    %3288 = vmatmul.mubr.bf16.gmra.mrb[0].mxu0 %v3011
    %v3289 = vpop.f32.mrb[0].mxu0
    %v3290 = vadd.f32 %v3249, %v3289
    %v3291 = vpop.f32.mrb[0].mxu0
    %v3292 = vadd.f32 %v3251, %v3291
    %v3293 = vpop.f32.mrb[0].mxu0
    %v3294 = vpop.f32.mrb[0].mxu0
    %3295 = vdwg.mxu0
    %3296 = vmatprep.subr.bf16.mxu0 0
    %3297 = vmatpush1.bf16.msra.mxu0 %v2791
    %3298 = vmatprep.subr.bf16.mxu0 0
    %3299 = vmatpush1.bf16.msra.mxu0 %v2798
    %3300 = vmatprep.subr.bf16.mxu0 0
    %3301 = vmatpush1.bf16.msra.mxu0 %v2805
    %3302 = vmatprep.subr.bf16.mxu0 0
    %3303 = vmatpush1.bf16.msra.mxu0 %v2812
    %3304 = vmatprep.subr.bf16.mxu0 0
    %3305 = vmatpush1.bf16.msra.mxu0 %v2819
    %3306 = vmatprep.subr.bf16.mxu0 0
    %3307 = vmatpush1.bf16.msra.mxu0 %v2826
    %3308 = vmatprep.subr.bf16.mxu0 0
    %3309 = vmatpush1.bf16.msra.mxu0 %v2833
    %3310 = vmatprep.subr.bf16.mxu0 0
    %3311 = vmatpush1.bf16.msra.mxu0 %v2840
    %3312 = vmatprep.subr.bf16.mxu0 0
    %3313 = vmatpush1.bf16.msra.mxu0 %v2847
    %3314 = vmatprep.subr.bf16.mxu0 0
    %3315 = vmatpush1.bf16.msra.mxu0 %v2854
    %3316 = vmatprep.subr.bf16.mxu0 0
    %3317 = vmatpush1.bf16.msra.mxu0 %v2861
    %3318 = vmatprep.subr.bf16.mxu0 0
    %3319 = vmatpush1.bf16.msra.mxu0 %v2868
    %3320 = vmatprep.subr.bf16.mxu0 0
    %3321 = vmatpush1.bf16.msra.mxu0 %v2875
    %3322 = vmatprep.subr.bf16.mxu0 0
    %3323 = vmatpush1.bf16.msra.mxu0 %v2882
    %3324 = vmatprep.subr.bf16.mxu0 0
    %3325 = vmatpush1.bf16.msra.mxu0 %v2889
    %3326 = vmatprep.subr.bf16.mxu0 0
    %3327 = vmatpush1.bf16.msra.mxu0 %v2896
    %3328 = vmatprep.mubr.bf16.mxu0 %v3010
    %3329 = vmatmul.mubr.bf16.gmra.mrb[0].mxu0 %v3009
    %v3330 = vpop.f32.mrb[0].mxu0
    %v3331 = vadd.f32 %v3042, %v3330
    %v3332 = vpop.f32.mrb[0].mxu0
    %v3333 = vpop.f32.mrb[0].mxu0
    %v3334 = vpop.f32.mrb[0].mxu0
    %3335 = vdwg.mxu0
    %3336 = vmatprep.subr.bf16.mxu0 0
    %3337 = vmatpush1.bf16.msra.mxu0 %v2903
    %3338 = vmatprep.subr.bf16.mxu0 0
    %3339 = vmatpush1.bf16.msra.mxu0 %v2910
    %3340 = vmatprep.subr.bf16.mxu0 0
    %3341 = vmatpush1.bf16.msra.mxu0 %v2917
    %3342 = vmatprep.subr.bf16.mxu0 0
    %3343 = vmatpush1.bf16.msra.mxu0 %v2924
    %3344 = vmatprep.subr.bf16.mxu0 0
    %3345 = vmatpush1.bf16.msra.mxu0 %v2931
    %3346 = vmatprep.subr.bf16.mxu0 0
    %3347 = vmatpush1.bf16.msra.mxu0 %v2938
    %3348 = vmatprep.subr.bf16.mxu0 0
    %3349 = vmatpush1.bf16.msra.mxu0 %v2945
    %3350 = vmatprep.subr.bf16.mxu0 0
    %3351 = vmatpush1.bf16.msra.mxu0 %v2952
    %3352 = vmatprep.subr.bf16.mxu0 0
    %3353 = vmatpush1.bf16.msra.mxu0 %v2959
    %3354 = vmatprep.subr.bf16.mxu0 0
    %3355 = vmatpush1.bf16.msra.mxu0 %v2966
    %3356 = vmatprep.subr.bf16.mxu0 0
    %3357 = vmatpush1.bf16.msra.mxu0 %v2973
    %3358 = vmatprep.subr.bf16.mxu0 0
    %3359 = vmatpush1.bf16.msra.mxu0 %v2980
    %3360 = vmatprep.subr.bf16.mxu0 0
    %3361 = vmatpush1.bf16.msra.mxu0 %v2987
    %3362 = vmatprep.subr.bf16.mxu0 0
    %3363 = vmatpush1.bf16.msra.mxu0 %v2994
    %3364 = vmatprep.subr.bf16.mxu0 0
    %3365 = vmatpush1.bf16.msra.mxu0 %v3001
    %3366 = vmatprep.subr.bf16.mxu0 0
    %3367 = vmatpush1.bf16.msra.mxu0 %v3008
    %3368 = vmatprep.mubr.bf16.mxu0 %v3012
    %3369 = vmatmul.mubr.bf16.gmra.mrb[0].mxu0 %v3011
    %v3370 = vpop.f32.mrb[0].mxu0
    %v3371 = vadd.f32 %v3331, %v3370
    %v3372 = vpop.f32.mrb[0].mxu0
    %v3373 = vpop.f32.mrb[0].mxu0
    %v3374 = vpop.f32.mrb[0].mxu0
    %3375 = vdwg.mxu0
    %3376 = vst [vmem:[#allocation10] sm:$0xff] %v3126
    %3377 = vst [vmem:[#allocation10 + $0x8] sm:$0xff] %v3128
    %3378 = vst [vmem:[#allocation10 + $0x10] sm:$0xff] %v3208
    %3379 = vst [vmem:[#allocation10 + $0x18] sm:$0xff] %v3210
    %3380 = vst [vmem:[#allocation10 + $0x20] sm:$0xff] %v3290
    %3381 = vst [vmem:[#allocation10 + $0x28] sm:$0xff] %v3292
    %3382 = vst [vmem:[#allocation10 + $0x30] sm:$0xff] %v3371
    %v3383 = vld [vmem:[#allocation5 + $0x78] sm:$0xff]
    %v3384 = vld [vmem:[#allocation5 + $0x80] sm:$0xff]
    %v3385 = vld [vmem:[#allocation5 + $0x88] sm:$0xff]
    %v3386 = vld [vmem:[#allocation5 + $0x90] sm:$0xff]
    %v3387 = vld [vmem:[#allocation5 + $0x138] sm:$0xff]
    %v3388 = vld [vmem:[#allocation5 + $0x140] sm:$0xff]
    %v3389 = vld [vmem:[#allocation5 + $0x148] sm:$0xff]
    %v3390 = vld [vmem:[#allocation5 + $0x150] sm:$0xff]
    %v3391 = vld [vmem:[#allocation5 + $0x1f8] sm:$0xff]
    %v3392 = vld [vmem:[#allocation5 + $0x200] sm:$0xff]
    %v3393 = vld [vmem:[#allocation5 + $0x208] sm:$0xff]
    %v3394 = vld [vmem:[#allocation5 + $0x210] sm:$0xff]
    %v3395 = vld [vmem:[#allocation5 + $0x2b8] sm:$0xff]
    %v3396 = vld [vmem:[#allocation5 + $0x2c0] sm:$0xff]
    %v3397 = vld [vmem:[#allocation5 + $0x2c8] sm:$0xff]
    %v3398 = vld [vmem:[#allocation5 + $0x2d0] sm:$0xff]
    %v3399 = vld [vmem:[#allocation5 + $0x378] sm:$0xff]
    %v3400 = vld [vmem:[#allocation5 + $0x380] sm:$0xff]
    %v3401 = vld [vmem:[#allocation5 + $0x388] sm:$0xff]
    %v3402 = vld [vmem:[#allocation5 + $0x390] sm:$0xff]
    %v3403 = vld [vmem:[#allocation5 + $0x438] sm:$0xff]
    %v3404 = vld [vmem:[#allocation5 + $0x440] sm:$0xff]
    %v3405 = vld [vmem:[#allocation5 + $0x448] sm:$0xff]
    %v3406 = vld [vmem:[#allocation5 + $0x450] sm:$0xff]
    %v3407 = vld [vmem:[#allocation5 + $0x4f8] sm:$0xff]
    %v3408 = vld [vmem:[#allocation5 + $0x500] sm:$0xff]
    %v3409 = vld [vmem:[#allocation5 + $0x508] sm:$0xff]
    %v3410 = vld [vmem:[#allocation5 + $0x510] sm:$0xff]
    %v3411 = vld [vmem:[#allocation5 + $0x5b8] sm:$0xff]
    %v3412 = vld [vmem:[#allocation5 + $0x5c0] sm:$0xff]
    %v3413 = vld [vmem:[#allocation5 + $0x5c8] sm:$0xff]
    %v3414 = vld [vmem:[#allocation5 + $0x5d0] sm:$0xff]
    %v3415 = vld [vmem:[#allocation5 + $0x678] sm:$0xff]
    %v3416 = vld [vmem:[#allocation5 + $0x680] sm:$0xff]
    %v3417 = vld [vmem:[#allocation5 + $0x688] sm:$0xff]
    %v3418 = vld [vmem:[#allocation5 + $0x690] sm:$0xff]
    %v3419 = vld [vmem:[#allocation5 + $0x738] sm:$0xff]
    %v3420 = vld [vmem:[#allocation5 + $0x740] sm:$0xff]
    %v3421 = vld [vmem:[#allocation5 + $0x748] sm:$0xff]
    %v3422 = vld [vmem:[#allocation5 + $0x750] sm:$0xff]
    %v3423 = vld [vmem:[#allocation5 + $0x7f8] sm:$0xff]
    %v3424 = vld [vmem:[#allocation5 + $0x800] sm:$0xff]
    %v3425 = vld [vmem:[#allocation5 + $0x808] sm:$0xff]
    %v3426 = vld [vmem:[#allocation5 + $0x810] sm:$0xff]
    %v3427 = vld [vmem:[#allocation5 + $0x8b8] sm:$0xff]
    %v3428 = vld [vmem:[#allocation5 + $0x8c0] sm:$0xff]
    %v3429 = vld [vmem:[#allocation5 + $0x8c8] sm:$0xff]
    %v3430 = vld [vmem:[#allocation5 + $0x8d0] sm:$0xff]
    %v3431 = vld [vmem:[#allocation5 + $0x978] sm:$0xff]
    %v3432 = vld [vmem:[#allocation5 + $0x980] sm:$0xff]
    %v3433 = vld [vmem:[#allocation5 + $0x988] sm:$0xff]
    %v3434 = vld [vmem:[#allocation5 + $0x990] sm:$0xff]
    %v3435 = vld [vmem:[#allocation5 + $0xa38] sm:$0xff]
    %v3436 = vld [vmem:[#allocation5 + $0xa40] sm:$0xff]
    %v3437 = vld [vmem:[#allocation5 + $0xa48] sm:$0xff]
    %v3438 = vld [vmem:[#allocation5 + $0xa50] sm:$0xff]
    %v3439 = vld [vmem:[#allocation5 + $0xaf8] sm:$0xff]
    %v3440 = vld [vmem:[#allocation5 + $0xb00] sm:$0xff]
    %v3441 = vld [vmem:[#allocation5 + $0xb08] sm:$0xff]
    %v3442 = vld [vmem:[#allocation5 + $0xb10] sm:$0xff]
    %v3443 = vld [vmem:[#allocation5 + $0xbb8] sm:$0xff]
    %v3444 = vld [vmem:[#allocation5 + $0xbc0] sm:$0xff]
    %v3445 = vld [vmem:[#allocation5 + $0xbc8] sm:$0xff]
    %v3446 = vld [vmem:[#allocation5 + $0xbd0] sm:$0xff]
    %v3447 = vld [vmem:[#allocation5 + $0xc78] sm:$0xff]
    %v3448 = vld [vmem:[#allocation5 + $0xc80] sm:$0xff]
    %v3449 = vld [vmem:[#allocation5 + $0xc88] sm:$0xff]
    %v3450 = vld [vmem:[#allocation5 + $0xc90] sm:$0xff]
    %v3451 = vld [vmem:[#allocation5 + $0xd38] sm:$0xff]
    %v3452 = vld [vmem:[#allocation5 + $0xd40] sm:$0xff]
    %v3453 = vld [vmem:[#allocation5 + $0xd48] sm:$0xff]
    %v3454 = vld [vmem:[#allocation5 + $0xd50] sm:$0xff]
    %v3455 = vld [vmem:[#allocation5 + $0xdf8] sm:$0xff]
    %v3456 = vld [vmem:[#allocation5 + $0xe00] sm:$0xff]
    %v3457 = vld [vmem:[#allocation5 + $0xe08] sm:$0xff]
    %v3458 = vld [vmem:[#allocation5 + $0xe10] sm:$0xff]
    %v3459 = vld [vmem:[#allocation5 + $0xeb8] sm:$0xff]
    %v3460 = vld [vmem:[#allocation5 + $0xec0] sm:$0xff]
    %v3461 = vld [vmem:[#allocation5 + $0xec8] sm:$0xff]
    %v3462 = vld [vmem:[#allocation5 + $0xed0] sm:$0xff]
    %v3463 = vld [vmem:[#allocation5 + $0xf78] sm:$0xff]
    %v3464 = vld [vmem:[#allocation5 + $0xf80] sm:$0xff]
    %v3465 = vld [vmem:[#allocation5 + $0xf88] sm:$0xff]
    %v3466 = vld [vmem:[#allocation5 + $0xf90] sm:$0xff]
    %v3467 = vld [vmem:[#allocation5 + $0x1038] sm:$0xff]
    %v3468 = vld [vmem:[#allocation5 + $0x1040] sm:$0xff]
    %v3469 = vld [vmem:[#allocation5 + $0x1048] sm:$0xff]
    %v3470 = vld [vmem:[#allocation5 + $0x1050] sm:$0xff]
    %v3471 = vld [vmem:[#allocation5 + $0x10f8] sm:$0xff]
    %v3472 = vld [vmem:[#allocation5 + $0x1100] sm:$0xff]
    %v3473 = vld [vmem:[#allocation5 + $0x1108] sm:$0xff]
    %v3474 = vld [vmem:[#allocation5 + $0x1110] sm:$0xff]
    %v3475 = vld [vmem:[#allocation5 + $0x11b8] sm:$0xff]
    %v3476 = vld [vmem:[#allocation5 + $0x11c0] sm:$0xff]
    %v3477 = vld [vmem:[#allocation5 + $0x11c8] sm:$0xff]
    %v3478 = vld [vmem:[#allocation5 + $0x11d0] sm:$0xff]
    %v3479 = vld [vmem:[#allocation5 + $0x1278] sm:$0xff]
    %v3480 = vld [vmem:[#allocation5 + $0x1280] sm:$0xff]
    %v3481 = vld [vmem:[#allocation5 + $0x1288] sm:$0xff]
    %v3482 = vld [vmem:[#allocation5 + $0x1290] sm:$0xff]
    %v3483 = vld [vmem:[#allocation5 + $0x1338] sm:$0xff]
    %v3484 = vld [vmem:[#allocation5 + $0x1340] sm:$0xff]
    %v3485 = vld [vmem:[#allocation5 + $0x1348] sm:$0xff]
    %v3486 = vld [vmem:[#allocation5 + $0x1350] sm:$0xff]
    %v3487 = vld [vmem:[#allocation5 + $0x13f8] sm:$0xff]
    %v3488 = vld [vmem:[#allocation5 + $0x1400] sm:$0xff]
    %v3489 = vld [vmem:[#allocation5 + $0x1408] sm:$0xff]
    %v3490 = vld [vmem:[#allocation5 + $0x1410] sm:$0xff]
    %v3491 = vld [vmem:[#allocation5 + $0x14b8] sm:$0xff]
    %v3492 = vld [vmem:[#allocation5 + $0x14c0] sm:$0xff]
    %v3493 = vld [vmem:[#allocation5 + $0x14c8] sm:$0xff]
    %v3494 = vld [vmem:[#allocation5 + $0x14d0] sm:$0xff]
    %v3495 = vld [vmem:[#allocation5 + $0x1578] sm:$0xff]
    %v3496 = vld [vmem:[#allocation5 + $0x1580] sm:$0xff]
    %v3497 = vld [vmem:[#allocation5 + $0x1588] sm:$0xff]
    %v3498 = vld [vmem:[#allocation5 + $0x1590] sm:$0xff]
    %v3499 = vld [vmem:[#allocation5 + $0x1638] sm:$0xff]
    %v3500 = vld [vmem:[#allocation5 + $0x1640] sm:$0xff]
    %v3501 = vld [vmem:[#allocation5 + $0x1648] sm:$0xff]
    %v3502 = vld [vmem:[#allocation5 + $0x1650] sm:$0xff]
    %v3503 = vld [vmem:[#allocation5 + $0x16f8] sm:$0xff]
    %v3504 = vld [vmem:[#allocation5 + $0x1700] sm:$0xff]
    %v3505 = vld [vmem:[#allocation5 + $0x1708] sm:$0xff]
    %v3506 = vld [vmem:[#allocation5 + $0x1710] sm:$0xff]
    %v3507 = vld [vmem:[#allocation5 + $0x17b8] sm:$0xff]
    %v3508 = vld [vmem:[#allocation5 + $0x17c0] sm:$0xff]
    %v3509 = vld [vmem:[#allocation5 + $0x17c8] sm:$0xff]
    %v3510 = vld [vmem:[#allocation5 + $0x17d0] sm:$0xff]
    %v3511 = vpack.c.bf16 %v2086, %v2086
    %v3512 = vpack.c.bf16 %v2087, %v2087
    %v3513 = vpack.c.bf16 %v2088, %v2088
    %v3514 = vpack.c.bf16 %v2089, %v2089
    %v3515 = vld [vmem:[#allocation7 + $0x25] sm:$0xf]
    %v3517 = vlaneseq
    %v3518 = vshrl.u32 %v3517, 7
    %v3519 = vsub.s32 0, %v3518
    %v3520 = vrot.slane %v3515, %v3519
    %v3521 = vlaneseq
    %v3522 = vshrl.u32 %v3521, 7
    %v3523 = vsub.s32 1, %v3522
    %v3524 = vrot.slane %v3515, %v3523
    %v3525 = vlaneseq
    %v3526 = vshrl.u32 %v3525, 7
    %v3527 = vsub.s32 2, %v3526
    %v3528 = vrot.slane %v3515, %v3527
    %v3529 = vlaneseq
    %v3530 = vshrl.u32 %v3529, 7
    %v3531 = vsub.s32 3, %v3530
    %v3532 = vrot.slane %v3515, %v3531
    %3537 = vmatprep.subr.bf16.mxu0 %v3384
    %3538 = vmatpush1.bf16.msra.mxu0 %v3383
    %3539 = vmatprep.subr.bf16.mxu0 %v3388
    %3540 = vmatpush1.bf16.msra.mxu0 %v3387
    %3541 = vmatprep.subr.bf16.mxu0 %v3392
    %3542 = vmatpush1.bf16.msra.mxu0 %v3391
    %3543 = vmatprep.subr.bf16.mxu0 %v3396
    %3544 = vmatpush1.bf16.msra.mxu0 %v3395
    %3545 = vmatprep.subr.bf16.mxu0 %v3400
    %3546 = vmatpush1.bf16.msra.mxu0 %v3399
    %3547 = vmatprep.subr.bf16.mxu0 %v3404
    %3548 = vmatpush1.bf16.msra.mxu0 %v3403
    %3549 = vmatprep.subr.bf16.mxu0 %v3408
    %3550 = vmatpush1.bf16.msra.mxu0 %v3407
    %3551 = vmatprep.subr.bf16.mxu0 %v3412
    %3552 = vmatpush1.bf16.msra.mxu0 %v3411
    %3553 = vmatprep.subr.bf16.mxu0 %v3416
    %3554 = vmatpush1.bf16.msra.mxu0 %v3415
    %3555 = vmatprep.subr.bf16.mxu0 %v3420
    %3556 = vmatpush1.bf16.msra.mxu0 %v3419
    %3557 = vmatprep.subr.bf16.mxu0 %v3424
    %3558 = vmatpush1.bf16.msra.mxu0 %v3423
    %3559 = vmatprep.subr.bf16.mxu0 %v3428
    %3560 = vmatpush1.bf16.msra.mxu0 %v3427
    %3561 = vmatprep.subr.bf16.mxu0 %v3432
    %3562 = vmatpush1.bf16.msra.mxu0 %v3431
    %3563 = vmatprep.subr.bf16.mxu0 %v3436
    %3564 = vmatpush1.bf16.msra.mxu0 %v3435
    %3565 = vmatprep.subr.bf16.mxu0 %v3440
    %3566 = vmatpush1.bf16.msra.mxu0 %v3439
    %3567 = vmatprep.subr.bf16.mxu0 %v3444
    %3568 = vmatpush1.bf16.msra.mxu0 %v3443
    %3569 = vmatprep.mubr.bf16.mxu0 %v3512
    %3570 = vmatmul.mubr.bf16.gmra.mrb[0].mxu0 %v3511
    %v3571 = vpop.f32.mrb[0].mxu0
    %v3572 = vadd.f32 %v3520, %v3571
    %v3573 = vpop.f32.mrb[0].mxu0
    %v3574 = vadd.f32 %v3524, %v3573
    %v3575 = vpop.f32.mrb[0].mxu0
    %v3576 = vpop.f32.mrb[0].mxu0
    %3577 = vdwg.mxu0
    %3578 = vmatprep.subr.bf16.mxu0 %v3448
    %3579 = vmatpush1.bf16.msra.mxu0 %v3447
    %3580 = vmatprep.subr.bf16.mxu0 %v3452
    %3581 = vmatpush1.bf16.msra.mxu0 %v3451
    %3582 = vmatprep.subr.bf16.mxu0 %v3456
    %3583 = vmatpush1.bf16.msra.mxu0 %v3455
    %3584 = vmatprep.subr.bf16.mxu0 %v3460
    %3585 = vmatpush1.bf16.msra.mxu0 %v3459
    %3586 = vmatprep.subr.bf16.mxu0 %v3464
    %3587 = vmatpush1.bf16.msra.mxu0 %v3463
    %3588 = vmatprep.subr.bf16.mxu0 %v3468
    %3589 = vmatpush1.bf16.msra.mxu0 %v3467
    %3590 = vmatprep.subr.bf16.mxu0 %v3472
    %3591 = vmatpush1.bf16.msra.mxu0 %v3471
    %3592 = vmatprep.subr.bf16.mxu0 %v3476
    %3593 = vmatpush1.bf16.msra.mxu0 %v3475
    %3594 = vmatprep.subr.bf16.mxu0 %v3480
    %3595 = vmatpush1.bf16.msra.mxu0 %v3479
    %3596 = vmatprep.subr.bf16.mxu0 %v3484
    %3597 = vmatpush1.bf16.msra.mxu0 %v3483
    %3598 = vmatprep.subr.bf16.mxu0 %v3488
    %3599 = vmatpush1.bf16.msra.mxu0 %v3487
    %3600 = vmatprep.subr.bf16.mxu0 %v3492
    %3601 = vmatpush1.bf16.msra.mxu0 %v3491
    %3602 = vmatprep.subr.bf16.mxu0 %v3496
    %3603 = vmatpush1.bf16.msra.mxu0 %v3495
    %3604 = vmatprep.subr.bf16.mxu0 %v3500
    %3605 = vmatpush1.bf16.msra.mxu0 %v3499
    %3606 = vmatprep.subr.bf16.mxu0 %v3504
    %3607 = vmatpush1.bf16.msra.mxu0 %v3503
    %3608 = vmatprep.subr.bf16.mxu0 %v3508
    %3609 = vmatpush1.bf16.msra.mxu0 %v3507
    %3610 = vmatprep.mubr.bf16.mxu0 %v3514
    %3611 = vmatmul.mubr.bf16.gmra.mrb[0].mxu0 %v3513
    %v3612 = vpop.f32.mrb[0].mxu0
    %v3613 = vadd.f32 %v3572, %v3612
    %v3614 = vpop.f32.mrb[0].mxu0
    %v3615 = vadd.f32 %v3574, %v3614
    %v3616 = vpop.f32.mrb[0].mxu0
    %v3617 = vpop.f32.mrb[0].mxu0
    %3618 = vdwg.mxu0
    %3619 = vmatprep.subr.bf16.mxu0 %v3386
    %3620 = vmatpush1.bf16.msra.mxu0 %v3385
    %3621 = vmatprep.subr.bf16.mxu0 %v3390
    %3622 = vmatpush1.bf16.msra.mxu0 %v3389
    %3623 = vmatprep.subr.bf16.mxu0 %v3394
    %3624 = vmatpush1.bf16.msra.mxu0 %v3393
    %3625 = vmatprep.subr.bf16.mxu0 %v3398
    %3626 = vmatpush1.bf16.msra.mxu0 %v3397
    %3627 = vmatprep.subr.bf16.mxu0 %v3402
    %3628 = vmatpush1.bf16.msra.mxu0 %v3401
    %3629 = vmatprep.subr.bf16.mxu0 %v3406
    %3630 = vmatpush1.bf16.msra.mxu0 %v3405
    %3631 = vmatprep.subr.bf16.mxu0 %v3410
    %3632 = vmatpush1.bf16.msra.mxu0 %v3409
    %3633 = vmatprep.subr.bf16.mxu0 %v3414
    %3634 = vmatpush1.bf16.msra.mxu0 %v3413
    %3635 = vmatprep.subr.bf16.mxu0 %v3418
    %3636 = vmatpush1.bf16.msra.mxu0 %v3417
    %3637 = vmatprep.subr.bf16.mxu0 %v3422
    %3638 = vmatpush1.bf16.msra.mxu0 %v3421
    %3639 = vmatprep.subr.bf16.mxu0 %v3426
    %3640 = vmatpush1.bf16.msra.mxu0 %v3425
    %3641 = vmatprep.subr.bf16.mxu0 %v3430
    %3642 = vmatpush1.bf16.msra.mxu0 %v3429
    %3643 = vmatprep.subr.bf16.mxu0 %v3434
    %3644 = vmatpush1.bf16.msra.mxu0 %v3433
    %3645 = vmatprep.subr.bf16.mxu0 %v3438
    %3646 = vmatpush1.bf16.msra.mxu0 %v3437
    %3647 = vmatprep.subr.bf16.mxu0 %v3442
    %3648 = vmatpush1.bf16.msra.mxu0 %v3441
    %3649 = vmatprep.subr.bf16.mxu0 %v3446
    %3650 = vmatpush1.bf16.msra.mxu0 %v3445
    %3651 = vmatprep.mubr.bf16.mxu0 %v3512
    %3652 = vmatmul.mubr.bf16.gmra.mrb[0].mxu0 %v3511
    %v3653 = vpop.f32.mrb[0].mxu0
    %v3654 = vadd.f32 %v3528, %v3653
    %v3655 = vpop.f32.mrb[0].mxu0
    %v3656 = vadd.f32 %v3532, %v3655
    %v3657 = vpop.f32.mrb[0].mxu0
    %v3658 = vpop.f32.mrb[0].mxu0
    %3659 = vdwg.mxu0
    %3660 = vmatprep.subr.bf16.mxu0 %v3450
    %3661 = vmatpush1.bf16.msra.mxu0 %v3449
    %3662 = vmatprep.subr.bf16.mxu0 %v3454
    %3663 = vmatpush1.bf16.msra.mxu0 %v3453
    %3664 = vmatprep.subr.bf16.mxu0 %v3458
    %3665 = vmatpush1.bf16.msra.mxu0 %v3457
    %3666 = vmatprep.subr.bf16.mxu0 %v3462
    %3667 = vmatpush1.bf16.msra.mxu0 %v3461
    %3668 = vmatprep.subr.bf16.mxu0 %v3466
    %3669 = vmatpush1.bf16.msra.mxu0 %v3465
    %3670 = vmatprep.subr.bf16.mxu0 %v3470
    %3671 = vmatpush1.bf16.msra.mxu0 %v3469
    %3672 = vmatprep.subr.bf16.mxu0 %v3474
    %3673 = vmatpush1.bf16.msra.mxu0 %v3473
    %3674 = vmatprep.subr.bf16.mxu0 %v3478
    %3675 = vmatpush1.bf16.msra.mxu0 %v3477
    %3676 = vmatprep.subr.bf16.mxu0 %v3482
    %3677 = vmatpush1.bf16.msra.mxu0 %v3481
    %3678 = vmatprep.subr.bf16.mxu0 %v3486
    %3679 = vmatpush1.bf16.msra.mxu0 %v3485
    %3680 = vmatprep.subr.bf16.mxu0 %v3490
    %3681 = vmatpush1.bf16.msra.mxu0 %v3489
    %3682 = vmatprep.subr.bf16.mxu0 %v3494
    %3683 = vmatpush1.bf16.msra.mxu0 %v3493
    %3684 = vmatprep.subr.bf16.mxu0 %v3498
    %3685 = vmatpush1.bf16.msra.mxu0 %v3497
    %3686 = vmatprep.subr.bf16.mxu0 %v3502
    %3687 = vmatpush1.bf16.msra.mxu0 %v3501
    %3688 = vmatprep.subr.bf16.mxu0 %v3506
    %3689 = vmatpush1.bf16.msra.mxu0 %v3505
    %3690 = vmatprep.subr.bf16.mxu0 %v3510
    %3691 = vmatpush1.bf16.msra.mxu0 %v3509
    %3692 = vmatprep.mubr.bf16.mxu0 %v3514
    %3693 = vmatmul.mubr.bf16.gmra.mrb[0].mxu0 %v3513
    %v3694 = vpop.f32.mrb[0].mxu0
    %v3695 = vadd.f32 %v3654, %v3694
    %v3696 = vpop.f32.mrb[0].mxu0
    %v3697 = vadd.f32 %v3656, %v3696
    %v3698 = vpop.f32.mrb[0].mxu0
    %v3699 = vpop.f32.mrb[0].mxu0
    %3700 = vdwg.mxu0
    %v3701 = vxor.u32 %v3613, 2147483648
    %v3702 = vxor.u32 %v3615, 2147483648
    %v3703 = vxor.u32 %v3695, 2147483648
    %v3704 = vxor.u32 %v3697, 2147483648
    %v3705 = vmul.f32 %v3701, 1.442695
    %v3706 = vpow.pop %v3705
    %v3707 = vmul.f32 %v3702, 1.442695
    %v3708 = vpow.pop %v3707
    %v3709 = vmul.f32 %v3703, 1.442695
    %v3710 = vpow.pop %v3709
    %v3711 = vmul.f32 %v3704, 1.442695
    %v3712 = vpow.pop %v3711
    %v3713 = vadd.f32 %v3706, 1.0
    %v3714 = vadd.f32 %v3708, 1.0
    %v3715 = vadd.f32 %v3710, 1.0
    %v3716 = vadd.f32 %v3712, 1.0
    %v3717 = vrcp.pop %v3713
    %v3718 = vmul.f32 1.0, %v3717
    %v3719 = vrcp.pop %v3714
    %v3720 = vmul.f32 1.0, %v3719
    %v3721 = vrcp.pop %v3715
    %v3722 = vmul.f32 1.0, %v3721
    %v3723 = vrcp.pop %v3716
    %v3724 = vmul.f32 1.0, %v3723
    %v3725 = vmul.f32 %v3613, %v3718
    %v3726 = vmul.f32 %v3615, %v3720
    %v3727 = vmul.f32 %v3695, %v3722
    %v3728 = vmul.f32 %v3697, %v3724
    %v3729 = vld [vmem:[#allocation5 + $0x98] sm:$0xff]
    %v3730 = vld [vmem:[#allocation5 + $0xa0] sm:$0xff]
    %v3731 = vld [vmem:[#allocation5 + $0xa8] sm:$0xff]
    %v3732 = vld [vmem:[#allocation5 + $0xb0] sm:$0xff]
    %v3733 = vld [vmem:[#allocation5 + $0x158] sm:$0xff]
    %v3734 = vld [vmem:[#allocation5 + $0x160] sm:$0xff]
    %v3735 = vld [vmem:[#allocation5 + $0x168] sm:$0xff]
    %v3736 = vld [vmem:[#allocation5 + $0x170] sm:$0xff]
    %v3737 = vld [vmem:[#allocation5 + $0x218] sm:$0xff]
    %v3738 = vld [vmem:[#allocation5 + $0x220] sm:$0xff]
    %v3739 = vld [vmem:[#allocation5 + $0x228] sm:$0xff]
    %v3740 = vld [vmem:[#allocation5 + $0x230] sm:$0xff]
    %v3741 = vld [vmem:[#allocation5 + $0x2d8] sm:$0xff]
    %v3742 = vld [vmem:[#allocation5 + $0x2e0] sm:$0xff]
    %v3743 = vld [vmem:[#allocation5 + $0x2e8] sm:$0xff]
    %v3744 = vld [vmem:[#allocation5 + $0x2f0] sm:$0xff]
    %v3745 = vld [vmem:[#allocation5 + $0x398] sm:$0xff]
    %v3746 = vld [vmem:[#allocation5 + $0x3a0] sm:$0xff]
    %v3747 = vld [vmem:[#allocation5 + $0x3a8] sm:$0xff]
    %v3748 = vld [vmem:[#allocation5 + $0x3b0] sm:$0xff]
    %v3749 = vld [vmem:[#allocation5 + $0x458] sm:$0xff]
    %v3750 = vld [vmem:[#allocation5 + $0x460] sm:$0xff]
    %v3751 = vld [vmem:[#allocation5 + $0x468] sm:$0xff]
    %v3752 = vld [vmem:[#allocation5 + $0x470] sm:$0xff]
    %v3753 = vld [vmem:[#allocation5 + $0x518] sm:$0xff]
    %v3754 = vld [vmem:[#allocation5 + $0x520] sm:$0xff]
    %v3755 = vld [vmem:[#allocation5 + $0x528] sm:$0xff]
    %v3756 = vld [vmem:[#allocation5 + $0x530] sm:$0xff]
    %v3757 = vld [vmem:[#allocation5 + $0x5d8] sm:$0xff]
    %v3758 = vld [vmem:[#allocation5 + $0x5e0] sm:$0xff]
    %v3759 = vld [vmem:[#allocation5 + $0x5e8] sm:$0xff]
    %v3760 = vld [vmem:[#allocation5 + $0x5f0] sm:$0xff]
    %v3761 = vld [vmem:[#allocation5 + $0x698] sm:$0xff]
    %v3762 = vld [vmem:[#allocation5 + $0x6a0] sm:$0xff]
    %v3763 = vld [vmem:[#allocation5 + $0x6a8] sm:$0xff]
    %v3764 = vld [vmem:[#allocation5 + $0x6b0] sm:$0xff]
    %v3765 = vld [vmem:[#allocation5 + $0x758] sm:$0xff]
    %v3766 = vld [vmem:[#allocation5 + $0x760] sm:$0xff]
    %v3767 = vld [vmem:[#allocation5 + $0x768] sm:$0xff]
    %v3768 = vld [vmem:[#allocation5 + $0x770] sm:$0xff]
    %v3769 = vld [vmem:[#allocation5 + $0x818] sm:$0xff]
    %v3770 = vld [vmem:[#allocation5 + $0x820] sm:$0xff]
    %v3771 = vld [vmem:[#allocation5 + $0x828] sm:$0xff]
    %v3772 = vld [vmem:[#allocation5 + $0x830] sm:$0xff]
    %v3773 = vld [vmem:[#allocation5 + $0x8d8] sm:$0xff]
    %v3774 = vld [vmem:[#allocation5 + $0x8e0] sm:$0xff]
    %v3775 = vld [vmem:[#allocation5 + $0x8e8] sm:$0xff]
    %v3776 = vld [vmem:[#allocation5 + $0x8f0] sm:$0xff]
    %v3777 = vld [vmem:[#allocation5 + $0x998] sm:$0xff]
    %v3778 = vld [vmem:[#allocation5 + $0x9a0] sm:$0xff]
    %v3779 = vld [vmem:[#allocation5 + $0x9a8] sm:$0xff]
    %v3780 = vld [vmem:[#allocation5 + $0x9b0] sm:$0xff]
    %v3781 = vld [vmem:[#allocation5 + $0xa58] sm:$0xff]
    %v3782 = vld [vmem:[#allocation5 + $0xa60] sm:$0xff]
    %v3783 = vld [vmem:[#allocation5 + $0xa68] sm:$0xff]
    %v3784 = vld [vmem:[#allocation5 + $0xa70] sm:$0xff]
    %v3785 = vld [vmem:[#allocation5 + $0xb18] sm:$0xff]
    %v3786 = vld [vmem:[#allocation5 + $0xb20] sm:$0xff]
    %v3787 = vld [vmem:[#allocation5 + $0xb28] sm:$0xff]
    %v3788 = vld [vmem:[#allocation5 + $0xb30] sm:$0xff]
    %v3789 = vld [vmem:[#allocation5 + $0xbd8] sm:$0xff]
    %v3790 = vld [vmem:[#allocation5 + $0xbe0] sm:$0xff]
    %v3791 = vld [vmem:[#allocation5 + $0xbe8] sm:$0xff]
    %v3792 = vld [vmem:[#allocation5 + $0xbf0] sm:$0xff]
    %v3793 = vld [vmem:[#allocation5 + $0xc98] sm:$0xff]
    %v3794 = vld [vmem:[#allocation5 + $0xca0] sm:$0xff]
    %v3795 = vld [vmem:[#allocation5 + $0xca8] sm:$0xff]
    %v3796 = vld [vmem:[#allocation5 + $0xcb0] sm:$0xff]
    %v3797 = vld [vmem:[#allocation5 + $0xd58] sm:$0xff]
    %v3798 = vld [vmem:[#allocation5 + $0xd60] sm:$0xff]
    %v3799 = vld [vmem:[#allocation5 + $0xd68] sm:$0xff]
    %v3800 = vld [vmem:[#allocation5 + $0xd70] sm:$0xff]
    %v3801 = vld [vmem:[#allocation5 + $0xe18] sm:$0xff]
    %v3802 = vld [vmem:[#allocation5 + $0xe20] sm:$0xff]
    %v3803 = vld [vmem:[#allocation5 + $0xe28] sm:$0xff]
    %v3804 = vld [vmem:[#allocation5 + $0xe30] sm:$0xff]
    %v3805 = vld [vmem:[#allocation5 + $0xed8] sm:$0xff]
    %v3806 = vld [vmem:[#allocation5 + $0xee0] sm:$0xff]
    %v3807 = vld [vmem:[#allocation5 + $0xee8] sm:$0xff]
    %v3808 = vld [vmem:[#allocation5 + $0xef0] sm:$0xff]
    %v3809 = vld [vmem:[#allocation5 + $0xf98] sm:$0xff]
    %v3810 = vld [vmem:[#allocation5 + $0xfa0] sm:$0xff]
    %v3811 = vld [vmem:[#allocation5 + $0xfa8] sm:$0xff]
    %v3812 = vld [vmem:[#allocation5 + $0xfb0] sm:$0xff]
    %v3813 = vld [vmem:[#allocation5 + $0x1058] sm:$0xff]
    %v3814 = vld [vmem:[#allocation5 + $0x1060] sm:$0xff]
    %v3815 = vld [vmem:[#allocation5 + $0x1068] sm:$0xff]
    %v3816 = vld [vmem:[#allocation5 + $0x1070] sm:$0xff]
    %v3817 = vld [vmem:[#allocation5 + $0x1118] sm:$0xff]
    %v3818 = vld [vmem:[#allocation5 + $0x1120] sm:$0xff]
    %v3819 = vld [vmem:[#allocation5 + $0x1128] sm:$0xff]
    %v3820 = vld [vmem:[#allocation5 + $0x1130] sm:$0xff]
    %v3821 = vld [vmem:[#allocation5 + $0x11d8] sm:$0xff]
    %v3822 = vld [vmem:[#allocation5 + $0x11e0] sm:$0xff]
    %v3823 = vld [vmem:[#allocation5 + $0x11e8] sm:$0xff]
    %v3824 = vld [vmem:[#allocation5 + $0x11f0] sm:$0xff]
    %v3825 = vld [vmem:[#allocation5 + $0x1298] sm:$0xff]
    %v3826 = vld [vmem:[#allocation5 + $0x12a0] sm:$0xff]
    %v3827 = vld [vmem:[#allocation5 + $0x12a8] sm:$0xff]
    %v3828 = vld [vmem:[#allocation5 + $0x12b0] sm:$0xff]
    %v3829 = vld [vmem:[#allocation5 + $0x1358] sm:$0xff]
    %v3830 = vld [vmem:[#allocation5 + $0x1360] sm:$0xff]
    %v3831 = vld [vmem:[#allocation5 + $0x1368] sm:$0xff]
    %v3832 = vld [vmem:[#allocation5 + $0x1370] sm:$0xff]
    %v3833 = vld [vmem:[#allocation5 + $0x1418] sm:$0xff]
    %v3834 = vld [vmem:[#allocation5 + $0x1420] sm:$0xff]
    %v3835 = vld [vmem:[#allocation5 + $0x1428] sm:$0xff]
    %v3836 = vld [vmem:[#allocation5 + $0x1430] sm:$0xff]
    %v3837 = vld [vmem:[#allocation5 + $0x14d8] sm:$0xff]
    %v3838 = vld [vmem:[#allocation5 + $0x14e0] sm:$0xff]
    %v3839 = vld [vmem:[#allocation5 + $0x14e8] sm:$0xff]
    %v3840 = vld [vmem:[#allocation5 + $0x14f0] sm:$0xff]
    %v3841 = vld [vmem:[#allocation5 + $0x1598] sm:$0xff]
    %v3842 = vld [vmem:[#allocation5 + $0x15a0] sm:$0xff]
    %v3843 = vld [vmem:[#allocation5 + $0x15a8] sm:$0xff]
    %v3844 = vld [vmem:[#allocation5 + $0x15b0] sm:$0xff]
    %v3845 = vld [vmem:[#allocation5 + $0x1658] sm:$0xff]
    %v3846 = vld [vmem:[#allocation5 + $0x1660] sm:$0xff]
    %v3847 = vld [vmem:[#allocation5 + $0x1668] sm:$0xff]
    %v3848 = vld [vmem:[#allocation5 + $0x1670] sm:$0xff]
    %v3849 = vld [vmem:[#allocation5 + $0x1718] sm:$0xff]
    %v3850 = vld [vmem:[#allocation5 + $0x1720] sm:$0xff]
    %v3851 = vld [vmem:[#allocation5 + $0x1728] sm:$0xff]
    %v3852 = vld [vmem:[#allocation5 + $0x1730] sm:$0xff]
    %v3853 = vld [vmem:[#allocation5 + $0x17d8] sm:$0xff]
    %v3854 = vld [vmem:[#allocation5 + $0x17e0] sm:$0xff]
    %v3855 = vld [vmem:[#allocation5 + $0x17e8] sm:$0xff]
    %v3856 = vld [vmem:[#allocation5 + $0x17f0] sm:$0xff]
    %v3857 = vpack.c.bf16 %v3725, %v3725
    %v3858 = vpack.c.bf16 %v3726, %v3726
    %v3859 = vpack.c.bf16 %v3727, %v3727
    %v3860 = vpack.c.bf16 %v3728, %v3728
    %v3861 = vld [vmem:[#allocation7 + $0x29] sm:$0xf]
    %v3863 = vlaneseq
    %v3864 = vshrl.u32 %v3863, 7
    %v3865 = vsub.s32 0, %v3864
    %v3866 = vrot.slane %v3861, %v3865
    %v3867 = vlaneseq
    %v3868 = vshrl.u32 %v3867, 7
    %v3869 = vsub.s32 1, %v3868
    %v3870 = vrot.slane %v3861, %v3869
    %v3871 = vlaneseq
    %v3872 = vshrl.u32 %v3871, 7
    %v3873 = vsub.s32 2, %v3872
    %v3874 = vrot.slane %v3861, %v3873
    %v3875 = vlaneseq
    %v3876 = vshrl.u32 %v3875, 7
    %v3877 = vsub.s32 3, %v3876
    %v3878 = vrot.slane %v3861, %v3877
    %3883 = vmatprep.subr.bf16.mxu0 %v3730
    %3884 = vmatpush1.bf16.msra.mxu0 %v3729
    %3885 = vmatprep.subr.bf16.mxu0 %v3734
    %3886 = vmatpush1.bf16.msra.mxu0 %v3733
    %3887 = vmatprep.subr.bf16.mxu0 %v3738
    %3888 = vmatpush1.bf16.msra.mxu0 %v3737
    %3889 = vmatprep.subr.bf16.mxu0 %v3742
    %3890 = vmatpush1.bf16.msra.mxu0 %v3741
    %3891 = vmatprep.subr.bf16.mxu0 %v3746
    %3892 = vmatpush1.bf16.msra.mxu0 %v3745
    %3893 = vmatprep.subr.bf16.mxu0 %v3750
    %3894 = vmatpush1.bf16.msra.mxu0 %v3749
    %3895 = vmatprep.subr.bf16.mxu0 %v3754
    %3896 = vmatpush1.bf16.msra.mxu0 %v3753
    %3897 = vmatprep.subr.bf16.mxu0 %v3758
    %3898 = vmatpush1.bf16.msra.mxu0 %v3757
    %3899 = vmatprep.subr.bf16.mxu0 %v3762
    %3900 = vmatpush1.bf16.msra.mxu0 %v3761
    %3901 = vmatprep.subr.bf16.mxu0 %v3766
    %3902 = vmatpush1.bf16.msra.mxu0 %v3765
    %3903 = vmatprep.subr.bf16.mxu0 %v3770
    %3904 = vmatpush1.bf16.msra.mxu0 %v3769
    %3905 = vmatprep.subr.bf16.mxu0 %v3774
    %3906 = vmatpush1.bf16.msra.mxu0 %v3773
    %3907 = vmatprep.subr.bf16.mxu0 %v3778
    %3908 = vmatpush1.bf16.msra.mxu0 %v3777
    %3909 = vmatprep.subr.bf16.mxu0 %v3782
    %3910 = vmatpush1.bf16.msra.mxu0 %v3781
    %3911 = vmatprep.subr.bf16.mxu0 %v3786
    %3912 = vmatpush1.bf16.msra.mxu0 %v3785
    %3913 = vmatprep.subr.bf16.mxu0 %v3790
    %3914 = vmatpush1.bf16.msra.mxu0 %v3789
    %3915 = vmatprep.mubr.bf16.mxu0 %v3858
    %3916 = vmatmul.mubr.bf16.gmra.mrb[0].mxu0 %v3857
    %v3917 = vpop.f32.mrb[0].mxu0
    %v3918 = vadd.f32 %v3866, %v3917
    %v3919 = vpop.f32.mrb[0].mxu0
    %v3920 = vadd.f32 %v3870, %v3919
    %v3921 = vpop.f32.mrb[0].mxu0
    %v3922 = vpop.f32.mrb[0].mxu0
    %3923 = vdwg.mxu0
    %3924 = vmatprep.subr.bf16.mxu0 %v3794
    %3925 = vmatpush1.bf16.msra.mxu0 %v3793
    %3926 = vmatprep.subr.bf16.mxu0 %v3798
    %3927 = vmatpush1.bf16.msra.mxu0 %v3797
    %3928 = vmatprep.subr.bf16.mxu0 %v3802
    %3929 = vmatpush1.bf16.msra.mxu0 %v3801
    %3930 = vmatprep.subr.bf16.mxu0 %v3806
    %3931 = vmatpush1.bf16.msra.mxu0 %v3805
    %3932 = vmatprep.subr.bf16.mxu0 %v3810
    %3933 = vmatpush1.bf16.msra.mxu0 %v3809
    %3934 = vmatprep.subr.bf16.mxu0 %v3814
    %3935 = vmatpush1.bf16.msra.mxu0 %v3813
    %3936 = vmatprep.subr.bf16.mxu0 %v3818
    %3937 = vmatpush1.bf16.msra.mxu0 %v3817
    %3938 = vmatprep.subr.bf16.mxu0 %v3822
    %3939 = vmatpush1.bf16.msra.mxu0 %v3821
    %3940 = vmatprep.subr.bf16.mxu0 %v3826
    %3941 = vmatpush1.bf16.msra.mxu0 %v3825
    %3942 = vmatprep.subr.bf16.mxu0 %v3830
    %3943 = vmatpush1.bf16.msra.mxu0 %v3829
    %3944 = vmatprep.subr.bf16.mxu0 %v3834
    %3945 = vmatpush1.bf16.msra.mxu0 %v3833
    %3946 = vmatprep.subr.bf16.mxu0 %v3838
    %3947 = vmatpush1.bf16.msra.mxu0 %v3837
    %3948 = vmatprep.subr.bf16.mxu0 %v3842
    %3949 = vmatpush1.bf16.msra.mxu0 %v3841
    %3950 = vmatprep.subr.bf16.mxu0 %v3846
    %3951 = vmatpush1.bf16.msra.mxu0 %v3845
    %3952 = vmatprep.subr.bf16.mxu0 %v3850
    %3953 = vmatpush1.bf16.msra.mxu0 %v3849
    %3954 = vmatprep.subr.bf16.mxu0 %v3854
    %3955 = vmatpush1.bf16.msra.mxu0 %v3853
    %3956 = vmatprep.mubr.bf16.mxu0 %v3860
    %3957 = vmatmul.mubr.bf16.gmra.mrb[0].mxu0 %v3859
    %v3958 = vpop.f32.mrb[0].mxu0
    %v3959 = vadd.f32 %v3918, %v3958
    %v3960 = vpop.f32.mrb[0].mxu0
    %v3961 = vadd.f32 %v3920, %v3960
    %v3962 = vpop.f32.mrb[0].mxu0
    %v3963 = vpop.f32.mrb[0].mxu0
    %3964 = vdwg.mxu0
    %3965 = vmatprep.subr.bf16.mxu0 %v3732
    %3966 = vmatpush1.bf16.msra.mxu0 %v3731
    %3967 = vmatprep.subr.bf16.mxu0 %v3736
    %3968 = vmatpush1.bf16.msra.mxu0 %v3735
    %3969 = vmatprep.subr.bf16.mxu0 %v3740
    %3970 = vmatpush1.bf16.msra.mxu0 %v3739
    %3971 = vmatprep.subr.bf16.mxu0 %v3744
    %3972 = vmatpush1.bf16.msra.mxu0 %v3743
    %3973 = vmatprep.subr.bf16.mxu0 %v3748
    %3974 = vmatpush1.bf16.msra.mxu0 %v3747
    %3975 = vmatprep.subr.bf16.mxu0 %v3752
    %3976 = vmatpush1.bf16.msra.mxu0 %v3751
    %3977 = vmatprep.subr.bf16.mxu0 %v3756
    %3978 = vmatpush1.bf16.msra.mxu0 %v3755
    %3979 = vmatprep.subr.bf16.mxu0 %v3760
    %3980 = vmatpush1.bf16.msra.mxu0 %v3759
    %3981 = vmatprep.subr.bf16.mxu0 %v3764
    %3982 = vmatpush1.bf16.msra.mxu0 %v3763
    %3983 = vmatprep.subr.bf16.mxu0 %v3768
    %3984 = vmatpush1.bf16.msra.mxu0 %v3767
    %3985 = vmatprep.subr.bf16.mxu0 %v3772
    %3986 = vmatpush1.bf16.msra.mxu0 %v3771
    %3987 = vmatprep.subr.bf16.mxu0 %v3776
    %3988 = vmatpush1.bf16.msra.mxu0 %v3775
    %3989 = vmatprep.subr.bf16.mxu0 %v3780
    %3990 = vmatpush1.bf16.msra.mxu0 %v3779
    %3991 = vmatprep.subr.bf16.mxu0 %v3784
    %3992 = vmatpush1.bf16.msra.mxu0 %v3783
    %3993 = vmatprep.subr.bf16.mxu0 %v3788
    %3994 = vmatpush1.bf16.msra.mxu0 %v3787
    %3995 = vmatprep.subr.bf16.mxu0 %v3792
    %3996 = vmatpush1.bf16.msra.mxu0 %v3791
    %3997 = vmatprep.mubr.bf16.mxu0 %v3858
    %3998 = vmatmul.mubr.bf16.gmra.mrb[0].mxu0 %v3857
    %v3999 = vpop.f32.mrb[0].mxu0
    %v4000 = vadd.f32 %v3874, %v3999
    %v4001 = vpop.f32.mrb[0].mxu0
    %v4002 = vadd.f32 %v3878, %v4001
    %v4003 = vpop.f32.mrb[0].mxu0
    %v4004 = vpop.f32.mrb[0].mxu0
    %4005 = vdwg.mxu0
    %4006 = vmatprep.subr.bf16.mxu0 %v3796
    %4007 = vmatpush1.bf16.msra.mxu0 %v3795
    %4008 = vmatprep.subr.bf16.mxu0 %v3800
    %4009 = vmatpush1.bf16.msra.mxu0 %v3799
    %4010 = vmatprep.subr.bf16.mxu0 %v3804
    %4011 = vmatpush1.bf16.msra.mxu0 %v3803
    %4012 = vmatprep.subr.bf16.mxu0 %v3808
    %4013 = vmatpush1.bf16.msra.mxu0 %v3807
    %4014 = vmatprep.subr.bf16.mxu0 %v3812
    %4015 = vmatpush1.bf16.msra.mxu0 %v3811
    %4016 = vmatprep.subr.bf16.mxu0 %v3816
    %4017 = vmatpush1.bf16.msra.mxu0 %v3815
    %4018 = vmatprep.subr.bf16.mxu0 %v3820
    %4019 = vmatpush1.bf16.msra.mxu0 %v3819
    %4020 = vmatprep.subr.bf16.mxu0 %v3824
    %4021 = vmatpush1.bf16.msra.mxu0 %v3823
    %4022 = vmatprep.subr.bf16.mxu0 %v3828
    %4023 = vmatpush1.bf16.msra.mxu0 %v3827
    %4024 = vmatprep.subr.bf16.mxu0 %v3832
    %4025 = vmatpush1.bf16.msra.mxu0 %v3831
    %4026 = vmatprep.subr.bf16.mxu0 %v3836
    %4027 = vmatpush1.bf16.msra.mxu0 %v3835
    %4028 = vmatprep.subr.bf16.mxu0 %v3840
    %4029 = vmatpush1.bf16.msra.mxu0 %v3839
    %4030 = vmatprep.subr.bf16.mxu0 %v3844
    %4031 = vmatpush1.bf16.msra.mxu0 %v3843
    %4032 = vmatprep.subr.bf16.mxu0 %v3848
    %4033 = vmatpush1.bf16.msra.mxu0 %v3847
    %4034 = vmatprep.subr.bf16.mxu0 %v3852
    %4035 = vmatpush1.bf16.msra.mxu0 %v3851
    %4036 = vmatprep.subr.bf16.mxu0 %v3856
    %4037 = vmatpush1.bf16.msra.mxu0 %v3855
    %4038 = vmatprep.mubr.bf16.mxu0 %v3860
    %4039 = vmatmul.mubr.bf16.gmra.mrb[0].mxu0 %v3859
    %v4040 = vpop.f32.mrb[0].mxu0
    %v4041 = vadd.f32 %v4000, %v4040
    %v4042 = vpop.f32.mrb[0].mxu0
    %v4043 = vadd.f32 %v4002, %v4042
    %v4044 = vpop.f32.mrb[0].mxu0
    %v4045 = vpop.f32.mrb[0].mxu0
    %4046 = vdwg.mxu0
    %v4047 = vxor.u32 %v3959, 2147483648
    %v4048 = vxor.u32 %v3961, 2147483648
    %v4049 = vxor.u32 %v4041, 2147483648
    %v4050 = vxor.u32 %v4043, 2147483648
    %v4051 = vmul.f32 %v4047, 1.442695
    %v4052 = vpow.pop %v4051
    %v4053 = vmul.f32 %v4048, 1.442695
    %v4054 = vpow.pop %v4053
    %v4055 = vmul.f32 %v4049, 1.442695
    %v4056 = vpow.pop %v4055
    %v4057 = vmul.f32 %v4050, 1.442695
    %v4058 = vpow.pop %v4057
    %v4059 = vadd.f32 %v4052, 1.0
    %v4060 = vadd.f32 %v4054, 1.0
    %v4061 = vadd.f32 %v4056, 1.0
    %v4062 = vadd.f32 %v4058, 1.0
    %v4063 = vrcp.pop %v4059
    %v4064 = vmul.f32 1.0, %v4063
    %v4065 = vrcp.pop %v4060
    %v4066 = vmul.f32 1.0, %v4065
    %v4067 = vrcp.pop %v4061
    %v4068 = vmul.f32 1.0, %v4067
    %v4069 = vrcp.pop %v4062
    %v4070 = vmul.f32 1.0, %v4069
    %v4071 = vmul.f32 %v3959, %v4064
    %v4072 = vmul.f32 %v3961, %v4066
    %v4073 = vmul.f32 %v4041, %v4068
    %v4074 = vmul.f32 %v4043, %v4070
    %v4075 = vld [vmem:[#allocation5 + $0xb8] sm:$0xff]
    %v4076 = vld [vmem:[#allocation5 + $0x178] sm:$0xff]
    %v4077 = vld [vmem:[#allocation5 + $0x238] sm:$0xff]
    %v4078 = vld [vmem:[#allocation5 + $0x2f8] sm:$0xff]
    %v4079 = vld [vmem:[#allocation5 + $0x3b8] sm:$0xff]
    %v4080 = vld [vmem:[#allocation5 + $0x478] sm:$0xff]
    %v4081 = vld [vmem:[#allocation5 + $0x538] sm:$0xff]
    %v4082 = vld [vmem:[#allocation5 + $0x5f8] sm:$0xff]
    %v4083 = vld [vmem:[#allocation5 + $0x6b8] sm:$0xff]
    %v4084 = vld [vmem:[#allocation5 + $0x778] sm:$0xff]
    %v4085 = vld [vmem:[#allocation5 + $0x838] sm:$0xff]
    %v4086 = vld [vmem:[#allocation5 + $0x8f8] sm:$0xff]
    %v4087 = vld [vmem:[#allocation5 + $0x9b8] sm:$0xff]
    %v4088 = vld [vmem:[#allocation5 + $0xa78] sm:$0xff]
    %v4089 = vld [vmem:[#allocation5 + $0xb38] sm:$0xff]
    %v4090 = vld [vmem:[#allocation5 + $0xbf8] sm:$0xff]
    %v4091 = vld [vmem:[#allocation5 + $0xcb8] sm:$0xff]
    %v4092 = vld [vmem:[#allocation5 + $0xd78] sm:$0xff]
    %v4093 = vld [vmem:[#allocation5 + $0xe38] sm:$0xff]
    %v4094 = vld [vmem:[#allocation5 + $0xef8] sm:$0xff]
    %v4095 = vld [vmem:[#allocation5 + $0xfb8] sm:$0xff]
    %v4096 = vld [vmem:[#allocation5 + $0x1078] sm:$0xff]
    %v4097 = vld [vmem:[#allocation5 + $0x1138] sm:$0xff]
    %v4098 = vld [vmem:[#allocation5 + $0x11f8] sm:$0xff]
    %v4099 = vld [vmem:[#allocation5 + $0x12b8] sm:$0xff]
    %v4100 = vld [vmem:[#allocation5 + $0x1378] sm:$0xff]
    %v4101 = vld [vmem:[#allocation5 + $0x1438] sm:$0xff]
    %v4102 = vld [vmem:[#allocation5 + $0x14f8] sm:$0xff]
    %v4103 = vld [vmem:[#allocation5 + $0x15b8] sm:$0xff]
    %v4104 = vld [vmem:[#allocation5 + $0x1678] sm:$0xff]
    %v4105 = vld [vmem:[#allocation5 + $0x1738] sm:$0xff]
    %v4106 = vld [vmem:[#allocation5 + $0x17f8] sm:$0xff]
    %v4107 = vpack.c.bf16 %v4071, %v4071
    %v4108 = vpack.c.bf16 %v4072, %v4072
    %v4109 = vpack.c.bf16 %v4073, %v4073
    %v4110 = vpack.c.bf16 %v4074, %v4074
    %v4111 = vld [vmem:[#allocation7 + $0x2d] sm:$0x1]
    %v4113 = vlaneseq
    %v4114 = vshrl.u32 %v4113, 7
    %v4115 = vsub.s32 0, %v4114
    %v4116 = vrot.slane %v4111, %v4115
    %4118 = vmatprep.subr.bf16.mxu0 0
    %4119 = vmatpush1.bf16.msra.mxu0 %v4075
    %4120 = vmatprep.subr.bf16.mxu0 0
    %4121 = vmatpush1.bf16.msra.mxu0 %v4076
    %4122 = vmatprep.subr.bf16.mxu0 0
    %4123 = vmatpush1.bf16.msra.mxu0 %v4077
    %4124 = vmatprep.subr.bf16.mxu0 0
    %4125 = vmatpush1.bf16.msra.mxu0 %v4078
    %4126 = vmatprep.subr.bf16.mxu0 0
    %4127 = vmatpush1.bf16.msra.mxu0 %v4079
    %4128 = vmatprep.subr.bf16.mxu0 0
    %4129 = vmatpush1.bf16.msra.mxu0 %v4080
    %4130 = vmatprep.subr.bf16.mxu0 0
    %4131 = vmatpush1.bf16.msra.mxu0 %v4081
    %4132 = vmatprep.subr.bf16.mxu0 0
    %4133 = vmatpush1.bf16.msra.mxu0 %v4082
    %4134 = vmatprep.subr.bf16.mxu0 0
    %4135 = vmatpush1.bf16.msra.mxu0 %v4083
    %4136 = vmatprep.subr.bf16.mxu0 0
    %4137 = vmatpush1.bf16.msra.mxu0 %v4084
    %4138 = vmatprep.subr.bf16.mxu0 0
    %4139 = vmatpush1.bf16.msra.mxu0 %v4085
    %4140 = vmatprep.subr.bf16.mxu0 0
    %4141 = vmatpush1.bf16.msra.mxu0 %v4086
    %4142 = vmatprep.subr.bf16.mxu0 0
    %4143 = vmatpush1.bf16.msra.mxu0 %v4087
    %4144 = vmatprep.subr.bf16.mxu0 0
    %4145 = vmatpush1.bf16.msra.mxu0 %v4088
    %4146 = vmatprep.subr.bf16.mxu0 0
    %4147 = vmatpush1.bf16.msra.mxu0 %v4089
    %4148 = vmatprep.subr.bf16.mxu0 0
    %4149 = vmatpush1.bf16.msra.mxu0 %v4090
    %4150 = vmatprep.mubr.bf16.mxu0 %v4108
    %4151 = vmatmul.mubr.bf16.gmra.mrb[0].mxu0 %v4107
    %v4152 = vpop.f32.mrb[0].mxu0
    %v4153 = vadd.f32 %v4116, %v4152
    %v4154 = vpop.f32.mrb[0].mxu0
    %v4155 = vpop.f32.mrb[0].mxu0
    %v4156 = vpop.f32.mrb[0].mxu0
    %4157 = vdwg.mxu0
    %4158 = vmatprep.subr.bf16.mxu0 0
    %4159 = vmatpush1.bf16.msra.mxu0 %v4091
    %4160 = vmatprep.subr.bf16.mxu0 0
    %4161 = vmatpush1.bf16.msra.mxu0 %v4092
    %4162 = vmatprep.subr.bf16.mxu0 0
    %4163 = vmatpush1.bf16.msra.mxu0 %v4093
    %4164 = vmatprep.subr.bf16.mxu0 0
    %4165 = vmatpush1.bf16.msra.mxu0 %v4094
    %4166 = vmatprep.subr.bf16.mxu0 0
    %4167 = vmatpush1.bf16.msra.mxu0 %v4095
    %4168 = vmatprep.subr.bf16.mxu0 0
    %4169 = vmatpush1.bf16.msra.mxu0 %v4096
    %4170 = vmatprep.subr.bf16.mxu0 0
    %4171 = vmatpush1.bf16.msra.mxu0 %v4097
    %4172 = vmatprep.subr.bf16.mxu0 0
    %4173 = vmatpush1.bf16.msra.mxu0 %v4098
    %4174 = vmatprep.subr.bf16.mxu0 0
    %4175 = vmatpush1.bf16.msra.mxu0 %v4099
    %4176 = vmatprep.subr.bf16.mxu0 0
    %4177 = vmatpush1.bf16.msra.mxu0 %v4100
    %4178 = vmatprep.subr.bf16.mxu0 0
    %4179 = vmatpush1.bf16.msra.mxu0 %v4101
    %4180 = vmatprep.subr.bf16.mxu0 0
    %4181 = vmatpush1.bf16.msra.mxu0 %v4102
    %4182 = vmatprep.subr.bf16.mxu0 0
    %4183 = vmatpush1.bf16.msra.mxu0 %v4103
    %4184 = vmatprep.subr.bf16.mxu0 0
    %4185 = vmatpush1.bf16.msra.mxu0 %v4104
    %4186 = vmatprep.subr.bf16.mxu0 0
    %4187 = vmatpush1.bf16.msra.mxu0 %v4105
    %4188 = vmatprep.subr.bf16.mxu0 0
    %4189 = vmatpush1.bf16.msra.mxu0 %v4106
    %4190 = vmatprep.mubr.bf16.mxu0 %v4110
    %4191 = vmatmul.mubr.bf16.gmra.mrb[0].mxu0 %v4109
    %v4192 = vpop.f32.mrb[0].mxu0
    %v4193 = vadd.f32 %v4153, %v4192
    %v4194 = vpop.f32.mrb[0].mxu0
    %v4195 = vpop.f32.mrb[0].mxu0
    %v4196 = vpop.f32.mrb[0].mxu0
    %4197 = vdwg.mxu0
    %4198 = vst [vmem:[#allocation11] sm:$0xff] %v4193
    // Predicated region
    $region22: #{_lambda_.1} parent=1 // pred_check
      _
    $region23: #{_lambda_.1} parent=1 // pred_check_branch
      %4200 = sbr.rel (0) target = $region25
    $region24: #{_lambda_.1} parent=1 // pred_region
      %s4202 = ssub.s32 896, 896
      %4203 = vsyncadd [#allocation9], %s4202
      %s4205 = sshll.u32 [#allocation10], 4
      %s4206 = int_to_ptr.vmem [resolvable:$true] %s4205
      %4208 = dma.vmem_to_hbm [thread:$0]  %s4206, 896, %s8, [#allocation9]
    $region25: #{_lambda_.1} parent=1 // pred_fallthru
      _
    // Predicated region
    $region26: #{_lambda_.1} parent=1 // pred_check
      _
    $region27: #{_lambda_.1} parent=1 // pred_check_branch
      %4210 = sbr.rel (0) target = $region29
    $region28: #{_lambda_.1} parent=1 // pred_region
      %s4212 = ssub.s32 128, 128
      %4213 = vsyncadd [#allocation12], %s4212
      %s4215 = sshll.u32 [#allocation11], 4
      %s4216 = int_to_ptr.vmem [resolvable:$true] %s4215
      %4218 = dma.vmem_to_hbm [thread:$0]  %s4216, 128, %s9, [#allocation12]
    $region29: #{_lambda_.1} parent=1 // pred_fallthru
      _
    // Predicated region
    $region30: #{_lambda_.1} parent=1 // pred_check
      _
    $region31: #{_lambda_.1} parent=1 // pred_check_branch
      %4220 = sbr.rel (0) target = $region33
    $region32: #{_lambda_.1} parent=1 // pred_region
      _
    $region33: #{_lambda_.1} parent=1 // pred_fallthru
      _
    // Predicated region
    $region34: #{_lambda_.1} parent=1 // pred_check
      _
    $region35: #{_lambda_.1} parent=1 // pred_check_branch
      %4222 = sbr.rel (0) target = $region37
    $region36: #{_lambda_.1} parent=1 // pred_region
      %4223 = dma.done [#allocation9], 896
    $region37: #{_lambda_.1} parent=1 // pred_fallthru
      _
    // Predicated region
    $region38: #{_lambda_.1} parent=1 // pred_check
      _
    $region39: #{_lambda_.1} parent=1 // pred_check_branch
      %4225 = sbr.rel (0) target = $region41
    $region40: #{_lambda_.1} parent=1 // pred_region
      %4226 = dma.done [#allocation12], 128
    $region41: #{_lambda_.1} parent=1 // pred_fallthru
      _
    // Predicated region
    $region42: #{_lambda_.1} parent=1 // pred_check
      _
    $region43: #{_lambda_.1} parent=1 // pred_check_branch
      %4228 = sbr.rel (0) target = $region45
    $region44: #{_lambda_.1} parent=1 // pred_region
      _
    $region45: #{_lambda_.1} parent=1 // pred_fallthru
      _
    %4229 = vsyncpa [#allocation8], 1
    %4230 = vsyncpa [#allocation9], 1
    %4231 = vsyncpa [#allocation12], 1
  %4232 = vsyncmov [#allocation6]
  %s4233 = vpop.sfrf %4232
  %p4234 = scmp.eq.s32.totalorder %s4233, 0
  %p4235 = pneg %p4234
  %4237 = shalt.err (%p4235)
  %s4238 = scalar_lea.sflag [#allocation6], 1
  %4239 = vsyncmov %s4238
  %s4240 = vpop.sfrf %4239
  %p4241 = scmp.eq.s32.totalorder %s4240, 0
  %p4242 = pneg %p4241
  %4244 = shalt.err (%p4242)
  %s4245 = scalar_lea.sflag [#allocation6], 2
  %4246 = vsyncmov %s4245
  %s4247 = vpop.sfrf %4246
  %p4248 = scmp.eq.s32.totalorder %s4247, 0
  %p4249 = pneg %p4248
  %4251 = shalt.err (%p4249)
  %s4252 = scalar_lea.sflag [#allocation6], 3
  %4253 = vsyncmov %s4252
  %s4254 = vpop.sfrf %4253
  %p4255 = scmp.eq.s32.totalorder %s4254, 0
  %p4256 = pneg %p4255
  %4258 = shalt.err (%p4256)

</llo_original>
